<compile_context>
chip_gen: v5e
topology: v5e:2x2
jax: 0.10.0
libtpu: 0.0.40
codegen_flags: <defaults>
</compile_context>

<pallas_src>
import functools

import jax
import jax.numpy as jnp
from jax.experimental import pallas as pl
from jax.experimental.pallas import tpu as pltpu


def _expand_kernel(x_ref, o_ref, *, s, c_out):
    # x_ref: (TB, c, TH, w)
    # o_ref: (TB, c_out, TH*s*w*s)   lane-dense flat layout        or
    #        (TB, c_out, TH*s, w*s)  fallback plain layout
    tb, _, th, w = x_ref.shape
    rows = []
    for s1 in range(s):
        # Lazy static channel-group slices.
        cols = [x_ref[:, (s1 * s + s2) * c_out:(s1 * s + s2 + 1) * c_out]
                for s2 in range(s)]
        # W interleave: wrow[..., wi*s + s2] = cols[s2][..., wi]
        rows.append(jnp.stack(cols, axis=-1).reshape(tb, c_out, th, w * s))
    # H interleave: y[..., hi, s1, :] = rows[s1][..., hi, :]
    y = jnp.stack(rows, axis=3)                     # (TB, c_out, TH, s, w*s)
    o_ref[...] = y.reshape(o_ref.shape).astype(o_ref.dtype)


def _vmem_capacity_bytes():
    try:
        return int(pltpu.get_tpu_info().vmem_capacity_bytes)
    except Exception:
        return 64 << 20  # conservative fallback (v7x per-TC VMEM)


def _round_up(x, m):
    return ((x + m - 1) // m) * m


def _sublane_multiple(itemsize):
    # (sublane, lane) tiling is (8,128) f32, (16,128) bf16, (32,128) int8/fp8.
    return max(8, 32 // max(1, int(itemsize)))


def _divisors_desc(n):
    return [d for d in range(n, 0, -1) if n % d == 0]


def _pick_tiling(b, c, h, w, s, itemsize, budget, allow_flat=True):
    """Returns (tb, th, flat_output_layout)."""
    sub = _sublane_multiple(itemsize)
    lane = 128
    c_out = c // (s * s)

    def in_bytes(tb, th):
        return tb * c * _round_up(th, sub) * _round_up(w, lane) * itemsize

    def out_bytes(tb, th, flat):
        if flat:
            return (tb * _round_up(c_out, sub)
                    * _round_up(th * s * s * w, lane) * itemsize)
        return (tb * c_out * _round_up(th * s, sub)
                * _round_up(w * s, lane) * itemsize)

    def fits(tb, th, flat):
        # 2x double-buffering (input + output) + ~1x relayout temporaries.
        return 3 * (in_bytes(tb, th) + out_bytes(tb, th, flat)) <= budget

    def th_valid(th, flat):
        if th == h:
            return True                     # full extent is always legal
        if th % sub != 0:
            return False                    # input sublane tiling rule
        if flat and (th * s * s * w) % lane != 0:
            return False                    # flat output lane tiling rule
        return True

    b_divs = _divisors_desc(b)
    h_divs = _divisors_desc(h)

    for flat in ((True, False) if allow_flat else (False,)):
        ths = [t for t in h_divs if th_valid(t, flat)]
        if not ths:
            continue
        best = None
        for th in ths:
            for tb in b_divs:
                if fits(tb, th, flat):
                    if best is None or tb * th > best[0] * best[1]:
                        best = (tb, th)
                    break
        if best is None:
            best = (1, ths[-1])             # vmem_limit headroom absorbs it
        tb, th = best
        # Guarantee >=2 grid steps so both v7x TensorCores get work.
        if (b // tb) * (h // th) == 1:
            if b > 1:
                tb = max(d for d in b_divs if d < b)
            else:
                smaller = [t for t in ths if t < th and fits(1, t, flat)]
                if smaller:
                    th = smaller[0]
        return tb, th, flat
    return 1, h, False  # unreachable: flat=False always admits th == h


def _expand_call(x, tb, th, flat, s, c_out, vmem_limit):
    b, c, h, w = x.shape
    grid = (b // tb, h // th)
    kernel = functools.partial(_expand_kernel, s=s, c_out=c_out)

    if flat:
        out_shape = jax.ShapeDtypeStruct((b, c_out, h * s * w * s), x.dtype)
        out_spec = pl.BlockSpec((tb, c_out, th * s * w * s),
                                lambda i, j: (i, 0, j))
    else:
        out_shape = jax.ShapeDtypeStruct((b, c_out, h * s, w * s), x.dtype)
        out_spec = pl.BlockSpec((tb, c_out, th * s, w * s),
                                lambda i, j: (i, 0, j, 0))

    return pl.pallas_call(
        kernel,
        out_shape=out_shape,
        grid_spec=pl.GridSpec(
            grid=grid,
            in_specs=[pl.BlockSpec((tb, c, th, w), lambda i, j: (i, 0, j, 0))],
            out_specs=out_spec,
        ),
        compiler_params=pltpu.CompilerParams(
            dimension_semantics=("parallel", "parallel"),
            vmem_limit_bytes=vmem_limit,
        ),
        cost_estimate=pl.CostEstimate(
            flops=0, transcendentals=0,
            bytes_accessed=2 * x.size * jnp.dtype(x.dtype).itemsize),
    )(x)


def expand(x, gain=2):
    b, c, h, w = x.shape
    s = int(gain)
    assert c % (s * s) == 0, "channels must be divisible by gain**2"
    c_out = c // (s * s)

    itemsize = jnp.dtype(x.dtype).itemsize
    cap = _vmem_capacity_bytes()
    budget = int(cap * 0.4)        # leave headroom for Mosaic internal scratch
    vmem_limit = int(cap * 0.8)

    tb, th, flat = _pick_tiling(b, c, h, w, s, itemsize, budget)

    if flat:
        try:
            out = _expand_call(x, tb, th, True, s, c_out, vmem_limit)
            # Free contiguous reshape back to NCHW (identical memory layout).
            return out.reshape(b, c_out, h * s, w * s)
        except Exception:
            # Lowering of the in-kernel flatten relayout failed on this
            # backend/version (eager-mode guard); use the plain layout.
            tb, th, _ = _pick_tiling(b, c, h, w, s, itemsize, budget,
                                     allow_flat=False)
    return _expand_call(x, tb, th, False, s, c_out, vmem_limit)


def expand_ref(x, gain=2):
    # Pure-JAX reference mirroring the PyTorch Expand module.
    b, c, h, w = x.shape
    s = gain
    y = x.reshape(b, s, s, c // (s * s), h, w)
    y = jnp.transpose(y, (0, 3, 4, 1, 5, 2))
    return y.reshape(b, c // (s * s), h * s, w * s)


if __name__ == "__main__":
    key = jax.random.PRNGKey(0)
    k1, k2 = jax.random.split(key)

    # NCHW, channels divisible by gain**2.
    x = jax.random.normal(k1, (2, 4, 16, 16), dtype=jnp.float32)
    out = jax.block_until_ready(expand(x))
    ref = expand_ref(x)
    assert out.shape == (2, 1, 32, 32), out.shape
    assert out.dtype == x.dtype
    assert jnp.array_equal(out, ref), "mismatch vs reference (test 1)"

    # Non-power-of-two spatial dims, more channels, odd batch.
    x2 = jax.random.normal(k2, (3, 8, 12, 20), dtype=jnp.float32)
    out2 = jax.block_until_ready(expand(x2))
    ref2 = expand_ref(x2)
    assert out2.shape == (3, 2, 24, 40), out2.shape
    assert jnp.array_equal(out2, ref2), "mismatch vs reference (test 2)"

    print("KERNEL_OK")
</pallas_src>

<mosaic_0001>
module attributes {stable_mosaic.version = 11 : i64} {
  func.func @_expand_kernel(%arg0: i32, %arg1: i32, %arg2: memref<1x4x16x16xf32, #tpu.memory_space<vmem>>, %arg3: memref<1x1x1024xf32, #tpu.memory_space<vmem>>) attributes {dimension_semantics = [#tpu.dimension_semantics<parallel>, #tpu.dimension_semantics<parallel>], iteration_bounds = array<i64: 2, 1>, scalar_prefetch = 0 : i64, scratch_operands = 0 : i64, tpu.core_type = #tpu.core_type<tc>, window_params = [{transform_indices = @transform_0, window_bounds = array<i64: 1, 4, 16, 16>}, {transform_indices = @transform_1, window_bounds = array<i64: 1, 1, 1024>}]} {
    %c0 = arith.constant 0 : index
    %c0_0 = arith.constant 0 : index
    %c0_1 = arith.constant 0 : index
    %c0_2 = arith.constant 0 : index
    %0 = vector.load %arg2[%c0, %c0_0, %c0_1, %c0_2] : memref<1x4x16x16xf32, #tpu.memory_space<vmem>>, vector<1x1x16x16xf32>
    %c0_3 = arith.constant 0 : index
    %c1 = arith.constant 1 : index
    %c0_4 = arith.constant 0 : index
    %c0_5 = arith.constant 0 : index
    %1 = vector.load %arg2[%c0_3, %c1, %c0_4, %c0_5] : memref<1x4x16x16xf32, #tpu.memory_space<vmem>>, vector<1x1x16x16xf32>
    %2 = vector.shape_cast %0 : vector<1x1x16x16xf32> to vector<1x1x16x16x1xf32>
    %3 = vector.shape_cast %1 : vector<1x1x16x16xf32> to vector<1x1x16x16x1xf32>
    %4 = tpu.concatenate %2, %3 in 4 : vector<1x1x16x16x1xf32>, vector<1x1x16x16x1xf32> -> vector<1x1x16x16x2xf32>
    %5 = vector.shape_cast %4 : vector<1x1x16x16x2xf32> to vector<1x1x16x32xf32>
    %c0_6 = arith.constant 0 : index
    %c2 = arith.constant 2 : index
    %c0_7 = arith.constant 0 : index
    %c0_8 = arith.constant 0 : index
    %6 = vector.load %arg2[%c0_6, %c2, %c0_7, %c0_8] : memref<1x4x16x16xf32, #tpu.memory_space<vmem>>, vector<1x1x16x16xf32>
    %c0_9 = arith.constant 0 : index
    %c3 = arith.constant 3 : index
    %c0_10 = arith.constant 0 : index
    %c0_11 = arith.constant 0 : index
    %7 = vector.load %arg2[%c0_9, %c3, %c0_10, %c0_11] : memref<1x4x16x16xf32, #tpu.memory_space<vmem>>, vector<1x1x16x16xf32>
    %8 = vector.shape_cast %6 : vector<1x1x16x16xf32> to vector<1x1x16x16x1xf32>
    %9 = vector.shape_cast %7 : vector<1x1x16x16xf32> to vector<1x1x16x16x1xf32>
    %10 = tpu.concatenate %8, %9 in 4 : vector<1x1x16x16x1xf32>, vector<1x1x16x16x1xf32> -> vector<1x1x16x16x2xf32>
    %11 = vector.shape_cast %10 : vector<1x1x16x16x2xf32> to vector<1x1x16x32xf32>
    %12 = vector.shape_cast %5 : vector<1x1x16x32xf32> to vector<1x1x16x1x32xf32>
    %13 = vector.shape_cast %11 : vector<1x1x16x32xf32> to vector<1x1x16x1x32xf32>
    %14 = tpu.concatenate %12, %13 in 3 : vector<1x1x16x1x32xf32>, vector<1x1x16x1x32xf32> -> vector<1x1x16x2x32xf32>
    %15 = vector.shape_cast %14 : vector<1x1x16x2x32xf32> to vector<1x1x1024xf32>
    %c0_12 = arith.constant 0 : index
    %c0_13 = arith.constant 0 : index
    %c0_14 = arith.constant 0 : index
    %16 = vector.load %arg3[%c0_12, %c0_13, %c0_14] : memref<1x1x1024xf32, #tpu.memory_space<vmem>>, vector<1x1x1024xf32>
    tpu.vector_store %arg3[%c0_12, %c0_13, %c0_14], %15 {strides = array<i32>} : memref<1x1x1024xf32, #tpu.memory_space<vmem>>, vector<1x1x1024xf32>,
    return
  }
  func.func @transform_0(%arg0: i32, %arg1: i32) -> (i32, i32, i32, i32) {
    %c0_i32 = arith.constant 0 : i32
    %c0_i32_0 = arith.constant 0 : i32
    %c0_i32_1 = arith.constant 0 : i32
    return %arg0, %c0_i32, %arg1, %c0_i32_0 : i32, i32, i32, i32
  }
  func.func @transform_1(%arg0: i32, %arg1: i32) -> (i32, i32, i32) {
    %c0_i32 = arith.constant 0 : i32
    %c0_i32_0 = arith.constant 0 : i32
    return %arg0, %c0_i32, %arg1 : i32, i32, i32
  }
}

module attributes {stable_mosaic.version = 11 : i64} {
  func.func @_expand_kernel(%arg0: i32, %arg1: i32, %arg2: memref<1x4x16x16xf32, #tpu.memory_space<vmem>>, %arg3: memref<1x1x32x32xf32, #tpu.memory_space<vmem>>) attributes {dimension_semantics = [#tpu.dimension_semantics<parallel>, #tpu.dimension_semantics<parallel>], iteration_bounds = array<i64: 2, 1>, scalar_prefetch = 0 : i64, scratch_operands = 0 : i64, tpu.core_type = #tpu.core_type<tc>, window_params = [{transform_indices = @transform_0, window_bounds = array<i64: 1, 4, 16, 16>}, {transform_indices = @transform_1, window_bounds = array<i64: 1, 1, 32, 32>}]} {
    %c0 = arith.constant 0 : index
    %c0_0 = arith.constant 0 : index
    %c0_1 = arith.constant 0 : index
    %c0_2 = arith.constant 0 : index
    %0 = vector.load %arg2[%c0, %c0_0, %c0_1, %c0_2] : memref<1x4x16x16xf32, #tpu.memory_space<vmem>>, vector<1x1x16x16xf32>
    %c0_3 = arith.constant 0 : index
    %c1 = arith.constant 1 : index
    %c0_4 = arith.constant 0 : index
    %c0_5 = arith.constant 0 : index
    %1 = vector.load %arg2[%c0_3, %c1, %c0_4, %c0_5] : memref<1x4x16x16xf32, #tpu.memory_space<vmem>>, vector<1x1x16x16xf32>
    %2 = vector.shape_cast %0 : vector<1x1x16x16xf32> to vector<1x1x16x16x1xf32>
    %3 = vector.shape_cast %1 : vector<1x1x16x16xf32> to vector<1x1x16x16x1xf32>
    %4 = tpu.concatenate %2, %3 in 4 : vector<1x1x16x16x1xf32>, vector<1x1x16x16x1xf32> -> vector<1x1x16x16x2xf32>
    %5 = vector.shape_cast %4 : vector<1x1x16x16x2xf32> to vector<1x1x16x32xf32>
    %c0_6 = arith.constant 0 : index
    %c2 = arith.constant 2 : index
    %c0_7 = arith.constant 0 : index
    %c0_8 = arith.constant 0 : index
    %6 = vector.load %arg2[%c0_6, %c2, %c0_7, %c0_8] : memref<1x4x16x16xf32, #tpu.memory_space<vmem>>, vector<1x1x16x16xf32>
    %c0_9 = arith.constant 0 : index
    %c3 = arith.constant 3 : index
    %c0_10 = arith.constant 0 : index
    %c0_11 = arith.constant 0 : index
    %7 = vector.load %arg2[%c0_9, %c3, %c0_10, %c0_11] : memref<1x4x16x16xf32, #tpu.memory_space<vmem>>, vector<1x1x16x16xf32>
    %8 = vector.shape_cast %6 : vector<1x1x16x16xf32> to vector<1x1x16x16x1xf32>
    %9 = vector.shape_cast %7 : vector<1x1x16x16xf32> to vector<1x1x16x16x1xf32>
    %10 = tpu.concatenate %8, %9 in 4 : vector<1x1x16x16x1xf32>, vector<1x1x16x16x1xf32> -> vector<1x1x16x16x2xf32>
    %11 = vector.shape_cast %10 : vector<1x1x16x16x2xf32> to vector<1x1x16x32xf32>
    %12 = vector.shape_cast %5 : vector<1x1x16x32xf32> to vector<1x1x16x1x32xf32>
    %13 = vector.shape_cast %11 : vector<1x1x16x32xf32> to vector<1x1x16x1x32xf32>
    %14 = tpu.concatenate %12, %13 in 3 : vector<1x1x16x1x32xf32>, vector<1x1x16x1x32xf32> -> vector<1x1x16x2x32xf32>
    %15 = vector.shape_cast %14 : vector<1x1x16x2x32xf32> to vector<1x1x32x32xf32>
    %c0_12 = arith.constant 0 : index
    %c0_13 = arith.constant 0 : index
    %c0_14 = arith.constant 0 : index
    %c0_15 = arith.constant 0 : index
    %16 = vector.load %arg3[%c0_12, %c0_13, %c0_14, %c0_15] : memref<1x1x32x32xf32, #tpu.memory_space<vmem>>, vector<1x1x32x32xf32>
    tpu.vector_store %arg3[%c0_12, %c0_13, %c0_14, %c0_15], %15 {strides = array<i32>} : memref<1x1x32x32xf32, #tpu.memory_space<vmem>>, vector<1x1x32x32xf32>,
    return
  }
  func.func @transform_0(%arg0: i32, %arg1: i32) -> (i32, i32, i32, i32) {
    %c0_i32 = arith.constant 0 : i32
    %c0_i32_0 = arith.constant 0 : i32
    %c0_i32_1 = arith.constant 0 : i32
    return %arg0, %c0_i32, %arg1, %c0_i32_0 : i32, i32, i32, i32
  }
  func.func @transform_1(%arg0: i32, %arg1: i32) -> (i32, i32, i32, i32) {
    %c0_i32 = arith.constant 0 : i32
    %c0_i32_0 = arith.constant 0 : i32
    %c0_i32_1 = arith.constant 0 : i32
    return %arg0, %c0_i32, %arg1, %c0_i32_0 : i32, i32, i32, i32
  }
}

</mosaic_0001>

<llo_original>
// kernel: tpu_custom_call.1
$region0: #{tpu_custom_call.1}
  #allocation0 [shape = 'u32[]', space=smem, size = 0x4, offset = 0x4, fixed_abs, tag = 'smem constant byte address 0x4 - core index']
  #allocation1 [shape = 'u32[72,128]{1,0:T(1,128)}', space=vmem, size = 0x9000, scoped, tag = 'internal scratch']
  %s0 = inlined_call_operand.hbm [shape: f32[2,4,16,16], index: 0, kind: input, shape index: {}]
  %s1 = inlined_call_operand.hbm [shape: f32[2,1,32,32], index: 1, kind: output, shape index: {}]
  %s2 = sld [smem:[#allocation0]]
  $region41: #{tpu_custom_call.1} parent=0
    _
  %s4 = ssub.s32 1, %s2
  %s5 = scalar_select 0, %s4, %s2
  $region1: #{tpu_custom_call.1} parent=0
    #allocation2 [shape = 'u8[65536]{0}', space=vmem, size = 0x10000, scoped, tag = 'input window, operand 0']
    #allocation3 [shape = 's32[2]{0}', space=sflag, size = 0x8, scoped, tag = 'scoped memory for tpu_custom_call.1']
    #allocation4 [shape = 's32[2]{0}', space=sflag, size = 0x8, scoped, tag = 'scoped memory for tpu_custom_call.1']
    #allocation5 [shape = 'u8[32768]{0}', space=vmem, size = 0x8000, scoped, tag = 'output window, operand 0']
    %6 = vsyncpa [#allocation3], 0
    %s7 = scalar_lea.sflag [#allocation3], 1
    %8 = vsyncpa %s7, 0
    %9 = vsyncpa [#allocation4], 0
    %s10 = scalar_lea.sflag [#allocation4], 1
    %11 = vsyncpa %s10, 0
    loop: start=0, step=1, limit=4
    $region2: #{tpu_custom_call.1} parent=1 // loop_pre_header
      _
    $region3: #{tpu_custom_call.1} parent=1 // loop_header
      %s13 = sphi 0, %s17
      %p14 = scmp.ge.s32.totalorder %s13, 4
      %s20 = sphi 0, %s32
      %s21 = sphi 0, %s28
      %s22 = sphi 0, %s20
      %s23 = sphi 0, %s21
      %s24 = sphi 0, %s22
      %s25 = sphi 0, %s23
      %s37 = sphi 0, %s39
      %s40 = sphi 0, %s37
      %s41 = sphi 0, %s40
      %s57 = sphi 0, %s41
      %s65 = sphi 0, %s67
      %s68 = sphi 0, %s65
      %s69 = sphi 0, %s68
      %s85 = sphi 0, %s69
    $region4: #{tpu_custom_call.1} parent=1 // loop_header_branch
      %16 = sbr.rel (%p14) target = $region8
    $region5: #{tpu_custom_call.1} parent=1 // loop_body
      %s18 = ssub.s32 %s13, 1
      %s19 = ssub.s32 %s13, 2
      %s26 = sadd.s32 1, %s21
      %p27 = scmp.ge.s32.totalorder %s26, 1
      %s28 = scalar_select %p27, 0, %s26
      %s29 = sadd.s32 1, %s20
      %s30 = scalar_select %p27, %s29, %s20
      %p31 = scmp.ge.s32.totalorder %s30, 2
      %s32 = scalar_select %p31, 0, %s30
      %s33 = ssub.s32 %s20, %s32
      %s34 = ssub.s32 %s21, %s28
      %s35 = sor.u32 %s33, %s34
      %p36 = scmp.eq.s32.totalorder %s35, 0
      %s38 = sadd.s32 %s37, 1
      %s39 = scalar_select %p36, %s37, %s38
      %p42 = pneg %p36
      %p43 = scmp.eq.s32.totalorder %s13, 1
      %p44 = por %p42, %p43
      %p45 = scmp.ne.s32.totalorder %s37, %s40
      %p46 = scmp.eq.s32.totalorder %s13, 0
      %p47 = por %p45, %p46
      %p48 = scmp.ne.s32.totalorder %s37, %s40
      %p49 = scmp.eq.s32.totalorder %s18, 1
      %p50 = por %p48, %p49
      %p51 = scmp.ne.s32.totalorder %s40, %s41
      %p52 = scmp.eq.s32.totalorder %s18, 0
      %p53 = por %p51, %p52
      %p54 = scmp.ne.s32.totalorder %s40, %s41
      %p55 = scmp.eq.s32.totalorder %s19, 1
      %p56 = por %p54, %p55
      %p58 = scmp.ne.s32.totalorder %s41, %s57
      %p59 = scmp.eq.s32.totalorder %s19, 0
      %p60 = por %p58, %p59
      %s61 = ssub.s32 %s20, %s32
      %s62 = ssub.s32 %s21, %s28
      %s63 = sor.u32 %s61, %s62
      %p64 = scmp.eq.s32.totalorder %s63, 0
      %s66 = sadd.s32 %s65, 1
      %s67 = scalar_select %p64, %s65, %s66
      %p70 = pneg %p64
      %p71 = scmp.eq.s32.totalorder %s13, 1
      %p72 = por %p70, %p71
      %p73 = scmp.ne.s32.totalorder %s65, %s68
      %p74 = scmp.eq.s32.totalorder %s13, 0
      %p75 = por %p73, %p74
      %p76 = scmp.ne.s32.totalorder %s65, %s68
      %p77 = scmp.eq.s32.totalorder %s18, 1
      %p78 = por %p76, %p77
      %p79 = scmp.ne.s32.totalorder %s68, %s69
      %p80 = scmp.eq.s32.totalorder %s18, 0
      %p81 = por %p79, %p80
      %p82 = scmp.ne.s32.totalorder %s68, %s69
      %p83 = scmp.eq.s32.totalorder %s19, 1
      %p84 = por %p82, %p83
      %p86 = scmp.ne.s32.totalorder %s69, %s85
      %p87 = scmp.eq.s32.totalorder %s19, 0
      %p88 = por %p86, %p87
      %p89 = scmp.le.s32.totalorder 1, %s13
      %p90 = scmp.lt.s32.totalorder %s13, 3
      %p91 = pnand %p89, %p90
      %p92 = pneg %p91
      // Predicated region
      $region9: #{tpu_custom_call.1} parent=5 // pred_check
        _
      $region10: #{tpu_custom_call.1} parent=5 // pred_check_branch
        %94 = sbr.rel (%p91) target = $region12
      $region11: #{tpu_custom_call.1} parent=5 // pred_region
        %s95 = ssub.s32 %s13, 1
      $region12: #{tpu_custom_call.1} parent=5 // pred_fallthru
        _
      %p96 = scmp.lt.s32.totalorder %s13, 2
      // Predicated region
      $region13: #{tpu_custom_call.1} parent=5 // pred_check
        %p97 = pneg %p96
      $region14: #{tpu_custom_call.1} parent=5 // pred_check_branch
        %99 = sbr.rel (%p97) target = $region16
      $region15: #{tpu_custom_call.1} parent=5 // pred_region
        // Predicated region
        $region17: #{tpu_custom_call.1} parent=15 // pred_check
          %p100 = pneg %p47
        $region18: #{tpu_custom_call.1} parent=15 // pred_check_branch
          %102 = sbr.rel (%p100) target = $region20
        $region19: #{tpu_custom_call.1} parent=15 // pred_region
          %s103 = sand.u32 %s37, 1
          %s104 = scalar_lea.sflag [#allocation3], %s103
          %s105 = sand.u32 %s37, 1
          %s106 = smul.addr %s105, 64
          %s107 = scalar_lea.vmem [#allocation2], %s106
          %s108 = smul.u32 2, %s21
          %110 = vsyncadd %s104, 0
          %s111 = smul.addr %s20, 8
          %s112 = sadd.s32 %s108, %s111
          %s113 = smul.addr %s112, 8
          %s114 = scalar_lea.hbm %s0, %s113
          %s115 = sshll.u32 %s114, 4
          %s116 = int_to_ptr.hbm [resolvable:$true] %s115
          %s117 = sshll.u32 %s107, 4
          %s118 = int_to_ptr.vmem [resolvable:$true] %s117
          %123 = dma.hbm_to_vmem [thread:$0]  %s116, 1024, %s118, %s104, 128, 128, 8
        $region20: #{tpu_custom_call.1} parent=15 // pred_fallthru
          _
      $region16: #{tpu_custom_call.1} parent=5 // pred_fallthru
        _
      %p124 = scmp.le.s32.totalorder 1, %s13
      %p125 = scmp.lt.s32.totalorder %s13, 3
      %p126 = pnand %p124, %p125
      %p127 = pneg %p126
      // Predicated region
      $region21: #{tpu_custom_call.1} parent=5 // pred_check
        _
      $region22: #{tpu_custom_call.1} parent=5 // pred_check_branch
        %129 = sbr.rel (%p126) target = $region24
      $region23: #{tpu_custom_call.1} parent=5 // pred_region
        %s130 = ssub.s32 %s13, 1
        %s131 = sand.u32 %s40, 1
        %s132 = scalar_lea.sflag [#allocation3], %s131
        %s133 = sand.u32 %s40, 1
        %s134 = smul.addr %s133, 64
        %s135 = scalar_lea.vmem [#allocation2], %s134
        // Predicated region
        $region25: #{tpu_custom_call.1} parent=23 // pred_check
          %p136 = pneg %p53
        $region26: #{tpu_custom_call.1} parent=23 // pred_check_branch
          %138 = sbr.rel (%p136) target = $region28
        $region27: #{tpu_custom_call.1} parent=23 // pred_region
          %140 = dma.done %s132, 1024
        $region28: #{tpu_custom_call.1} parent=23 // pred_fallthru
          _
        %s141 = sand.u32 %s40, 1
        %s142 = scalar_lea.sflag [#allocation3], %s141
        %s143 = sand.u32 %s40, 1
        %s144 = smul.addr %s143, 64
        %s145 = scalar_lea.vmem [#allocation2], %s144
        %p146 = pneg %p53
        %p147 = pneg %p50
        %p148 = pneg %p81
        %p149 = pneg %p78
        %s150 = sand.u32 %s68, 1
        %s151 = scalar_lea.sflag [#allocation4], %s150
        %s152 = sand.u32 %s68, 1
        %s153 = smul.addr %s152, 32
        %s154 = scalar_lea.vmem [#allocation5], %s153
        %s155 = smul.u32 2, %s23
        %s156 = smul.u32 4, %s23
        %v157 = vld [vmem:[%s135] sm:$0xff]
        %v158 = vld [vmem:[%s135 + $0x8] sm:$0xff]
        %s159 = scalar_lea.vmem %s135, 16 [#allocation2]
        %v160 = vld [vmem:[%s159] sm:$0xff]
        %v161 = vld [vmem:[%s159 + $0x8] sm:$0xff]
        %v162 = vperm.slane %v157, 0
        %v163 = vlaneseq
        %v164 = vshrl.u32 %v163, 7
        %166 = vset.pattern.permute.xlu0 %v164
        %167 = vperm.xlu0 %166, %v162
        %v168 = vpop.permute.xlu0 %167
        %v169 = vlaneseq
        %v170 = vshrl.u32 %v169, 7
        %v171 = vadd.s32 %v170, 8
        %172 = vset.pattern.permute.xlu0 %v171
        %173 = vperm.xlu0 %172, %v162
        %v174 = vpop.permute.xlu0 %173
        %v175 = vperm.slane %v157, 1
        %v176 = vlaneseq
        %v177 = vshrl.u32 %v176, 7
        %179 = vset.pattern.permute.xlu0 %v177
        %180 = vperm.xlu0 %179, %v175
        %v181 = vpop.permute.xlu0 %180
        %v182 = vlaneseq
        %v183 = vshrl.u32 %v182, 7
        %v184 = vadd.s32 %v183, 8
        %185 = vset.pattern.permute.xlu0 %v184
        %186 = vperm.xlu0 %185, %v175
        %v187 = vpop.permute.xlu0 %186
        %v188 = vperm.slane %v157, 2
        %v189 = vlaneseq
        %v190 = vshrl.u32 %v189, 7
        %192 = vset.pattern.permute.xlu0 %v190
        %193 = vperm.xlu0 %192, %v188
        %v194 = vpop.permute.xlu0 %193
        %v195 = vlaneseq
        %v196 = vshrl.u32 %v195, 7
        %v197 = vadd.s32 %v196, 8
        %198 = vset.pattern.permute.xlu0 %v197
        %199 = vperm.xlu0 %198, %v188
        %v200 = vpop.permute.xlu0 %199
        %v201 = vperm.slane %v157, 3
        %v202 = vlaneseq
        %v203 = vshrl.u32 %v202, 7
        %205 = vset.pattern.permute.xlu0 %v203
        %206 = vperm.xlu0 %205, %v201
        %v207 = vpop.permute.xlu0 %206
        %v208 = vlaneseq
        %v209 = vshrl.u32 %v208, 7
        %v210 = vadd.s32 %v209, 8
        %211 = vset.pattern.permute.xlu0 %v210
        %212 = vperm.xlu0 %211, %v201
        %v213 = vpop.permute.xlu0 %212
        %v214 = vperm.slane %v157, 4
        %v215 = vlaneseq
        %v216 = vshrl.u32 %v215, 7
        %218 = vset.pattern.permute.xlu0 %v216
        %219 = vperm.xlu0 %218, %v214
        %v220 = vpop.permute.xlu0 %219
        %v221 = vlaneseq
        %v222 = vshrl.u32 %v221, 7
        %v223 = vadd.s32 %v222, 8
        %224 = vset.pattern.permute.xlu0 %v223
        %225 = vperm.xlu0 %224, %v214
        %v226 = vpop.permute.xlu0 %225
        %v227 = vperm.slane %v157, 5
        %v228 = vlaneseq
        %v229 = vshrl.u32 %v228, 7
        %231 = vset.pattern.permute.xlu0 %v229
        %232 = vperm.xlu0 %231, %v227
        %v233 = vpop.permute.xlu0 %232
        %v234 = vlaneseq
        %v235 = vshrl.u32 %v234, 7
        %v236 = vadd.s32 %v235, 8
        %237 = vset.pattern.permute.xlu0 %v236
        %238 = vperm.xlu0 %237, %v227
        %v239 = vpop.permute.xlu0 %238
        %v240 = vperm.slane %v157, 6
        %v241 = vlaneseq
        %v242 = vshrl.u32 %v241, 7
        %244 = vset.pattern.permute.xlu0 %v242
        %245 = vperm.xlu0 %244, %v240
        %v246 = vpop.permute.xlu0 %245
        %v247 = vlaneseq
        %v248 = vshrl.u32 %v247, 7
        %v249 = vadd.s32 %v248, 8
        %250 = vset.pattern.permute.xlu0 %v249
        %251 = vperm.xlu0 %250, %v240
        %v252 = vpop.permute.xlu0 %251
        %v253 = vperm.slane %v157, 7
        %v254 = vlaneseq
        %v255 = vshrl.u32 %v254, 7
        %257 = vset.pattern.permute.xlu0 %v255
        %258 = vperm.xlu0 %257, %v253
        %v259 = vpop.permute.xlu0 %258
        %v260 = vlaneseq
        %v261 = vshrl.u32 %v260, 7
        %v262 = vadd.s32 %v261, 8
        %263 = vset.pattern.permute.xlu0 %v262
        %264 = vperm.xlu0 %263, %v253
        %v265 = vpop.permute.xlu0 %264
        %v266 = vperm.slane %v158, 0
        %v267 = vlaneseq
        %v268 = vshrl.u32 %v267, 7
        %270 = vset.pattern.permute.xlu0 %v268
        %271 = vperm.xlu0 %270, %v266
        %v272 = vpop.permute.xlu0 %271
        %v273 = vlaneseq
        %v274 = vshrl.u32 %v273, 7
        %v275 = vadd.s32 %v274, 8
        %276 = vset.pattern.permute.xlu0 %v275
        %277 = vperm.xlu0 %276, %v266
        %v278 = vpop.permute.xlu0 %277
        %v279 = vperm.slane %v158, 1
        %v280 = vlaneseq
        %v281 = vshrl.u32 %v280, 7
        %283 = vset.pattern.permute.xlu0 %v281
        %284 = vperm.xlu0 %283, %v279
        %v285 = vpop.permute.xlu0 %284
        %v286 = vlaneseq
        %v287 = vshrl.u32 %v286, 7
        %v288 = vadd.s32 %v287, 8
        %289 = vset.pattern.permute.xlu0 %v288
        %290 = vperm.xlu0 %289, %v279
        %v291 = vpop.permute.xlu0 %290
        %v292 = vperm.slane %v158, 2
        %v293 = vlaneseq
        %v294 = vshrl.u32 %v293, 7
        %296 = vset.pattern.permute.xlu0 %v294
        %297 = vperm.xlu0 %296, %v292
        %v298 = vpop.permute.xlu0 %297
        %v299 = vlaneseq
        %v300 = vshrl.u32 %v299, 7
        %v301 = vadd.s32 %v300, 8
        %302 = vset.pattern.permute.xlu0 %v301
        %303 = vperm.xlu0 %302, %v292
        %v304 = vpop.permute.xlu0 %303
        %v305 = vperm.slane %v158, 3
        %v306 = vlaneseq
        %v307 = vshrl.u32 %v306, 7
        %309 = vset.pattern.permute.xlu0 %v307
        %310 = vperm.xlu0 %309, %v305
        %v311 = vpop.permute.xlu0 %310
        %v312 = vlaneseq
        %v313 = vshrl.u32 %v312, 7
        %v314 = vadd.s32 %v313, 8
        %315 = vset.pattern.permute.xlu0 %v314
        %316 = vperm.xlu0 %315, %v305
        %v317 = vpop.permute.xlu0 %316
        %v318 = vperm.slane %v158, 4
        %v319 = vlaneseq
        %v320 = vshrl.u32 %v319, 7
        %322 = vset.pattern.permute.xlu0 %v320
        %323 = vperm.xlu0 %322, %v318
        %v324 = vpop.permute.xlu0 %323
        %v325 = vlaneseq
        %v326 = vshrl.u32 %v325, 7
        %v327 = vadd.s32 %v326, 8
        %328 = vset.pattern.permute.xlu0 %v327
        %329 = vperm.xlu0 %328, %v318
        %v330 = vpop.permute.xlu0 %329
        %v331 = vperm.slane %v158, 5
        %v332 = vlaneseq
        %v333 = vshrl.u32 %v332, 7
        %335 = vset.pattern.permute.xlu0 %v333
        %336 = vperm.xlu0 %335, %v331
        %v337 = vpop.permute.xlu0 %336
        %v338 = vlaneseq
        %v339 = vshrl.u32 %v338, 7
        %v340 = vadd.s32 %v339, 8
        %341 = vset.pattern.permute.xlu0 %v340
        %342 = vperm.xlu0 %341, %v331
        %v343 = vpop.permute.xlu0 %342
        %v344 = vperm.slane %v158, 6
        %v345 = vlaneseq
        %v346 = vshrl.u32 %v345, 7
        %348 = vset.pattern.permute.xlu0 %v346
        %349 = vperm.xlu0 %348, %v344
        %v350 = vpop.permute.xlu0 %349
        %v351 = vlaneseq
        %v352 = vshrl.u32 %v351, 7
        %v353 = vadd.s32 %v352, 8
        %354 = vset.pattern.permute.xlu0 %v353
        %355 = vperm.xlu0 %354, %v344
        %v356 = vpop.permute.xlu0 %355
        %v357 = vperm.slane %v158, 7
        %v358 = vlaneseq
        %v359 = vshrl.u32 %v358, 7
        %361 = vset.pattern.permute.xlu0 %v359
        %362 = vperm.xlu0 %361, %v357
        %v363 = vpop.permute.xlu0 %362
        %v364 = vlaneseq
        %v365 = vshrl.u32 %v364, 7
        %v366 = vadd.s32 %v365, 8
        %367 = vset.pattern.permute.xlu0 %v366
        %368 = vperm.xlu0 %367, %v357
        %v369 = vpop.permute.xlu0 %368
        %v370 = vperm.slane %v160, 0
        %v371 = vlaneseq
        %v372 = vshrl.u32 %v371, 7
        %374 = vset.pattern.permute.xlu0 %v372
        %375 = vperm.xlu0 %374, %v370
        %v376 = vpop.permute.xlu0 %375
        %v377 = vlaneseq
        %v378 = vshrl.u32 %v377, 7
        %v379 = vadd.s32 %v378, 8
        %380 = vset.pattern.permute.xlu0 %v379
        %381 = vperm.xlu0 %380, %v370
        %v382 = vpop.permute.xlu0 %381
        %v383 = vperm.slane %v160, 1
        %v384 = vlaneseq
        %v385 = vshrl.u32 %v384, 7
        %387 = vset.pattern.permute.xlu0 %v385
        %388 = vperm.xlu0 %387, %v383
        %v389 = vpop.permute.xlu0 %388
        %v390 = vlaneseq
        %v391 = vshrl.u32 %v390, 7
        %v392 = vadd.s32 %v391, 8
        %393 = vset.pattern.permute.xlu0 %v392
        %394 = vperm.xlu0 %393, %v383
        %v395 = vpop.permute.xlu0 %394
        %v396 = vperm.slane %v160, 2
        %v397 = vlaneseq
        %v398 = vshrl.u32 %v397, 7
        %400 = vset.pattern.permute.xlu0 %v398
        %401 = vperm.xlu0 %400, %v396
        %v402 = vpop.permute.xlu0 %401
        %v403 = vlaneseq
        %v404 = vshrl.u32 %v403, 7
        %v405 = vadd.s32 %v404, 8
        %406 = vset.pattern.permute.xlu0 %v405
        %407 = vperm.xlu0 %406, %v396
        %v408 = vpop.permute.xlu0 %407
        %v409 = vperm.slane %v160, 3
        %v410 = vlaneseq
        %v411 = vshrl.u32 %v410, 7
        %413 = vset.pattern.permute.xlu0 %v411
        %414 = vperm.xlu0 %413, %v409
        %v415 = vpop.permute.xlu0 %414
        %v416 = vlaneseq
        %v417 = vshrl.u32 %v416, 7
        %v418 = vadd.s32 %v417, 8
        %419 = vset.pattern.permute.xlu0 %v418
        %420 = vperm.xlu0 %419, %v409
        %v421 = vpop.permute.xlu0 %420
        %v422 = vperm.slane %v160, 4
        %v423 = vlaneseq
        %v424 = vshrl.u32 %v423, 7
        %426 = vset.pattern.permute.xlu0 %v424
        %427 = vperm.xlu0 %426, %v422
        %v428 = vpop.permute.xlu0 %427
        %v429 = vlaneseq
        %v430 = vshrl.u32 %v429, 7
        %v431 = vadd.s32 %v430, 8
        %432 = vset.pattern.permute.xlu0 %v431
        %433 = vperm.xlu0 %432, %v422
        %v434 = vpop.permute.xlu0 %433
        %v435 = vperm.slane %v160, 5
        %v436 = vlaneseq
        %v437 = vshrl.u32 %v436, 7
        %439 = vset.pattern.permute.xlu0 %v437
        %440 = vperm.xlu0 %439, %v435
        %v441 = vpop.permute.xlu0 %440
        %v442 = vlaneseq
        %v443 = vshrl.u32 %v442, 7
        %v444 = vadd.s32 %v443, 8
        %445 = vset.pattern.permute.xlu0 %v444
        %446 = vperm.xlu0 %445, %v435
        %v447 = vpop.permute.xlu0 %446
        %v448 = vperm.slane %v160, 6
        %v449 = vlaneseq
        %v450 = vshrl.u32 %v449, 7
        %452 = vset.pattern.permute.xlu0 %v450
        %453 = vperm.xlu0 %452, %v448
        %v454 = vpop.permute.xlu0 %453
        %v455 = vlaneseq
        %v456 = vshrl.u32 %v455, 7
        %v457 = vadd.s32 %v456, 8
        %458 = vset.pattern.permute.xlu0 %v457
        %459 = vperm.xlu0 %458, %v448
        %v460 = vpop.permute.xlu0 %459
        %v461 = vperm.slane %v160, 7
        %v462 = vlaneseq
        %v463 = vshrl.u32 %v462, 7
        %465 = vset.pattern.permute.xlu0 %v463
        %466 = vperm.xlu0 %465, %v461
        %v467 = vpop.permute.xlu0 %466
        %v468 = vlaneseq
        %v469 = vshrl.u32 %v468, 7
        %v470 = vadd.s32 %v469, 8
        %471 = vset.pattern.permute.xlu0 %v470
        %472 = vperm.xlu0 %471, %v461
        %v473 = vpop.permute.xlu0 %472
        %v474 = vperm.slane %v161, 0
        %v475 = vlaneseq
        %v476 = vshrl.u32 %v475, 7
        %478 = vset.pattern.permute.xlu0 %v476
        %479 = vperm.xlu0 %478, %v474
        %v480 = vpop.permute.xlu0 %479
        %v481 = vlaneseq
        %v482 = vshrl.u32 %v481, 7
        %v483 = vadd.s32 %v482, 8
        %484 = vset.pattern.permute.xlu0 %v483
        %485 = vperm.xlu0 %484, %v474
        %v486 = vpop.permute.xlu0 %485
        %v487 = vperm.slane %v161, 1
        %v488 = vlaneseq
        %v489 = vshrl.u32 %v488, 7
        %491 = vset.pattern.permute.xlu0 %v489
        %492 = vperm.xlu0 %491, %v487
        %v493 = vpop.permute.xlu0 %492
        %v494 = vlaneseq
        %v495 = vshrl.u32 %v494, 7
        %v496 = vadd.s32 %v495, 8
        %497 = vset.pattern.permute.xlu0 %v496
        %498 = vperm.xlu0 %497, %v487
        %v499 = vpop.permute.xlu0 %498
        %v500 = vperm.slane %v161, 2
        %v501 = vlaneseq
        %v502 = vshrl.u32 %v501, 7
        %504 = vset.pattern.permute.xlu0 %v502
        %505 = vperm.xlu0 %504, %v500
        %v506 = vpop.permute.xlu0 %505
        %v507 = vlaneseq
        %v508 = vshrl.u32 %v507, 7
        %v509 = vadd.s32 %v508, 8
        %510 = vset.pattern.permute.xlu0 %v509
        %511 = vperm.xlu0 %510, %v500
        %v512 = vpop.permute.xlu0 %511
        %v513 = vperm.slane %v161, 3
        %v514 = vlaneseq
        %v515 = vshrl.u32 %v514, 7
        %517 = vset.pattern.permute.xlu0 %v515
        %518 = vperm.xlu0 %517, %v513
        %v519 = vpop.permute.xlu0 %518
        %v520 = vlaneseq
        %v521 = vshrl.u32 %v520, 7
        %v522 = vadd.s32 %v521, 8
        %523 = vset.pattern.permute.xlu0 %v522
        %524 = vperm.xlu0 %523, %v513
        %v525 = vpop.permute.xlu0 %524
        %v526 = vperm.slane %v161, 4
        %v527 = vlaneseq
        %v528 = vshrl.u32 %v527, 7
        %530 = vset.pattern.permute.xlu0 %v528
        %531 = vperm.xlu0 %530, %v526
        %v532 = vpop.permute.xlu0 %531
        %v533 = vlaneseq
        %v534 = vshrl.u32 %v533, 7
        %v535 = vadd.s32 %v534, 8
        %536 = vset.pattern.permute.xlu0 %v535
        %537 = vperm.xlu0 %536, %v526
        %v538 = vpop.permute.xlu0 %537
        %v539 = vperm.slane %v161, 5
        %v540 = vlaneseq
        %v541 = vshrl.u32 %v540, 7
        %543 = vset.pattern.permute.xlu0 %v541
        %544 = vperm.xlu0 %543, %v539
        %v545 = vpop.permute.xlu0 %544
        %v546 = vlaneseq
        %v547 = vshrl.u32 %v546, 7
        %v548 = vadd.s32 %v547, 8
        %549 = vset.pattern.permute.xlu0 %v548
        %550 = vperm.xlu0 %549, %v539
        %v551 = vpop.permute.xlu0 %550
        %v552 = vperm.slane %v161, 6
        %v553 = vlaneseq
        %v554 = vshrl.u32 %v553, 7
        %556 = vset.pattern.permute.xlu0 %v554
        %557 = vperm.xlu0 %556, %v552
        %v558 = vpop.permute.xlu0 %557
        %v559 = vlaneseq
        %v560 = vshrl.u32 %v559, 7
        %v561 = vadd.s32 %v560, 8
        %562 = vset.pattern.permute.xlu0 %v561
        %563 = vperm.xlu0 %562, %v552
        %v564 = vpop.permute.xlu0 %563
        %v565 = vperm.slane %v161, 7
        %v566 = vlaneseq
        %v567 = vshrl.u32 %v566, 7
        %569 = vset.pattern.permute.xlu0 %v567
        %570 = vperm.xlu0 %569, %v565
        %v571 = vpop.permute.xlu0 %570
        %v572 = vlaneseq
        %v573 = vshrl.u32 %v572, 7
        %v574 = vadd.s32 %v573, 8
        %575 = vset.pattern.permute.xlu0 %v574
        %576 = vperm.xlu0 %575, %v565
        %v577 = vpop.permute.xlu0 %576
        %vm578 = vcmask 7168
        %v579 = vsel %vm578, %v168, %v376
        %v580 = vsel %vm578, %v174, %v382
        %v581 = vsel %vm578, %v181, %v389
        %v582 = vsel %vm578, %v187, %v395
        %v583 = vsel %vm578, %v194, %v402
        %v584 = vsel %vm578, %v200, %v408
        %v585 = vsel %vm578, %v207, %v415
        %v586 = vsel %vm578, %v213, %v421
        %v587 = vsel %vm578, %v220, %v428
        %v588 = vsel %vm578, %v226, %v434
        %v589 = vsel %vm578, %v233, %v441
        %v590 = vsel %vm578, %v239, %v447
        %v591 = vsel %vm578, %v246, %v454
        %v592 = vsel %vm578, %v252, %v460
        %v593 = vsel %vm578, %v259, %v467
        %v594 = vsel %vm578, %v265, %v473
        %v595 = vsel %vm578, %v272, %v480
        %v596 = vsel %vm578, %v278, %v486
        %v597 = vsel %vm578, %v285, %v493
        %v598 = vsel %vm578, %v291, %v499
        %v599 = vsel %vm578, %v298, %v506
        %v600 = vsel %vm578, %v304, %v512
        %v601 = vsel %vm578, %v311, %v519
        %v602 = vsel %vm578, %v317, %v525
        %v603 = vsel %vm578, %v324, %v532
        %v604 = vsel %vm578, %v330, %v538
        %v605 = vsel %vm578, %v337, %v545
        %v606 = vsel %vm578, %v343, %v551
        %v607 = vsel %vm578, %v350, %v558
        %v608 = vsel %vm578, %v356, %v564
        %v609 = vsel %vm578, %v363, %v571
        %v610 = vsel %vm578, %v369, %v577
        %s611 = scalar_lea.vmem %s135, 32 [#allocation2]
        %v612 = vld [vmem:[%s611] sm:$0xff]
        %v613 = vld [vmem:[%s611 + $0x8] sm:$0xff]
        %s614 = scalar_lea.vmem %s135, 48 [#allocation2]
        %v615 = vld [vmem:[%s614] sm:$0xff]
        %v616 = vld [vmem:[%s614 + $0x8] sm:$0xff]
        %v617 = vperm.slane %v612, 0
        %v618 = vlaneseq
        %v619 = vshrl.u32 %v618, 7
        %621 = vset.pattern.permute.xlu0 %v619
        %622 = vperm.xlu0 %621, %v617
        %v623 = vpop.permute.xlu0 %622
        %v624 = vlaneseq
        %v625 = vshrl.u32 %v624, 7
        %v626 = vadd.s32 %v625, 8
        %627 = vset.pattern.permute.xlu0 %v626
        %628 = vperm.xlu0 %627, %v617
        %v629 = vpop.permute.xlu0 %628
        %v630 = vperm.slane %v612, 1
        %v631 = vlaneseq
        %v632 = vshrl.u32 %v631, 7
        %634 = vset.pattern.permute.xlu0 %v632
        %635 = vperm.xlu0 %634, %v630
        %v636 = vpop.permute.xlu0 %635
        %v637 = vlaneseq
        %v638 = vshrl.u32 %v637, 7
        %v639 = vadd.s32 %v638, 8
        %640 = vset.pattern.permute.xlu0 %v639
        %641 = vperm.xlu0 %640, %v630
        %v642 = vpop.permute.xlu0 %641
        %v643 = vperm.slane %v612, 2
        %v644 = vlaneseq
        %v645 = vshrl.u32 %v644, 7
        %647 = vset.pattern.permute.xlu0 %v645
        %648 = vperm.xlu0 %647, %v643
        %v649 = vpop.permute.xlu0 %648
        %v650 = vlaneseq
        %v651 = vshrl.u32 %v650, 7
        %v652 = vadd.s32 %v651, 8
        %653 = vset.pattern.permute.xlu0 %v652
        %654 = vperm.xlu0 %653, %v643
        %v655 = vpop.permute.xlu0 %654
        %v656 = vperm.slane %v612, 3
        %v657 = vlaneseq
        %v658 = vshrl.u32 %v657, 7
        %660 = vset.pattern.permute.xlu0 %v658
        %661 = vperm.xlu0 %660, %v656
        %v662 = vpop.permute.xlu0 %661
        %v663 = vlaneseq
        %v664 = vshrl.u32 %v663, 7
        %v665 = vadd.s32 %v664, 8
        %666 = vset.pattern.permute.xlu0 %v665
        %667 = vperm.xlu0 %666, %v656
        %v668 = vpop.permute.xlu0 %667
        %v669 = vperm.slane %v612, 4
        %v670 = vlaneseq
        %v671 = vshrl.u32 %v670, 7
        %673 = vset.pattern.permute.xlu0 %v671
        %674 = vperm.xlu0 %673, %v669
        %v675 = vpop.permute.xlu0 %674
        %v676 = vlaneseq
        %v677 = vshrl.u32 %v676, 7
        %v678 = vadd.s32 %v677, 8
        %679 = vset.pattern.permute.xlu0 %v678
        %680 = vperm.xlu0 %679, %v669
        %v681 = vpop.permute.xlu0 %680
        %v682 = vperm.slane %v612, 5
        %v683 = vlaneseq
        %v684 = vshrl.u32 %v683, 7
        %686 = vset.pattern.permute.xlu0 %v684
        %687 = vperm.xlu0 %686, %v682
        %v688 = vpop.permute.xlu0 %687
        %v689 = vlaneseq
        %v690 = vshrl.u32 %v689, 7
        %v691 = vadd.s32 %v690, 8
        %692 = vset.pattern.permute.xlu0 %v691
        %693 = vperm.xlu0 %692, %v682
        %v694 = vpop.permute.xlu0 %693
        %v695 = vperm.slane %v612, 6
        %v696 = vlaneseq
        %v697 = vshrl.u32 %v696, 7
        %699 = vset.pattern.permute.xlu0 %v697
        %700 = vperm.xlu0 %699, %v695
        %v701 = vpop.permute.xlu0 %700
        %v702 = vlaneseq
        %v703 = vshrl.u32 %v702, 7
        %v704 = vadd.s32 %v703, 8
        %705 = vset.pattern.permute.xlu0 %v704
        %706 = vperm.xlu0 %705, %v695
        %v707 = vpop.permute.xlu0 %706
        %v708 = vperm.slane %v612, 7
        %v709 = vlaneseq
        %v710 = vshrl.u32 %v709, 7
        %712 = vset.pattern.permute.xlu0 %v710
        %713 = vperm.xlu0 %712, %v708
        %v714 = vpop.permute.xlu0 %713
        %v715 = vlaneseq
        %v716 = vshrl.u32 %v715, 7
        %v717 = vadd.s32 %v716, 8
        %718 = vset.pattern.permute.xlu0 %v717
        %719 = vperm.xlu0 %718, %v708
        %v720 = vpop.permute.xlu0 %719
        %v721 = vperm.slane %v613, 0
        %v722 = vlaneseq
        %v723 = vshrl.u32 %v722, 7
        %725 = vset.pattern.permute.xlu0 %v723
        %726 = vperm.xlu0 %725, %v721
        %v727 = vpop.permute.xlu0 %726
        %v728 = vlaneseq
        %v729 = vshrl.u32 %v728, 7
        %v730 = vadd.s32 %v729, 8
        %731 = vset.pattern.permute.xlu0 %v730
        %732 = vperm.xlu0 %731, %v721
        %v733 = vpop.permute.xlu0 %732
        %v734 = vperm.slane %v613, 1
        %v735 = vlaneseq
        %v736 = vshrl.u32 %v735, 7
        %738 = vset.pattern.permute.xlu0 %v736
        %739 = vperm.xlu0 %738, %v734
        %v740 = vpop.permute.xlu0 %739
        %v741 = vlaneseq
        %v742 = vshrl.u32 %v741, 7
        %v743 = vadd.s32 %v742, 8
        %744 = vset.pattern.permute.xlu0 %v743
        %745 = vperm.xlu0 %744, %v734
        %v746 = vpop.permute.xlu0 %745
        %v747 = vperm.slane %v613, 2
        %v748 = vlaneseq
        %v749 = vshrl.u32 %v748, 7
        %751 = vset.pattern.permute.xlu0 %v749
        %752 = vperm.xlu0 %751, %v747
        %v753 = vpop.permute.xlu0 %752
        %v754 = vlaneseq
        %v755 = vshrl.u32 %v754, 7
        %v756 = vadd.s32 %v755, 8
        %757 = vset.pattern.permute.xlu0 %v756
        %758 = vperm.xlu0 %757, %v747
        %v759 = vpop.permute.xlu0 %758
        %v760 = vperm.slane %v613, 3
        %v761 = vlaneseq
        %v762 = vshrl.u32 %v761, 7
        %764 = vset.pattern.permute.xlu0 %v762
        %765 = vperm.xlu0 %764, %v760
        %v766 = vpop.permute.xlu0 %765
        %v767 = vlaneseq
        %v768 = vshrl.u32 %v767, 7
        %v769 = vadd.s32 %v768, 8
        %770 = vset.pattern.permute.xlu0 %v769
        %771 = vperm.xlu0 %770, %v760
        %v772 = vpop.permute.xlu0 %771
        %v773 = vperm.slane %v613, 4
        %v774 = vlaneseq
        %v775 = vshrl.u32 %v774, 7
        %777 = vset.pattern.permute.xlu0 %v775
        %778 = vperm.xlu0 %777, %v773
        %v779 = vpop.permute.xlu0 %778
        %v780 = vlaneseq
        %v781 = vshrl.u32 %v780, 7
        %v782 = vadd.s32 %v781, 8
        %783 = vset.pattern.permute.xlu0 %v782
        %784 = vperm.xlu0 %783, %v773
        %v785 = vpop.permute.xlu0 %784
        %v786 = vperm.slane %v613, 5
        %v787 = vlaneseq
        %v788 = vshrl.u32 %v787, 7
        %790 = vset.pattern.permute.xlu0 %v788
        %791 = vperm.xlu0 %790, %v786
        %v792 = vpop.permute.xlu0 %791
        %v793 = vlaneseq
        %v794 = vshrl.u32 %v793, 7
        %v795 = vadd.s32 %v794, 8
        %796 = vset.pattern.permute.xlu0 %v795
        %797 = vperm.xlu0 %796, %v786
        %v798 = vpop.permute.xlu0 %797
        %v799 = vperm.slane %v613, 6
        %v800 = vlaneseq
        %v801 = vshrl.u32 %v800, 7
        %803 = vset.pattern.permute.xlu0 %v801
        %804 = vperm.xlu0 %803, %v799
        %v805 = vpop.permute.xlu0 %804
        %v806 = vlaneseq
        %v807 = vshrl.u32 %v806, 7
        %v808 = vadd.s32 %v807, 8
        %809 = vset.pattern.permute.xlu0 %v808
        %810 = vperm.xlu0 %809, %v799
        %v811 = vpop.permute.xlu0 %810
        %v812 = vperm.slane %v613, 7
        %v813 = vlaneseq
        %v814 = vshrl.u32 %v813, 7
        %816 = vset.pattern.permute.xlu0 %v814
        %817 = vperm.xlu0 %816, %v812
        %v818 = vpop.permute.xlu0 %817
        %v819 = vlaneseq
        %v820 = vshrl.u32 %v819, 7
        %v821 = vadd.s32 %v820, 8
        %822 = vset.pattern.permute.xlu0 %v821
        %823 = vperm.xlu0 %822, %v812
        %v824 = vpop.permute.xlu0 %823
        %v825 = vperm.slane %v615, 0
        %v826 = vlaneseq
        %v827 = vshrl.u32 %v826, 7
        %829 = vset.pattern.permute.xlu0 %v827
        %830 = vperm.xlu0 %829, %v825
        %v831 = vpop.permute.xlu0 %830
        %v832 = vlaneseq
        %v833 = vshrl.u32 %v832, 7
        %v834 = vadd.s32 %v833, 8
        %835 = vset.pattern.permute.xlu0 %v834
        %836 = vperm.xlu0 %835, %v825
        %v837 = vpop.permute.xlu0 %836
        %v838 = vperm.slane %v615, 1
        %v839 = vlaneseq
        %v840 = vshrl.u32 %v839, 7
        %842 = vset.pattern.permute.xlu0 %v840
        %843 = vperm.xlu0 %842, %v838
        %v844 = vpop.permute.xlu0 %843
        %v845 = vlaneseq
        %v846 = vshrl.u32 %v845, 7
        %v847 = vadd.s32 %v846, 8
        %848 = vset.pattern.permute.xlu0 %v847
        %849 = vperm.xlu0 %848, %v838
        %v850 = vpop.permute.xlu0 %849
        %v851 = vperm.slane %v615, 2
        %v852 = vlaneseq
        %v853 = vshrl.u32 %v852, 7
        %855 = vset.pattern.permute.xlu0 %v853
        %856 = vperm.xlu0 %855, %v851
        %v857 = vpop.permute.xlu0 %856
        %v858 = vlaneseq
        %v859 = vshrl.u32 %v858, 7
        %v860 = vadd.s32 %v859, 8
        %861 = vset.pattern.permute.xlu0 %v860
        %862 = vperm.xlu0 %861, %v851
        %v863 = vpop.permute.xlu0 %862
        %v864 = vperm.slane %v615, 3
        %v865 = vlaneseq
        %v866 = vshrl.u32 %v865, 7
        %868 = vset.pattern.permute.xlu0 %v866
        %869 = vperm.xlu0 %868, %v864
        %v870 = vpop.permute.xlu0 %869
        %v871 = vlaneseq
        %v872 = vshrl.u32 %v871, 7
        %v873 = vadd.s32 %v872, 8
        %874 = vset.pattern.permute.xlu0 %v873
        %875 = vperm.xlu0 %874, %v864
        %v876 = vpop.permute.xlu0 %875
        %v877 = vperm.slane %v615, 4
        %v878 = vlaneseq
        %v879 = vshrl.u32 %v878, 7
        %881 = vset.pattern.permute.xlu0 %v879
        %882 = vperm.xlu0 %881, %v877
        %v883 = vpop.permute.xlu0 %882
        %v884 = vlaneseq
        %v885 = vshrl.u32 %v884, 7
        %v886 = vadd.s32 %v885, 8
        %887 = vset.pattern.permute.xlu0 %v886
        %888 = vperm.xlu0 %887, %v877
        %v889 = vpop.permute.xlu0 %888
        %v890 = vperm.slane %v615, 5
        %v891 = vlaneseq
        %v892 = vshrl.u32 %v891, 7
        %894 = vset.pattern.permute.xlu0 %v892
        %895 = vperm.xlu0 %894, %v890
        %v896 = vpop.permute.xlu0 %895
        %v897 = vlaneseq
        %v898 = vshrl.u32 %v897, 7
        %v899 = vadd.s32 %v898, 8
        %900 = vset.pattern.permute.xlu0 %v899
        %901 = vperm.xlu0 %900, %v890
        %v902 = vpop.permute.xlu0 %901
        %v903 = vperm.slane %v615, 6
        %v904 = vlaneseq
        %v905 = vshrl.u32 %v904, 7
        %907 = vset.pattern.permute.xlu0 %v905
        %908 = vperm.xlu0 %907, %v903
        %v909 = vpop.permute.xlu0 %908
        %v910 = vlaneseq
        %v911 = vshrl.u32 %v910, 7
        %v912 = vadd.s32 %v911, 8
        %913 = vset.pattern.permute.xlu0 %v912
        %914 = vperm.xlu0 %913, %v903
        %v915 = vpop.permute.xlu0 %914
        %v916 = vperm.slane %v615, 7
        %v917 = vlaneseq
        %v918 = vshrl.u32 %v917, 7
        %920 = vset.pattern.permute.xlu0 %v918
        %921 = vperm.xlu0 %920, %v916
        %v922 = vpop.permute.xlu0 %921
        %v923 = vlaneseq
        %v924 = vshrl.u32 %v923, 7
        %v925 = vadd.s32 %v924, 8
        %926 = vset.pattern.permute.xlu0 %v925
        %927 = vperm.xlu0 %926, %v916
        %v928 = vpop.permute.xlu0 %927
        %v929 = vperm.slane %v616, 0
        %v930 = vlaneseq
        %v931 = vshrl.u32 %v930, 7
        %933 = vset.pattern.permute.xlu0 %v931
        %934 = vperm.xlu0 %933, %v929
        %v935 = vpop.permute.xlu0 %934
        %v936 = vlaneseq
        %v937 = vshrl.u32 %v936, 7
        %v938 = vadd.s32 %v937, 8
        %939 = vset.pattern.permute.xlu0 %v938
        %940 = vperm.xlu0 %939, %v929
        %v941 = vpop.permute.xlu0 %940
        %v942 = vperm.slane %v616, 1
        %v943 = vlaneseq
        %v944 = vshrl.u32 %v943, 7
        %946 = vset.pattern.permute.xlu0 %v944
        %947 = vperm.xlu0 %946, %v942
        %v948 = vpop.permute.xlu0 %947
        %v949 = vlaneseq
        %v950 = vshrl.u32 %v949, 7
        %v951 = vadd.s32 %v950, 8
        %952 = vset.pattern.permute.xlu0 %v951
        %953 = vperm.xlu0 %952, %v942
        %v954 = vpop.permute.xlu0 %953
        %v955 = vperm.slane %v616, 2
        %v956 = vlaneseq
        %v957 = vshrl.u32 %v956, 7
        %959 = vset.pattern.permute.xlu0 %v957
        %960 = vperm.xlu0 %959, %v955
        %v961 = vpop.permute.xlu0 %960
        %v962 = vlaneseq
        %v963 = vshrl.u32 %v962, 7
        %v964 = vadd.s32 %v963, 8
        %965 = vset.pattern.permute.xlu0 %v964
        %966 = vperm.xlu0 %965, %v955
        %v967 = vpop.permute.xlu0 %966
        %v968 = vperm.slane %v616, 3
        %v969 = vlaneseq
        %v970 = vshrl.u32 %v969, 7
        %972 = vset.pattern.permute.xlu0 %v970
        %973 = vperm.xlu0 %972, %v968
        %v974 = vpop.permute.xlu0 %973
        %v975 = vlaneseq
        %v976 = vshrl.u32 %v975, 7
        %v977 = vadd.s32 %v976, 8
        %978 = vset.pattern.permute.xlu0 %v977
        %979 = vperm.xlu0 %978, %v968
        %v980 = vpop.permute.xlu0 %979
        %v981 = vperm.slane %v616, 4
        %v982 = vlaneseq
        %v983 = vshrl.u32 %v982, 7
        %985 = vset.pattern.permute.xlu0 %v983
        %986 = vperm.xlu0 %985, %v981
        %v987 = vpop.permute.xlu0 %986
        %v988 = vlaneseq
        %v989 = vshrl.u32 %v988, 7
        %v990 = vadd.s32 %v989, 8
        %991 = vset.pattern.permute.xlu0 %v990
        %992 = vperm.xlu0 %991, %v981
        %v993 = vpop.permute.xlu0 %992
        %v994 = vperm.slane %v616, 5
        %v995 = vlaneseq
        %v996 = vshrl.u32 %v995, 7
        %998 = vset.pattern.permute.xlu0 %v996
        %999 = vperm.xlu0 %998, %v994
        %v1000 = vpop.permute.xlu0 %999
        %v1001 = vlaneseq
        %v1002 = vshrl.u32 %v1001, 7
        %v1003 = vadd.s32 %v1002, 8
        %1004 = vset.pattern.permute.xlu0 %v1003
        %1005 = vperm.xlu0 %1004, %v994
        %v1006 = vpop.permute.xlu0 %1005
        %v1007 = vperm.slane %v616, 6
        %v1008 = vlaneseq
        %v1009 = vshrl.u32 %v1008, 7
        %1011 = vset.pattern.permute.xlu0 %v1009
        %1012 = vperm.xlu0 %1011, %v1007
        %v1013 = vpop.permute.xlu0 %1012
        %v1014 = vlaneseq
        %v1015 = vshrl.u32 %v1014, 7
        %v1016 = vadd.s32 %v1015, 8
        %1017 = vset.pattern.permute.xlu0 %v1016
        %1018 = vperm.xlu0 %1017, %v1007
        %v1019 = vpop.permute.xlu0 %1018
        %v1020 = vperm.slane %v616, 7
        %v1021 = vlaneseq
        %v1022 = vshrl.u32 %v1021, 7
        %1024 = vset.pattern.permute.xlu0 %v1022
        %1025 = vperm.xlu0 %1024, %v1020
        %v1026 = vpop.permute.xlu0 %1025
        %v1027 = vlaneseq
        %v1028 = vshrl.u32 %v1027, 7
        %v1029 = vadd.s32 %v1028, 8
        %1030 = vset.pattern.permute.xlu0 %v1029
        %1031 = vperm.xlu0 %1030, %v1020
        %v1032 = vpop.permute.xlu0 %1031
        %v1033 = vsel %vm578, %v623, %v831
        %v1034 = vsel %vm578, %v629, %v837
        %v1035 = vsel %vm578, %v636, %v844
        %v1036 = vsel %vm578, %v642, %v850
        %v1037 = vsel %vm578, %v649, %v857
        %v1038 = vsel %vm578, %v655, %v863
        %v1039 = vsel %vm578, %v662, %v870
        %v1040 = vsel %vm578, %v668, %v876
        %v1041 = vsel %vm578, %v675, %v883
        %v1042 = vsel %vm578, %v681, %v889
        %v1043 = vsel %vm578, %v688, %v896
        %v1044 = vsel %vm578, %v694, %v902
        %v1045 = vsel %vm578, %v701, %v909
        %v1046 = vsel %vm578, %v707, %v915
        %v1047 = vsel %vm578, %v714, %v922
        %v1048 = vsel %vm578, %v720, %v928
        %v1049 = vsel %vm578, %v727, %v935
        %v1050 = vsel %vm578, %v733, %v941
        %v1051 = vsel %vm578, %v740, %v948
        %v1052 = vsel %vm578, %v746, %v954
        %v1053 = vsel %vm578, %v753, %v961
        %v1054 = vsel %vm578, %v759, %v967
        %v1055 = vsel %vm578, %v766, %v974
        %v1056 = vsel %vm578, %v772, %v980
        %v1057 = vsel %vm578, %v779, %v987
        %v1058 = vsel %vm578, %v785, %v993
        %v1059 = vsel %vm578, %v792, %v1000
        %v1060 = vsel %vm578, %v798, %v1006
        %v1061 = vsel %vm578, %v805, %v1013
        %v1062 = vsel %vm578, %v811, %v1019
        %v1063 = vsel %vm578, %v818, %v1026
        %v1064 = vsel %vm578, %v824, %v1032
        %v1065 = vrot.slane %v579, 4
        %vm1066 = vcmask 1047556
        %v1067 = vsel %vm1066, 0.0, %v1065
        %v1069 = vunpack.c.l.s4 1983009808
        %v1070 = vunpack.c.0.s8 %v1069
        %v1071 = vperm.slane %v579, %v1070
        %v1073 = vunpack.c.l.s4 1983009808
        %v1074 = vunpack.c.0.s8 %v1073
        %v1075 = vperm.slane %v1067, %v1074
        %v1076 = vrot.slane %v1071, 4
        %v1077 = vsel %vm1066, 0.0, %v1076
        %v1079 = vunpack.c.l.s4 1934713408
        %v1080 = vunpack.c.0.s8 %v1079
        %v1081 = vperm.slane %v1071, %v1080
        %v1083 = vunpack.c.l.s4 1934713408
        %v1084 = vunpack.c.0.s8 %v1083
        %v1085 = vperm.slane %v1077, %v1084
        %v1086 = vrot.slane %v1075, 4
        %v1087 = vsel %vm1066, 0.0, %v1086
        %v1089 = vunpack.c.l.s4 1934713408
        %v1090 = vunpack.c.0.s8 %v1089
        %v1091 = vperm.slane %v1075, %v1090
        %v1093 = vunpack.c.l.s4 1934713408
        %v1094 = vunpack.c.0.s8 %v1093
        %v1095 = vperm.slane %v1087, %v1094
        %v1096 = vrot.slane %v1081, 4
        %v1097 = vsel %vm1066, 0.0, %v1096
        %v1098 = vrot.slane %v1085, 4
        %v1099 = vsel %vm1066, 0.0, %v1098
        %v1100 = vrot.slane %v1091, 4
        %v1101 = vsel %vm1066, 0.0, %v1100
        %v1102 = vrot.slane %v1095, 4
        %v1103 = vsel %vm1066, 0.0, %v1102
        %v1104 = vrot.slane %v580, 4
        %v1105 = vsel %vm1066, 0.0, %v1104
        %v1107 = vunpack.c.l.s4 1983009808
        %v1108 = vunpack.c.0.s8 %v1107
        %v1109 = vperm.slane %v580, %v1108
        %v1111 = vunpack.c.l.s4 1983009808
        %v1112 = vunpack.c.0.s8 %v1111
        %v1113 = vperm.slane %v1105, %v1112
        %v1114 = vrot.slane %v1109, 4
        %v1115 = vsel %vm1066, 0.0, %v1114
        %v1117 = vunpack.c.l.s4 1934713408
        %v1118 = vunpack.c.0.s8 %v1117
        %v1119 = vperm.slane %v1109, %v1118
        %v1121 = vunpack.c.l.s4 1934713408
        %v1122 = vunpack.c.0.s8 %v1121
        %v1123 = vperm.slane %v1115, %v1122
        %v1124 = vrot.slane %v1113, 4
        %v1125 = vsel %vm1066, 0.0, %v1124
        %v1127 = vunpack.c.l.s4 1934713408
        %v1128 = vunpack.c.0.s8 %v1127
        %v1129 = vperm.slane %v1113, %v1128
        %v1131 = vunpack.c.l.s4 1934713408
        %v1132 = vunpack.c.0.s8 %v1131
        %v1133 = vperm.slane %v1125, %v1132
        %v1134 = vrot.slane %v1119, 4
        %v1135 = vsel %vm1066, 0.0, %v1134
        %v1136 = vrot.slane %v1123, 4
        %v1137 = vsel %vm1066, 0.0, %v1136
        %v1138 = vrot.slane %v1129, 4
        %v1139 = vsel %vm1066, 0.0, %v1138
        %v1140 = vrot.slane %v1133, 4
        %v1141 = vsel %vm1066, 0.0, %v1140
        %v1142 = vrot.slane %v581, 4
        %v1143 = vsel %vm1066, 0.0, %v1142
        %v1145 = vunpack.c.l.s4 1983009808
        %v1146 = vunpack.c.0.s8 %v1145
        %v1147 = vperm.slane %v581, %v1146
        %v1149 = vunpack.c.l.s4 1983009808
        %v1150 = vunpack.c.0.s8 %v1149
        %v1151 = vperm.slane %v1143, %v1150
        %v1152 = vrot.slane %v1147, 4
        %v1153 = vsel %vm1066, 0.0, %v1152
        %v1155 = vunpack.c.l.s4 1934713408
        %v1156 = vunpack.c.0.s8 %v1155
        %v1157 = vperm.slane %v1147, %v1156
        %v1159 = vunpack.c.l.s4 1934713408
        %v1160 = vunpack.c.0.s8 %v1159
        %v1161 = vperm.slane %v1153, %v1160
        %v1162 = vrot.slane %v1151, 4
        %v1163 = vsel %vm1066, 0.0, %v1162
        %v1165 = vunpack.c.l.s4 1934713408
        %v1166 = vunpack.c.0.s8 %v1165
        %v1167 = vperm.slane %v1151, %v1166
        %v1169 = vunpack.c.l.s4 1934713408
        %v1170 = vunpack.c.0.s8 %v1169
        %v1171 = vperm.slane %v1163, %v1170
        %v1172 = vrot.slane %v1157, 4
        %v1173 = vsel %vm1066, 0.0, %v1172
        %v1174 = vrot.slane %v1161, 4
        %v1175 = vsel %vm1066, 0.0, %v1174
        %v1176 = vrot.slane %v1167, 4
        %v1177 = vsel %vm1066, 0.0, %v1176
        %v1178 = vrot.slane %v1171, 4
        %v1179 = vsel %vm1066, 0.0, %v1178
        %v1180 = vrot.slane %v582, 4
        %v1181 = vsel %vm1066, 0.0, %v1180
        %v1183 = vunpack.c.l.s4 1983009808
        %v1184 = vunpack.c.0.s8 %v1183
        %v1185 = vperm.slane %v582, %v1184
        %v1187 = vunpack.c.l.s4 1983009808
        %v1188 = vunpack.c.0.s8 %v1187
        %v1189 = vperm.slane %v1181, %v1188
        %v1190 = vrot.slane %v1185, 4
        %v1191 = vsel %vm1066, 0.0, %v1190
        %v1193 = vunpack.c.l.s4 1934713408
        %v1194 = vunpack.c.0.s8 %v1193
        %v1195 = vperm.slane %v1185, %v1194
        %v1197 = vunpack.c.l.s4 1934713408
        %v1198 = vunpack.c.0.s8 %v1197
        %v1199 = vperm.slane %v1191, %v1198
        %v1200 = vrot.slane %v1189, 4
        %v1201 = vsel %vm1066, 0.0, %v1200
        %v1203 = vunpack.c.l.s4 1934713408
        %v1204 = vunpack.c.0.s8 %v1203
        %v1205 = vperm.slane %v1189, %v1204
        %v1207 = vunpack.c.l.s4 1934713408
        %v1208 = vunpack.c.0.s8 %v1207
        %v1209 = vperm.slane %v1201, %v1208
        %v1210 = vrot.slane %v1195, 4
        %v1211 = vsel %vm1066, 0.0, %v1210
        %v1212 = vrot.slane %v1199, 4
        %v1213 = vsel %vm1066, 0.0, %v1212
        %v1214 = vrot.slane %v1205, 4
        %v1215 = vsel %vm1066, 0.0, %v1214
        %v1216 = vrot.slane %v1209, 4
        %v1217 = vsel %vm1066, 0.0, %v1216
        %v1218 = vrot.slane %v583, 4
        %v1219 = vsel %vm1066, 0.0, %v1218
        %v1221 = vunpack.c.l.s4 1983009808
        %v1222 = vunpack.c.0.s8 %v1221
        %v1223 = vperm.slane %v583, %v1222
        %v1225 = vunpack.c.l.s4 1983009808
        %v1226 = vunpack.c.0.s8 %v1225
        %v1227 = vperm.slane %v1219, %v1226
        %v1228 = vrot.slane %v1223, 4
        %v1229 = vsel %vm1066, 0.0, %v1228
        %v1231 = vunpack.c.l.s4 1934713408
        %v1232 = vunpack.c.0.s8 %v1231
        %v1233 = vperm.slane %v1223, %v1232
        %v1235 = vunpack.c.l.s4 1934713408
        %v1236 = vunpack.c.0.s8 %v1235
        %v1237 = vperm.slane %v1229, %v1236
        %v1238 = vrot.slane %v1227, 4
        %v1239 = vsel %vm1066, 0.0, %v1238
        %v1241 = vunpack.c.l.s4 1934713408
        %v1242 = vunpack.c.0.s8 %v1241
        %v1243 = vperm.slane %v1227, %v1242
        %v1245 = vunpack.c.l.s4 1934713408
        %v1246 = vunpack.c.0.s8 %v1245
        %v1247 = vperm.slane %v1239, %v1246
        %v1248 = vrot.slane %v1233, 4
        %v1249 = vsel %vm1066, 0.0, %v1248
        %v1250 = vrot.slane %v1237, 4
        %v1251 = vsel %vm1066, 0.0, %v1250
        %v1252 = vrot.slane %v1243, 4
        %v1253 = vsel %vm1066, 0.0, %v1252
        %v1254 = vrot.slane %v1247, 4
        %v1255 = vsel %vm1066, 0.0, %v1254
        %v1256 = vrot.slane %v584, 4
        %v1257 = vsel %vm1066, 0.0, %v1256
        %v1259 = vunpack.c.l.s4 1983009808
        %v1260 = vunpack.c.0.s8 %v1259
        %v1261 = vperm.slane %v584, %v1260
        %v1263 = vunpack.c.l.s4 1983009808
        %v1264 = vunpack.c.0.s8 %v1263
        %v1265 = vperm.slane %v1257, %v1264
        %v1266 = vrot.slane %v1261, 4
        %v1267 = vsel %vm1066, 0.0, %v1266
        %v1269 = vunpack.c.l.s4 1934713408
        %v1270 = vunpack.c.0.s8 %v1269
        %v1271 = vperm.slane %v1261, %v1270
        %v1273 = vunpack.c.l.s4 1934713408
        %v1274 = vunpack.c.0.s8 %v1273
        %v1275 = vperm.slane %v1267, %v1274
        %v1276 = vrot.slane %v1265, 4
        %v1277 = vsel %vm1066, 0.0, %v1276
        %v1279 = vunpack.c.l.s4 1934713408
        %v1280 = vunpack.c.0.s8 %v1279
        %v1281 = vperm.slane %v1265, %v1280
        %v1283 = vunpack.c.l.s4 1934713408
        %v1284 = vunpack.c.0.s8 %v1283
        %v1285 = vperm.slane %v1277, %v1284
        %v1286 = vrot.slane %v1271, 4
        %v1287 = vsel %vm1066, 0.0, %v1286
        %v1288 = vrot.slane %v1275, 4
        %v1289 = vsel %vm1066, 0.0, %v1288
        %v1290 = vrot.slane %v1281, 4
        %v1291 = vsel %vm1066, 0.0, %v1290
        %v1292 = vrot.slane %v1285, 4
        %v1293 = vsel %vm1066, 0.0, %v1292
        %v1294 = vrot.slane %v585, 4
        %v1295 = vsel %vm1066, 0.0, %v1294
        %v1297 = vunpack.c.l.s4 1983009808
        %v1298 = vunpack.c.0.s8 %v1297
        %v1299 = vperm.slane %v585, %v1298
        %v1301 = vunpack.c.l.s4 1983009808
        %v1302 = vunpack.c.0.s8 %v1301
        %v1303 = vperm.slane %v1295, %v1302
        %v1304 = vrot.slane %v1299, 4
        %v1305 = vsel %vm1066, 0.0, %v1304
        %v1307 = vunpack.c.l.s4 1934713408
        %v1308 = vunpack.c.0.s8 %v1307
        %v1309 = vperm.slane %v1299, %v1308
        %v1311 = vunpack.c.l.s4 1934713408
        %v1312 = vunpack.c.0.s8 %v1311
        %v1313 = vperm.slane %v1305, %v1312
        %v1314 = vrot.slane %v1303, 4
        %v1315 = vsel %vm1066, 0.0, %v1314
        %v1317 = vunpack.c.l.s4 1934713408
        %v1318 = vunpack.c.0.s8 %v1317
        %v1319 = vperm.slane %v1303, %v1318
        %v1321 = vunpack.c.l.s4 1934713408
        %v1322 = vunpack.c.0.s8 %v1321
        %v1323 = vperm.slane %v1315, %v1322
        %v1324 = vrot.slane %v1309, 4
        %v1325 = vsel %vm1066, 0.0, %v1324
        %v1326 = vrot.slane %v1313, 4
        %v1327 = vsel %vm1066, 0.0, %v1326
        %v1328 = vrot.slane %v1319, 4
        %v1329 = vsel %vm1066, 0.0, %v1328
        %v1330 = vrot.slane %v1323, 4
        %v1331 = vsel %vm1066, 0.0, %v1330
        %v1332 = vrot.slane %v586, 4
        %v1333 = vsel %vm1066, 0.0, %v1332
        %v1335 = vunpack.c.l.s4 1983009808
        %v1336 = vunpack.c.0.s8 %v1335
        %v1337 = vperm.slane %v586, %v1336
        %v1339 = vunpack.c.l.s4 1983009808
        %v1340 = vunpack.c.0.s8 %v1339
        %v1341 = vperm.slane %v1333, %v1340
        %v1342 = vrot.slane %v1337, 4
        %v1343 = vsel %vm1066, 0.0, %v1342
        %v1345 = vunpack.c.l.s4 1934713408
        %v1346 = vunpack.c.0.s8 %v1345
        %v1347 = vperm.slane %v1337, %v1346
        %v1349 = vunpack.c.l.s4 1934713408
        %v1350 = vunpack.c.0.s8 %v1349
        %v1351 = vperm.slane %v1343, %v1350
        %v1352 = vrot.slane %v1341, 4
        %v1353 = vsel %vm1066, 0.0, %v1352
        %v1355 = vunpack.c.l.s4 1934713408
        %v1356 = vunpack.c.0.s8 %v1355
        %v1357 = vperm.slane %v1341, %v1356
        %v1359 = vunpack.c.l.s4 1934713408
        %v1360 = vunpack.c.0.s8 %v1359
        %v1361 = vperm.slane %v1353, %v1360
        %v1362 = vrot.slane %v1347, 4
        %v1363 = vsel %vm1066, 0.0, %v1362
        %v1364 = vrot.slane %v1351, 4
        %v1365 = vsel %vm1066, 0.0, %v1364
        %v1366 = vrot.slane %v1357, 4
        %v1367 = vsel %vm1066, 0.0, %v1366
        %v1368 = vrot.slane %v1361, 4
        %v1369 = vsel %vm1066, 0.0, %v1368
        %v1370 = vrot.slane %v587, 4
        %v1371 = vsel %vm1066, 0.0, %v1370
        %v1373 = vunpack.c.l.s4 1983009808
        %v1374 = vunpack.c.0.s8 %v1373
        %v1375 = vperm.slane %v587, %v1374
        %v1377 = vunpack.c.l.s4 1983009808
        %v1378 = vunpack.c.0.s8 %v1377
        %v1379 = vperm.slane %v1371, %v1378
        %v1380 = vrot.slane %v1375, 4
        %v1381 = vsel %vm1066, 0.0, %v1380
        %v1383 = vunpack.c.l.s4 1934713408
        %v1384 = vunpack.c.0.s8 %v1383
        %v1385 = vperm.slane %v1375, %v1384
        %v1387 = vunpack.c.l.s4 1934713408
        %v1388 = vunpack.c.0.s8 %v1387
        %v1389 = vperm.slane %v1381, %v1388
        %v1390 = vrot.slane %v1379, 4
        %v1391 = vsel %vm1066, 0.0, %v1390
        %v1393 = vunpack.c.l.s4 1934713408
        %v1394 = vunpack.c.0.s8 %v1393
        %v1395 = vperm.slane %v1379, %v1394
        %v1397 = vunpack.c.l.s4 1934713408
        %v1398 = vunpack.c.0.s8 %v1397
        %v1399 = vperm.slane %v1391, %v1398
        %v1400 = vrot.slane %v1385, 4
        %v1401 = vsel %vm1066, 0.0, %v1400
        %v1402 = vrot.slane %v1389, 4
        %v1403 = vsel %vm1066, 0.0, %v1402
        %v1404 = vrot.slane %v1395, 4
        %v1405 = vsel %vm1066, 0.0, %v1404
        %v1406 = vrot.slane %v1399, 4
        %v1407 = vsel %vm1066, 0.0, %v1406
        %v1408 = vrot.slane %v588, 4
        %v1409 = vsel %vm1066, 0.0, %v1408
        %v1411 = vunpack.c.l.s4 1983009808
        %v1412 = vunpack.c.0.s8 %v1411
        %v1413 = vperm.slane %v588, %v1412
        %v1415 = vunpack.c.l.s4 1983009808
        %v1416 = vunpack.c.0.s8 %v1415
        %v1417 = vperm.slane %v1409, %v1416
        %v1418 = vrot.slane %v1413, 4
        %v1419 = vsel %vm1066, 0.0, %v1418
        %v1421 = vunpack.c.l.s4 1934713408
        %v1422 = vunpack.c.0.s8 %v1421
        %v1423 = vperm.slane %v1413, %v1422
        %v1425 = vunpack.c.l.s4 1934713408
        %v1426 = vunpack.c.0.s8 %v1425
        %v1427 = vperm.slane %v1419, %v1426
        %v1428 = vrot.slane %v1417, 4
        %v1429 = vsel %vm1066, 0.0, %v1428
        %v1431 = vunpack.c.l.s4 1934713408
        %v1432 = vunpack.c.0.s8 %v1431
        %v1433 = vperm.slane %v1417, %v1432
        %v1435 = vunpack.c.l.s4 1934713408
        %v1436 = vunpack.c.0.s8 %v1435
        %v1437 = vperm.slane %v1429, %v1436
        %v1438 = vrot.slane %v1423, 4
        %v1439 = vsel %vm1066, 0.0, %v1438
        %v1440 = vrot.slane %v1427, 4
        %v1441 = vsel %vm1066, 0.0, %v1440
        %v1442 = vrot.slane %v1433, 4
        %v1443 = vsel %vm1066, 0.0, %v1442
        %v1444 = vrot.slane %v1437, 4
        %v1445 = vsel %vm1066, 0.0, %v1444
        %v1446 = vrot.slane %v589, 4
        %v1447 = vsel %vm1066, 0.0, %v1446
        %v1449 = vunpack.c.l.s4 1983009808
        %v1450 = vunpack.c.0.s8 %v1449
        %v1451 = vperm.slane %v589, %v1450
        %v1453 = vunpack.c.l.s4 1983009808
        %v1454 = vunpack.c.0.s8 %v1453
        %v1455 = vperm.slane %v1447, %v1454
        %v1456 = vrot.slane %v1451, 4
        %v1457 = vsel %vm1066, 0.0, %v1456
        %v1459 = vunpack.c.l.s4 1934713408
        %v1460 = vunpack.c.0.s8 %v1459
        %v1461 = vperm.slane %v1451, %v1460
        %v1463 = vunpack.c.l.s4 1934713408
        %v1464 = vunpack.c.0.s8 %v1463
        %v1465 = vperm.slane %v1457, %v1464
        %v1466 = vrot.slane %v1455, 4
        %v1467 = vsel %vm1066, 0.0, %v1466
        %v1469 = vunpack.c.l.s4 1934713408
        %v1470 = vunpack.c.0.s8 %v1469
        %v1471 = vperm.slane %v1455, %v1470
        %v1473 = vunpack.c.l.s4 1934713408
        %v1474 = vunpack.c.0.s8 %v1473
        %v1475 = vperm.slane %v1467, %v1474
        %v1476 = vrot.slane %v1461, 4
        %v1477 = vsel %vm1066, 0.0, %v1476
        %v1478 = vrot.slane %v1465, 4
        %v1479 = vsel %vm1066, 0.0, %v1478
        %v1480 = vrot.slane %v1471, 4
        %v1481 = vsel %vm1066, 0.0, %v1480
        %v1482 = vrot.slane %v1475, 4
        %v1483 = vsel %vm1066, 0.0, %v1482
        %v1484 = vrot.slane %v590, 4
        %v1485 = vsel %vm1066, 0.0, %v1484
        %v1487 = vunpack.c.l.s4 1983009808
        %v1488 = vunpack.c.0.s8 %v1487
        %v1489 = vperm.slane %v590, %v1488
        %v1491 = vunpack.c.l.s4 1983009808
        %v1492 = vunpack.c.0.s8 %v1491
        %v1493 = vperm.slane %v1485, %v1492
        %v1494 = vrot.slane %v1489, 4
        %v1495 = vsel %vm1066, 0.0, %v1494
        %v1497 = vunpack.c.l.s4 1934713408
        %v1498 = vunpack.c.0.s8 %v1497
        %v1499 = vperm.slane %v1489, %v1498
        %v1501 = vunpack.c.l.s4 1934713408
        %v1502 = vunpack.c.0.s8 %v1501
        %v1503 = vperm.slane %v1495, %v1502
        %v1504 = vrot.slane %v1493, 4
        %v1505 = vsel %vm1066, 0.0, %v1504
        %v1507 = vunpack.c.l.s4 1934713408
        %v1508 = vunpack.c.0.s8 %v1507
        %v1509 = vperm.slane %v1493, %v1508
        %v1511 = vunpack.c.l.s4 1934713408
        %v1512 = vunpack.c.0.s8 %v1511
        %v1513 = vperm.slane %v1505, %v1512
        %v1514 = vrot.slane %v1499, 4
        %v1515 = vsel %vm1066, 0.0, %v1514
        %v1516 = vrot.slane %v1503, 4
        %v1517 = vsel %vm1066, 0.0, %v1516
        %v1518 = vrot.slane %v1509, 4
        %v1519 = vsel %vm1066, 0.0, %v1518
        %v1520 = vrot.slane %v1513, 4
        %v1521 = vsel %vm1066, 0.0, %v1520
        %v1522 = vrot.slane %v591, 4
        %v1523 = vsel %vm1066, 0.0, %v1522
        %v1525 = vunpack.c.l.s4 1983009808
        %v1526 = vunpack.c.0.s8 %v1525
        %v1527 = vperm.slane %v591, %v1526
        %v1529 = vunpack.c.l.s4 1983009808
        %v1530 = vunpack.c.0.s8 %v1529
        %v1531 = vperm.slane %v1523, %v1530
        %v1532 = vrot.slane %v1527, 4
        %v1533 = vsel %vm1066, 0.0, %v1532
        %v1535 = vunpack.c.l.s4 1934713408
        %v1536 = vunpack.c.0.s8 %v1535
        %v1537 = vperm.slane %v1527, %v1536
        %v1539 = vunpack.c.l.s4 1934713408
        %v1540 = vunpack.c.0.s8 %v1539
        %v1541 = vperm.slane %v1533, %v1540
        %v1542 = vrot.slane %v1531, 4
        %v1543 = vsel %vm1066, 0.0, %v1542
        %v1545 = vunpack.c.l.s4 1934713408
        %v1546 = vunpack.c.0.s8 %v1545
        %v1547 = vperm.slane %v1531, %v1546
        %v1549 = vunpack.c.l.s4 1934713408
        %v1550 = vunpack.c.0.s8 %v1549
        %v1551 = vperm.slane %v1543, %v1550
        %v1552 = vrot.slane %v1537, 4
        %v1553 = vsel %vm1066, 0.0, %v1552
        %v1554 = vrot.slane %v1541, 4
        %v1555 = vsel %vm1066, 0.0, %v1554
        %v1556 = vrot.slane %v1547, 4
        %v1557 = vsel %vm1066, 0.0, %v1556
        %v1558 = vrot.slane %v1551, 4
        %v1559 = vsel %vm1066, 0.0, %v1558
        %v1560 = vrot.slane %v592, 4
        %v1561 = vsel %vm1066, 0.0, %v1560
        %v1563 = vunpack.c.l.s4 1983009808
        %v1564 = vunpack.c.0.s8 %v1563
        %v1565 = vperm.slane %v592, %v1564
        %v1567 = vunpack.c.l.s4 1983009808
        %v1568 = vunpack.c.0.s8 %v1567
        %v1569 = vperm.slane %v1561, %v1568
        %v1570 = vrot.slane %v1565, 4
        %v1571 = vsel %vm1066, 0.0, %v1570
        %v1573 = vunpack.c.l.s4 1934713408
        %v1574 = vunpack.c.0.s8 %v1573
        %v1575 = vperm.slane %v1565, %v1574
        %v1577 = vunpack.c.l.s4 1934713408
        %v1578 = vunpack.c.0.s8 %v1577
        %v1579 = vperm.slane %v1571, %v1578
        %v1580 = vrot.slane %v1569, 4
        %v1581 = vsel %vm1066, 0.0, %v1580
        %v1583 = vunpack.c.l.s4 1934713408
        %v1584 = vunpack.c.0.s8 %v1583
        %v1585 = vperm.slane %v1569, %v1584
        %v1587 = vunpack.c.l.s4 1934713408
        %v1588 = vunpack.c.0.s8 %v1587
        %v1589 = vperm.slane %v1581, %v1588
        %v1590 = vrot.slane %v1575, 4
        %v1591 = vsel %vm1066, 0.0, %v1590
        %v1592 = vrot.slane %v1579, 4
        %v1593 = vsel %vm1066, 0.0, %v1592
        %v1594 = vrot.slane %v1585, 4
        %v1595 = vsel %vm1066, 0.0, %v1594
        %v1596 = vrot.slane %v1589, 4
        %v1597 = vsel %vm1066, 0.0, %v1596
        %v1598 = vrot.slane %v593, 4
        %v1599 = vsel %vm1066, 0.0, %v1598
        %v1601 = vunpack.c.l.s4 1983009808
        %v1602 = vunpack.c.0.s8 %v1601
        %v1603 = vperm.slane %v593, %v1602
        %v1605 = vunpack.c.l.s4 1983009808
        %v1606 = vunpack.c.0.s8 %v1605
        %v1607 = vperm.slane %v1599, %v1606
        %v1608 = vrot.slane %v1603, 4
        %v1609 = vsel %vm1066, 0.0, %v1608
        %v1611 = vunpack.c.l.s4 1934713408
        %v1612 = vunpack.c.0.s8 %v1611
        %v1613 = vperm.slane %v1603, %v1612
        %v1615 = vunpack.c.l.s4 1934713408
        %v1616 = vunpack.c.0.s8 %v1615
        %v1617 = vperm.slane %v1609, %v1616
        %v1618 = vrot.slane %v1607, 4
        %v1619 = vsel %vm1066, 0.0, %v1618
        %v1621 = vunpack.c.l.s4 1934713408
        %v1622 = vunpack.c.0.s8 %v1621
        %v1623 = vperm.slane %v1607, %v1622
        %v1625 = vunpack.c.l.s4 1934713408
        %v1626 = vunpack.c.0.s8 %v1625
        %v1627 = vperm.slane %v1619, %v1626
        %v1628 = vrot.slane %v1613, 4
        %v1629 = vsel %vm1066, 0.0, %v1628
        %v1630 = vrot.slane %v1617, 4
        %v1631 = vsel %vm1066, 0.0, %v1630
        %v1632 = vrot.slane %v1623, 4
        %v1633 = vsel %vm1066, 0.0, %v1632
        %v1634 = vrot.slane %v1627, 4
        %v1635 = vsel %vm1066, 0.0, %v1634
        %v1636 = vrot.slane %v594, 4
        %v1637 = vsel %vm1066, 0.0, %v1636
        %v1639 = vunpack.c.l.s4 1983009808
        %v1640 = vunpack.c.0.s8 %v1639
        %v1641 = vperm.slane %v594, %v1640
        %v1643 = vunpack.c.l.s4 1983009808
        %v1644 = vunpack.c.0.s8 %v1643
        %v1645 = vperm.slane %v1637, %v1644
        %v1646 = vrot.slane %v1641, 4
        %v1647 = vsel %vm1066, 0.0, %v1646
        %v1649 = vunpack.c.l.s4 1934713408
        %v1650 = vunpack.c.0.s8 %v1649
        %v1651 = vperm.slane %v1641, %v1650
        %v1653 = vunpack.c.l.s4 1934713408
        %v1654 = vunpack.c.0.s8 %v1653
        %v1655 = vperm.slane %v1647, %v1654
        %v1656 = vrot.slane %v1645, 4
        %v1657 = vsel %vm1066, 0.0, %v1656
        %v1659 = vunpack.c.l.s4 1934713408
        %v1660 = vunpack.c.0.s8 %v1659
        %v1661 = vperm.slane %v1645, %v1660
        %v1663 = vunpack.c.l.s4 1934713408
        %v1664 = vunpack.c.0.s8 %v1663
        %v1665 = vperm.slane %v1657, %v1664
        %v1666 = vrot.slane %v1651, 4
        %v1667 = vsel %vm1066, 0.0, %v1666
        %v1668 = vrot.slane %v1655, 4
        %v1669 = vsel %vm1066, 0.0, %v1668
        %v1670 = vrot.slane %v1661, 4
        %v1671 = vsel %vm1066, 0.0, %v1670
        %v1672 = vrot.slane %v1665, 4
        %v1673 = vsel %vm1066, 0.0, %v1672
        %v1674 = vrot.slane %v595, 4
        %v1675 = vsel %vm1066, 0.0, %v1674
        %v1677 = vunpack.c.l.s4 1983009808
        %v1678 = vunpack.c.0.s8 %v1677
        %v1679 = vperm.slane %v595, %v1678
        %v1681 = vunpack.c.l.s4 1983009808
        %v1682 = vunpack.c.0.s8 %v1681
        %v1683 = vperm.slane %v1675, %v1682
        %v1684 = vrot.slane %v1679, 4
        %v1685 = vsel %vm1066, 0.0, %v1684
        %v1687 = vunpack.c.l.s4 1934713408
        %v1688 = vunpack.c.0.s8 %v1687
        %v1689 = vperm.slane %v1679, %v1688
        %v1691 = vunpack.c.l.s4 1934713408
        %v1692 = vunpack.c.0.s8 %v1691
        %v1693 = vperm.slane %v1685, %v1692
        %v1694 = vrot.slane %v1683, 4
        %v1695 = vsel %vm1066, 0.0, %v1694
        %v1697 = vunpack.c.l.s4 1934713408
        %v1698 = vunpack.c.0.s8 %v1697
        %v1699 = vperm.slane %v1683, %v1698
        %v1701 = vunpack.c.l.s4 1934713408
        %v1702 = vunpack.c.0.s8 %v1701
        %v1703 = vperm.slane %v1695, %v1702
        %v1704 = vrot.slane %v1689, 4
        %v1705 = vsel %vm1066, 0.0, %v1704
        %v1706 = vrot.slane %v1693, 4
        %v1707 = vsel %vm1066, 0.0, %v1706
        %v1708 = vrot.slane %v1699, 4
        %v1709 = vsel %vm1066, 0.0, %v1708
        %v1710 = vrot.slane %v1703, 4
        %v1711 = vsel %vm1066, 0.0, %v1710
        %v1712 = vrot.slane %v596, 4
        %v1713 = vsel %vm1066, 0.0, %v1712
        %v1715 = vunpack.c.l.s4 1983009808
        %v1716 = vunpack.c.0.s8 %v1715
        %v1717 = vperm.slane %v596, %v1716
        %v1719 = vunpack.c.l.s4 1983009808
        %v1720 = vunpack.c.0.s8 %v1719
        %v1721 = vperm.slane %v1713, %v1720
        %v1722 = vrot.slane %v1717, 4
        %v1723 = vsel %vm1066, 0.0, %v1722
        %v1725 = vunpack.c.l.s4 1934713408
        %v1726 = vunpack.c.0.s8 %v1725
        %v1727 = vperm.slane %v1717, %v1726
        %v1729 = vunpack.c.l.s4 1934713408
        %v1730 = vunpack.c.0.s8 %v1729
        %v1731 = vperm.slane %v1723, %v1730
        %v1732 = vrot.slane %v1721, 4
        %v1733 = vsel %vm1066, 0.0, %v1732
        %v1735 = vunpack.c.l.s4 1934713408
        %v1736 = vunpack.c.0.s8 %v1735
        %v1737 = vperm.slane %v1721, %v1736
        %v1739 = vunpack.c.l.s4 1934713408
        %v1740 = vunpack.c.0.s8 %v1739
        %v1741 = vperm.slane %v1733, %v1740
        %v1742 = vrot.slane %v1727, 4
        %v1743 = vsel %vm1066, 0.0, %v1742
        %v1744 = vrot.slane %v1731, 4
        %v1745 = vsel %vm1066, 0.0, %v1744
        %v1746 = vrot.slane %v1737, 4
        %v1747 = vsel %vm1066, 0.0, %v1746
        %v1748 = vrot.slane %v1741, 4
        %v1749 = vsel %vm1066, 0.0, %v1748
        %v1750 = vrot.slane %v597, 4
        %v1751 = vsel %vm1066, 0.0, %v1750
        %v1753 = vunpack.c.l.s4 1983009808
        %v1754 = vunpack.c.0.s8 %v1753
        %v1755 = vperm.slane %v597, %v1754
        %v1757 = vunpack.c.l.s4 1983009808
        %v1758 = vunpack.c.0.s8 %v1757
        %v1759 = vperm.slane %v1751, %v1758
        %v1760 = vrot.slane %v1755, 4
        %v1761 = vsel %vm1066, 0.0, %v1760
        %v1763 = vunpack.c.l.s4 1934713408
        %v1764 = vunpack.c.0.s8 %v1763
        %v1765 = vperm.slane %v1755, %v1764
        %v1767 = vunpack.c.l.s4 1934713408
        %v1768 = vunpack.c.0.s8 %v1767
        %v1769 = vperm.slane %v1761, %v1768
        %v1770 = vrot.slane %v1759, 4
        %v1771 = vsel %vm1066, 0.0, %v1770
        %v1773 = vunpack.c.l.s4 1934713408
        %v1774 = vunpack.c.0.s8 %v1773
        %v1775 = vperm.slane %v1759, %v1774
        %v1777 = vunpack.c.l.s4 1934713408
        %v1778 = vunpack.c.0.s8 %v1777
        %v1779 = vperm.slane %v1771, %v1778
        %v1780 = vrot.slane %v1765, 4
        %v1781 = vsel %vm1066, 0.0, %v1780
        %v1782 = vrot.slane %v1769, 4
        %v1783 = vsel %vm1066, 0.0, %v1782
        %v1784 = vrot.slane %v1775, 4
        %v1785 = vsel %vm1066, 0.0, %v1784
        %v1786 = vrot.slane %v1779, 4
        %v1787 = vsel %vm1066, 0.0, %v1786
        %v1788 = vrot.slane %v598, 4
        %v1789 = vsel %vm1066, 0.0, %v1788
        %v1791 = vunpack.c.l.s4 1983009808
        %v1792 = vunpack.c.0.s8 %v1791
        %v1793 = vperm.slane %v598, %v1792
        %v1795 = vunpack.c.l.s4 1983009808
        %v1796 = vunpack.c.0.s8 %v1795
        %v1797 = vperm.slane %v1789, %v1796
        %v1798 = vrot.slane %v1793, 4
        %v1799 = vsel %vm1066, 0.0, %v1798
        %v1801 = vunpack.c.l.s4 1934713408
        %v1802 = vunpack.c.0.s8 %v1801
        %v1803 = vperm.slane %v1793, %v1802
        %v1805 = vunpack.c.l.s4 1934713408
        %v1806 = vunpack.c.0.s8 %v1805
        %v1807 = vperm.slane %v1799, %v1806
        %v1808 = vrot.slane %v1797, 4
        %v1809 = vsel %vm1066, 0.0, %v1808
        %v1811 = vunpack.c.l.s4 1934713408
        %v1812 = vunpack.c.0.s8 %v1811
        %v1813 = vperm.slane %v1797, %v1812
        %v1815 = vunpack.c.l.s4 1934713408
        %v1816 = vunpack.c.0.s8 %v1815
        %v1817 = vperm.slane %v1809, %v1816
        %v1818 = vrot.slane %v1803, 4
        %v1819 = vsel %vm1066, 0.0, %v1818
        %v1820 = vrot.slane %v1807, 4
        %v1821 = vsel %vm1066, 0.0, %v1820
        %v1822 = vrot.slane %v1813, 4
        %v1823 = vsel %vm1066, 0.0, %v1822
        %v1824 = vrot.slane %v1817, 4
        %v1825 = vsel %vm1066, 0.0, %v1824
        %v1826 = vrot.slane %v599, 4
        %v1827 = vsel %vm1066, 0.0, %v1826
        %v1829 = vunpack.c.l.s4 1983009808
        %v1830 = vunpack.c.0.s8 %v1829
        %v1831 = vperm.slane %v599, %v1830
        %v1833 = vunpack.c.l.s4 1983009808
        %v1834 = vunpack.c.0.s8 %v1833
        %v1835 = vperm.slane %v1827, %v1834
        %v1836 = vrot.slane %v1831, 4
        %v1837 = vsel %vm1066, 0.0, %v1836
        %v1839 = vunpack.c.l.s4 1934713408
        %v1840 = vunpack.c.0.s8 %v1839
        %v1841 = vperm.slane %v1831, %v1840
        %v1843 = vunpack.c.l.s4 1934713408
        %v1844 = vunpack.c.0.s8 %v1843
        %v1845 = vperm.slane %v1837, %v1844
        %v1846 = vrot.slane %v1835, 4
        %v1847 = vsel %vm1066, 0.0, %v1846
        %v1849 = vunpack.c.l.s4 1934713408
        %v1850 = vunpack.c.0.s8 %v1849
        %v1851 = vperm.slane %v1835, %v1850
        %v1853 = vunpack.c.l.s4 1934713408
        %v1854 = vunpack.c.0.s8 %v1853
        %v1855 = vperm.slane %v1847, %v1854
        %v1856 = vrot.slane %v1841, 4
        %v1857 = vsel %vm1066, 0.0, %v1856
        %v1858 = vrot.slane %v1845, 4
        %v1859 = vsel %vm1066, 0.0, %v1858
        %v1860 = vrot.slane %v1851, 4
        %v1861 = vsel %vm1066, 0.0, %v1860
        %v1862 = vrot.slane %v1855, 4
        %v1863 = vsel %vm1066, 0.0, %v1862
        %v1864 = vrot.slane %v600, 4
        %v1865 = vsel %vm1066, 0.0, %v1864
        %v1867 = vunpack.c.l.s4 1983009808
        %v1868 = vunpack.c.0.s8 %v1867
        %v1869 = vperm.slane %v600, %v1868
        %v1871 = vunpack.c.l.s4 1983009808
        %v1872 = vunpack.c.0.s8 %v1871
        %v1873 = vperm.slane %v1865, %v1872
        %v1874 = vrot.slane %v1869, 4
        %v1875 = vsel %vm1066, 0.0, %v1874
        %v1877 = vunpack.c.l.s4 1934713408
        %v1878 = vunpack.c.0.s8 %v1877
        %v1879 = vperm.slane %v1869, %v1878
        %v1881 = vunpack.c.l.s4 1934713408
        %v1882 = vunpack.c.0.s8 %v1881
        %v1883 = vperm.slane %v1875, %v1882
        %v1884 = vrot.slane %v1873, 4
        %v1885 = vsel %vm1066, 0.0, %v1884
        %v1887 = vunpack.c.l.s4 1934713408
        %v1888 = vunpack.c.0.s8 %v1887
        %v1889 = vperm.slane %v1873, %v1888
        %v1891 = vunpack.c.l.s4 1934713408
        %v1892 = vunpack.c.0.s8 %v1891
        %v1893 = vperm.slane %v1885, %v1892
        %v1894 = vrot.slane %v1879, 4
        %v1895 = vsel %vm1066, 0.0, %v1894
        %v1896 = vrot.slane %v1883, 4
        %v1897 = vsel %vm1066, 0.0, %v1896
        %v1898 = vrot.slane %v1889, 4
        %v1899 = vsel %vm1066, 0.0, %v1898
        %v1900 = vrot.slane %v1893, 4
        %v1901 = vsel %vm1066, 0.0, %v1900
        %v1902 = vrot.slane %v601, 4
        %v1903 = vsel %vm1066, 0.0, %v1902
        %v1905 = vunpack.c.l.s4 1983009808
        %v1906 = vunpack.c.0.s8 %v1905
        %v1907 = vperm.slane %v601, %v1906
        %v1909 = vunpack.c.l.s4 1983009808
        %v1910 = vunpack.c.0.s8 %v1909
        %v1911 = vperm.slane %v1903, %v1910
        %v1912 = vrot.slane %v1907, 4
        %v1913 = vsel %vm1066, 0.0, %v1912
        %v1915 = vunpack.c.l.s4 1934713408
        %v1916 = vunpack.c.0.s8 %v1915
        %v1917 = vperm.slane %v1907, %v1916
        %v1919 = vunpack.c.l.s4 1934713408
        %v1920 = vunpack.c.0.s8 %v1919
        %v1921 = vperm.slane %v1913, %v1920
        %v1922 = vrot.slane %v1911, 4
        %v1923 = vsel %vm1066, 0.0, %v1922
        %v1925 = vunpack.c.l.s4 1934713408
        %v1926 = vunpack.c.0.s8 %v1925
        %v1927 = vperm.slane %v1911, %v1926
        %v1929 = vunpack.c.l.s4 1934713408
        %v1930 = vunpack.c.0.s8 %v1929
        %v1931 = vperm.slane %v1923, %v1930
        %v1932 = vrot.slane %v1917, 4
        %v1933 = vsel %vm1066, 0.0, %v1932
        %v1934 = vrot.slane %v1921, 4
        %v1935 = vsel %vm1066, 0.0, %v1934
        %v1936 = vrot.slane %v1927, 4
        %v1937 = vsel %vm1066, 0.0, %v1936
        %v1938 = vrot.slane %v1931, 4
        %v1939 = vsel %vm1066, 0.0, %v1938
        %v1940 = vrot.slane %v602, 4
        %v1941 = vsel %vm1066, 0.0, %v1940
        %v1943 = vunpack.c.l.s4 1983009808
        %v1944 = vunpack.c.0.s8 %v1943
        %v1945 = vperm.slane %v602, %v1944
        %v1947 = vunpack.c.l.s4 1983009808
        %v1948 = vunpack.c.0.s8 %v1947
        %v1949 = vperm.slane %v1941, %v1948
        %v1950 = vrot.slane %v1945, 4
        %v1951 = vsel %vm1066, 0.0, %v1950
        %v1953 = vunpack.c.l.s4 1934713408
        %v1954 = vunpack.c.0.s8 %v1953
        %v1955 = vperm.slane %v1945, %v1954
        %v1957 = vunpack.c.l.s4 1934713408
        %v1958 = vunpack.c.0.s8 %v1957
        %v1959 = vperm.slane %v1951, %v1958
        %v1960 = vrot.slane %v1949, 4
        %v1961 = vsel %vm1066, 0.0, %v1960
        %v1963 = vunpack.c.l.s4 1934713408
        %v1964 = vunpack.c.0.s8 %v1963
        %v1965 = vperm.slane %v1949, %v1964
        %v1967 = vunpack.c.l.s4 1934713408
        %v1968 = vunpack.c.0.s8 %v1967
        %v1969 = vperm.slane %v1961, %v1968
        %v1970 = vrot.slane %v1955, 4
        %v1971 = vsel %vm1066, 0.0, %v1970
        %v1972 = vrot.slane %v1959, 4
        %v1973 = vsel %vm1066, 0.0, %v1972
        %v1974 = vrot.slane %v1965, 4
        %v1975 = vsel %vm1066, 0.0, %v1974
        %v1976 = vrot.slane %v1969, 4
        %v1977 = vsel %vm1066, 0.0, %v1976
        %v1978 = vrot.slane %v603, 4
        %v1979 = vsel %vm1066, 0.0, %v1978
        %v1981 = vunpack.c.l.s4 1983009808
        %v1982 = vunpack.c.0.s8 %v1981
        %v1983 = vperm.slane %v603, %v1982
        %v1985 = vunpack.c.l.s4 1983009808
        %v1986 = vunpack.c.0.s8 %v1985
        %v1987 = vperm.slane %v1979, %v1986
        %v1988 = vrot.slane %v1983, 4
        %v1989 = vsel %vm1066, 0.0, %v1988
        %v1991 = vunpack.c.l.s4 1934713408
        %v1992 = vunpack.c.0.s8 %v1991
        %v1993 = vperm.slane %v1983, %v1992
        %v1995 = vunpack.c.l.s4 1934713408
        %v1996 = vunpack.c.0.s8 %v1995
        %v1997 = vperm.slane %v1989, %v1996
        %v1998 = vrot.slane %v1987, 4
        %v1999 = vsel %vm1066, 0.0, %v1998
        %v2001 = vunpack.c.l.s4 1934713408
        %v2002 = vunpack.c.0.s8 %v2001
        %v2003 = vperm.slane %v1987, %v2002
        %v2005 = vunpack.c.l.s4 1934713408
        %v2006 = vunpack.c.0.s8 %v2005
        %v2007 = vperm.slane %v1999, %v2006
        %v2008 = vrot.slane %v1993, 4
        %v2009 = vsel %vm1066, 0.0, %v2008
        %v2010 = vrot.slane %v1997, 4
        %v2011 = vsel %vm1066, 0.0, %v2010
        %v2012 = vrot.slane %v2003, 4
        %v2013 = vsel %vm1066, 0.0, %v2012
        %v2014 = vrot.slane %v2007, 4
        %v2015 = vsel %vm1066, 0.0, %v2014
        %v2016 = vrot.slane %v604, 4
        %v2017 = vsel %vm1066, 0.0, %v2016
        %v2019 = vunpack.c.l.s4 1983009808
        %v2020 = vunpack.c.0.s8 %v2019
        %v2021 = vperm.slane %v604, %v2020
        %v2023 = vunpack.c.l.s4 1983009808
        %v2024 = vunpack.c.0.s8 %v2023
        %v2025 = vperm.slane %v2017, %v2024
        %v2026 = vrot.slane %v2021, 4
        %v2027 = vsel %vm1066, 0.0, %v2026
        %v2029 = vunpack.c.l.s4 1934713408
        %v2030 = vunpack.c.0.s8 %v2029
        %v2031 = vperm.slane %v2021, %v2030
        %v2033 = vunpack.c.l.s4 1934713408
        %v2034 = vunpack.c.0.s8 %v2033
        %v2035 = vperm.slane %v2027, %v2034
        %v2036 = vrot.slane %v2025, 4
        %v2037 = vsel %vm1066, 0.0, %v2036
        %v2039 = vunpack.c.l.s4 1934713408
        %v2040 = vunpack.c.0.s8 %v2039
        %v2041 = vperm.slane %v2025, %v2040
        %v2043 = vunpack.c.l.s4 1934713408
        %v2044 = vunpack.c.0.s8 %v2043
        %v2045 = vperm.slane %v2037, %v2044
        %v2046 = vrot.slane %v2031, 4
        %v2047 = vsel %vm1066, 0.0, %v2046
        %v2048 = vrot.slane %v2035, 4
        %v2049 = vsel %vm1066, 0.0, %v2048
        %v2050 = vrot.slane %v2041, 4
        %v2051 = vsel %vm1066, 0.0, %v2050
        %v2052 = vrot.slane %v2045, 4
        %v2053 = vsel %vm1066, 0.0, %v2052
        %v2054 = vrot.slane %v605, 4
        %v2055 = vsel %vm1066, 0.0, %v2054
        %v2057 = vunpack.c.l.s4 1983009808
        %v2058 = vunpack.c.0.s8 %v2057
        %v2059 = vperm.slane %v605, %v2058
        %v2061 = vunpack.c.l.s4 1983009808
        %v2062 = vunpack.c.0.s8 %v2061
        %v2063 = vperm.slane %v2055, %v2062
        %v2064 = vrot.slane %v2059, 4
        %v2065 = vsel %vm1066, 0.0, %v2064
        %v2067 = vunpack.c.l.s4 1934713408
        %v2068 = vunpack.c.0.s8 %v2067
        %v2069 = vperm.slane %v2059, %v2068
        %v2071 = vunpack.c.l.s4 1934713408
        %v2072 = vunpack.c.0.s8 %v2071
        %v2073 = vperm.slane %v2065, %v2072
        %v2074 = vrot.slane %v2063, 4
        %v2075 = vsel %vm1066, 0.0, %v2074
        %v2077 = vunpack.c.l.s4 1934713408
        %v2078 = vunpack.c.0.s8 %v2077
        %v2079 = vperm.slane %v2063, %v2078
        %v2081 = vunpack.c.l.s4 1934713408
        %v2082 = vunpack.c.0.s8 %v2081
        %v2083 = vperm.slane %v2075, %v2082
        %v2084 = vrot.slane %v2069, 4
        %v2085 = vsel %vm1066, 0.0, %v2084
        %v2086 = vrot.slane %v2073, 4
        %v2087 = vsel %vm1066, 0.0, %v2086
        %v2088 = vrot.slane %v2079, 4
        %v2089 = vsel %vm1066, 0.0, %v2088
        %v2090 = vrot.slane %v2083, 4
        %v2091 = vsel %vm1066, 0.0, %v2090
        %v2092 = vrot.slane %v606, 4
        %v2093 = vsel %vm1066, 0.0, %v2092
        %v2095 = vunpack.c.l.s4 1983009808
        %v2096 = vunpack.c.0.s8 %v2095
        %v2097 = vperm.slane %v606, %v2096
        %v2099 = vunpack.c.l.s4 1983009808
        %v2100 = vunpack.c.0.s8 %v2099
        %v2101 = vperm.slane %v2093, %v2100
        %v2102 = vrot.slane %v2097, 4
        %v2103 = vsel %vm1066, 0.0, %v2102
        %v2105 = vunpack.c.l.s4 1934713408
        %v2106 = vunpack.c.0.s8 %v2105
        %v2107 = vperm.slane %v2097, %v2106
        %v2109 = vunpack.c.l.s4 1934713408
        %v2110 = vunpack.c.0.s8 %v2109
        %v2111 = vperm.slane %v2103, %v2110
        %v2112 = vrot.slane %v2101, 4
        %v2113 = vsel %vm1066, 0.0, %v2112
        %v2115 = vunpack.c.l.s4 1934713408
        %v2116 = vunpack.c.0.s8 %v2115
        %v2117 = vperm.slane %v2101, %v2116
        %v2119 = vunpack.c.l.s4 1934713408
        %v2120 = vunpack.c.0.s8 %v2119
        %v2121 = vperm.slane %v2113, %v2120
        %v2122 = vrot.slane %v2107, 4
        %v2123 = vsel %vm1066, 0.0, %v2122
        %v2124 = vrot.slane %v2111, 4
        %v2125 = vsel %vm1066, 0.0, %v2124
        %v2126 = vrot.slane %v2117, 4
        %v2127 = vsel %vm1066, 0.0, %v2126
        %v2128 = vrot.slane %v2121, 4
        %v2129 = vsel %vm1066, 0.0, %v2128
        %v2130 = vrot.slane %v607, 4
        %v2131 = vsel %vm1066, 0.0, %v2130
        %v2133 = vunpack.c.l.s4 1983009808
        %v2134 = vunpack.c.0.s8 %v2133
        %v2135 = vperm.slane %v607, %v2134
        %v2137 = vunpack.c.l.s4 1983009808
        %v2138 = vunpack.c.0.s8 %v2137
        %v2139 = vperm.slane %v2131, %v2138
        %v2140 = vrot.slane %v2135, 4
        %v2141 = vsel %vm1066, 0.0, %v2140
        %v2143 = vunpack.c.l.s4 1934713408
        %v2144 = vunpack.c.0.s8 %v2143
        %v2145 = vperm.slane %v2135, %v2144
        %v2147 = vunpack.c.l.s4 1934713408
        %v2148 = vunpack.c.0.s8 %v2147
        %v2149 = vperm.slane %v2141, %v2148
        %v2150 = vrot.slane %v2139, 4
        %v2151 = vsel %vm1066, 0.0, %v2150
        %v2153 = vunpack.c.l.s4 1934713408
        %v2154 = vunpack.c.0.s8 %v2153
        %v2155 = vperm.slane %v2139, %v2154
        %v2157 = vunpack.c.l.s4 1934713408
        %v2158 = vunpack.c.0.s8 %v2157
        %v2159 = vperm.slane %v2151, %v2158
        %v2160 = vrot.slane %v2145, 4
        %v2161 = vsel %vm1066, 0.0, %v2160
        %v2162 = vrot.slane %v2149, 4
        %v2163 = vsel %vm1066, 0.0, %v2162
        %v2164 = vrot.slane %v2155, 4
        %v2165 = vsel %vm1066, 0.0, %v2164
        %v2166 = vrot.slane %v2159, 4
        %v2167 = vsel %vm1066, 0.0, %v2166
        %v2168 = vrot.slane %v608, 4
        %v2169 = vsel %vm1066, 0.0, %v2168
        %v2171 = vunpack.c.l.s4 1983009808
        %v2172 = vunpack.c.0.s8 %v2171
        %v2173 = vperm.slane %v608, %v2172
        %v2175 = vunpack.c.l.s4 1983009808
        %v2176 = vunpack.c.0.s8 %v2175
        %v2177 = vperm.slane %v2169, %v2176
        %v2178 = vrot.slane %v2173, 4
        %v2179 = vsel %vm1066, 0.0, %v2178
        %v2181 = vunpack.c.l.s4 1934713408
        %v2182 = vunpack.c.0.s8 %v2181
        %v2183 = vperm.slane %v2173, %v2182
        %v2185 = vunpack.c.l.s4 1934713408
        %v2186 = vunpack.c.0.s8 %v2185
        %v2187 = vperm.slane %v2179, %v2186
        %v2188 = vrot.slane %v2177, 4
        %v2189 = vsel %vm1066, 0.0, %v2188
        %v2191 = vunpack.c.l.s4 1934713408
        %v2192 = vunpack.c.0.s8 %v2191
        %v2193 = vperm.slane %v2177, %v2192
        %v2195 = vunpack.c.l.s4 1934713408
        %v2196 = vunpack.c.0.s8 %v2195
        %v2197 = vperm.slane %v2189, %v2196
        %v2198 = vrot.slane %v2183, 4
        %v2199 = vsel %vm1066, 0.0, %v2198
        %v2200 = vrot.slane %v2187, 4
        %v2201 = vsel %vm1066, 0.0, %v2200
        %v2202 = vrot.slane %v2193, 4
        %v2203 = vsel %vm1066, 0.0, %v2202
        %v2204 = vrot.slane %v2197, 4
        %v2205 = vsel %vm1066, 0.0, %v2204
        %v2206 = vrot.slane %v609, 4
        %v2207 = vsel %vm1066, 0.0, %v2206
        %v2209 = vunpack.c.l.s4 1983009808
        %v2210 = vunpack.c.0.s8 %v2209
        %v2211 = vperm.slane %v609, %v2210
        %v2213 = vunpack.c.l.s4 1983009808
        %v2214 = vunpack.c.0.s8 %v2213
        %v2215 = vperm.slane %v2207, %v2214
        %v2216 = vrot.slane %v2211, 4
        %v2217 = vsel %vm1066, 0.0, %v2216
        %v2219 = vunpack.c.l.s4 1934713408
        %v2220 = vunpack.c.0.s8 %v2219
        %v2221 = vperm.slane %v2211, %v2220
        %v2223 = vunpack.c.l.s4 1934713408
        %v2224 = vunpack.c.0.s8 %v2223
        %v2225 = vperm.slane %v2217, %v2224
        %v2226 = vrot.slane %v2215, 4
        %v2227 = vsel %vm1066, 0.0, %v2226
        %v2229 = vunpack.c.l.s4 1934713408
        %v2230 = vunpack.c.0.s8 %v2229
        %v2231 = vperm.slane %v2215, %v2230
        %v2233 = vunpack.c.l.s4 1934713408
        %v2234 = vunpack.c.0.s8 %v2233
        %v2235 = vperm.slane %v2227, %v2234
        %v2236 = vrot.slane %v2221, 4
        %v2237 = vsel %vm1066, 0.0, %v2236
        %v2238 = vrot.slane %v2225, 4
        %v2239 = vsel %vm1066, 0.0, %v2238
        %v2240 = vrot.slane %v2231, 4
        %v2241 = vsel %vm1066, 0.0, %v2240
        %v2242 = vrot.slane %v2235, 4
        %v2243 = vsel %vm1066, 0.0, %v2242
        %v2244 = vrot.slane %v610, 4
        %v2245 = vsel %vm1066, 0.0, %v2244
        %v2247 = vunpack.c.l.s4 1983009808
        %v2248 = vunpack.c.0.s8 %v2247
        %v2249 = vperm.slane %v610, %v2248
        %v2251 = vunpack.c.l.s4 1983009808
        %v2252 = vunpack.c.0.s8 %v2251
        %v2253 = vperm.slane %v2245, %v2252
        %v2254 = vrot.slane %v2249, 4
        %v2255 = vsel %vm1066, 0.0, %v2254
        %v2257 = vunpack.c.l.s4 1934713408
        %v2258 = vunpack.c.0.s8 %v2257
        %v2259 = vperm.slane %v2249, %v2258
        %v2261 = vunpack.c.l.s4 1934713408
        %v2262 = vunpack.c.0.s8 %v2261
        %v2263 = vperm.slane %v2255, %v2262
        %v2264 = vrot.slane %v2253, 4
        %v2265 = vsel %vm1066, 0.0, %v2264
        %v2267 = vunpack.c.l.s4 1934713408
        %v2268 = vunpack.c.0.s8 %v2267
        %v2269 = vperm.slane %v2253, %v2268
        %v2271 = vunpack.c.l.s4 1934713408
        %v2272 = vunpack.c.0.s8 %v2271
        %v2273 = vperm.slane %v2265, %v2272
        %v2274 = vrot.slane %v2259, 4
        %v2275 = vsel %vm1066, 0.0, %v2274
        %v2276 = vrot.slane %v2263, 4
        %v2277 = vsel %vm1066, 0.0, %v2276
        %v2278 = vrot.slane %v2269, 4
        %v2279 = vsel %vm1066, 0.0, %v2278
        %v2280 = vrot.slane %v2273, 4
        %v2281 = vsel %vm1066, 0.0, %v2280
        %2298 = vrot.lane.b32.xlu0 %v1097, 2
        %v2299 = vpop.permute.xlu0 %2298
        %2300 = vrot.lane.b32.xlu0 %v1173, 2
        %v2301 = vpop.permute.xlu0 %2300
        %2302 = vrot.lane.b32.xlu0 %v1249, 2
        %v2303 = vpop.permute.xlu0 %2302
        %2304 = vrot.lane.b32.xlu0 %v1325, 2
        %v2305 = vpop.permute.xlu0 %2304
        %2306 = vrot.lane.b32.xlu0 %v1401, 2
        %v2307 = vpop.permute.xlu0 %2306
        %2308 = vrot.lane.b32.xlu0 %v1477, 2
        %v2309 = vpop.permute.xlu0 %2308
        %2310 = vrot.lane.b32.xlu0 %v1553, 2
        %v2311 = vpop.permute.xlu0 %2310
        %2312 = vrot.lane.b32.xlu0 %v1629, 2
        %v2313 = vpop.permute.xlu0 %2312
        %2314 = vrot.lane.b32.xlu0 %v1705, 2
        %v2315 = vpop.permute.xlu0 %2314
        %2316 = vrot.lane.b32.xlu0 %v1781, 2
        %v2317 = vpop.permute.xlu0 %2316
        %2318 = vrot.lane.b32.xlu0 %v1857, 2
        %v2319 = vpop.permute.xlu0 %2318
        %2320 = vrot.lane.b32.xlu0 %v1933, 2
        %v2321 = vpop.permute.xlu0 %2320
        %2322 = vrot.lane.b32.xlu0 %v2009, 2
        %v2323 = vpop.permute.xlu0 %2322
        %2324 = vrot.lane.b32.xlu0 %v2085, 2
        %v2325 = vpop.permute.xlu0 %2324
        %2326 = vrot.lane.b32.xlu0 %v2161, 2
        %v2327 = vpop.permute.xlu0 %2326
        %2328 = vrot.lane.b32.xlu0 %v2237, 2
        %v2329 = vpop.permute.xlu0 %2328
        %2362 = vrot.lane.b32.xlu0 %v1085, 4
        %v2363 = vpop.permute.xlu0 %2362
        %2364 = vrot.lane.b32.xlu0 %v1161, 4
        %v2365 = vpop.permute.xlu0 %2364
        %2366 = vrot.lane.b32.xlu0 %v1237, 4
        %v2367 = vpop.permute.xlu0 %2366
        %2368 = vrot.lane.b32.xlu0 %v1313, 4
        %v2369 = vpop.permute.xlu0 %2368
        %2370 = vrot.lane.b32.xlu0 %v1389, 4
        %v2371 = vpop.permute.xlu0 %2370
        %2372 = vrot.lane.b32.xlu0 %v1465, 4
        %v2373 = vpop.permute.xlu0 %2372
        %2374 = vrot.lane.b32.xlu0 %v1541, 4
        %v2375 = vpop.permute.xlu0 %2374
        %2376 = vrot.lane.b32.xlu0 %v1617, 4
        %v2377 = vpop.permute.xlu0 %2376
        %2378 = vrot.lane.b32.xlu0 %v1693, 4
        %v2379 = vpop.permute.xlu0 %2378
        %2380 = vrot.lane.b32.xlu0 %v1769, 4
        %v2381 = vpop.permute.xlu0 %2380
        %2382 = vrot.lane.b32.xlu0 %v1845, 4
        %v2383 = vpop.permute.xlu0 %2382
        %2384 = vrot.lane.b32.xlu0 %v1921, 4
        %v2385 = vpop.permute.xlu0 %2384
        %2386 = vrot.lane.b32.xlu0 %v1997, 4
        %v2387 = vpop.permute.xlu0 %2386
        %2388 = vrot.lane.b32.xlu0 %v2073, 4
        %v2389 = vpop.permute.xlu0 %2388
        %2390 = vrot.lane.b32.xlu0 %v2149, 4
        %v2391 = vpop.permute.xlu0 %2390
        %2392 = vrot.lane.b32.xlu0 %v2225, 4
        %v2393 = vpop.permute.xlu0 %2392
        %2426 = vrot.lane.b32.xlu0 %v1099, 6
        %v2427 = vpop.permute.xlu0 %2426
        %2428 = vrot.lane.b32.xlu0 %v1175, 6
        %v2429 = vpop.permute.xlu0 %2428
        %2430 = vrot.lane.b32.xlu0 %v1251, 6
        %v2431 = vpop.permute.xlu0 %2430
        %2432 = vrot.lane.b32.xlu0 %v1327, 6
        %v2433 = vpop.permute.xlu0 %2432
        %2434 = vrot.lane.b32.xlu0 %v1403, 6
        %v2435 = vpop.permute.xlu0 %2434
        %2436 = vrot.lane.b32.xlu0 %v1479, 6
        %v2437 = vpop.permute.xlu0 %2436
        %2438 = vrot.lane.b32.xlu0 %v1555, 6
        %v2439 = vpop.permute.xlu0 %2438
        %2440 = vrot.lane.b32.xlu0 %v1631, 6
        %v2441 = vpop.permute.xlu0 %2440
        %2442 = vrot.lane.b32.xlu0 %v1707, 6
        %v2443 = vpop.permute.xlu0 %2442
        %2444 = vrot.lane.b32.xlu0 %v1783, 6
        %v2445 = vpop.permute.xlu0 %2444
        %2446 = vrot.lane.b32.xlu0 %v1859, 6
        %v2447 = vpop.permute.xlu0 %2446
        %2448 = vrot.lane.b32.xlu0 %v1935, 6
        %v2449 = vpop.permute.xlu0 %2448
        %2450 = vrot.lane.b32.xlu0 %v2011, 6
        %v2451 = vpop.permute.xlu0 %2450
        %2452 = vrot.lane.b32.xlu0 %v2087, 6
        %v2453 = vpop.permute.xlu0 %2452
        %2454 = vrot.lane.b32.xlu0 %v2163, 6
        %v2455 = vpop.permute.xlu0 %2454
        %2456 = vrot.lane.b32.xlu0 %v2239, 6
        %v2457 = vpop.permute.xlu0 %2456
        %2490 = vrot.lane.b32.xlu0 %v1091, 8
        %v2491 = vpop.permute.xlu0 %2490
        %2492 = vrot.lane.b32.xlu0 %v1167, 8
        %v2493 = vpop.permute.xlu0 %2492
        %2494 = vrot.lane.b32.xlu0 %v1243, 8
        %v2495 = vpop.permute.xlu0 %2494
        %2496 = vrot.lane.b32.xlu0 %v1319, 8
        %v2497 = vpop.permute.xlu0 %2496
        %2498 = vrot.lane.b32.xlu0 %v1395, 8
        %v2499 = vpop.permute.xlu0 %2498
        %2500 = vrot.lane.b32.xlu0 %v1471, 8
        %v2501 = vpop.permute.xlu0 %2500
        %2502 = vrot.lane.b32.xlu0 %v1547, 8
        %v2503 = vpop.permute.xlu0 %2502
        %2504 = vrot.lane.b32.xlu0 %v1623, 8
        %v2505 = vpop.permute.xlu0 %2504
        %2506 = vrot.lane.b32.xlu0 %v1699, 8
        %v2507 = vpop.permute.xlu0 %2506
        %2508 = vrot.lane.b32.xlu0 %v1775, 8
        %v2509 = vpop.permute.xlu0 %2508
        %2510 = vrot.lane.b32.xlu0 %v1851, 8
        %v2511 = vpop.permute.xlu0 %2510
        %2512 = vrot.lane.b32.xlu0 %v1927, 8
        %v2513 = vpop.permute.xlu0 %2512
        %2514 = vrot.lane.b32.xlu0 %v2003, 8
        %v2515 = vpop.permute.xlu0 %2514
        %2516 = vrot.lane.b32.xlu0 %v2079, 8
        %v2517 = vpop.permute.xlu0 %2516
        %2518 = vrot.lane.b32.xlu0 %v2155, 8
        %v2519 = vpop.permute.xlu0 %2518
        %2520 = vrot.lane.b32.xlu0 %v2231, 8
        %v2521 = vpop.permute.xlu0 %2520
        %2554 = vrot.lane.b32.xlu0 %v1101, 10
        %v2555 = vpop.permute.xlu0 %2554
        %2556 = vrot.lane.b32.xlu0 %v1177, 10
        %v2557 = vpop.permute.xlu0 %2556
        %2558 = vrot.lane.b32.xlu0 %v1253, 10
        %v2559 = vpop.permute.xlu0 %2558
        %2560 = vrot.lane.b32.xlu0 %v1329, 10
        %v2561 = vpop.permute.xlu0 %2560
        %2562 = vrot.lane.b32.xlu0 %v1405, 10
        %v2563 = vpop.permute.xlu0 %2562
        %2564 = vrot.lane.b32.xlu0 %v1481, 10
        %v2565 = vpop.permute.xlu0 %2564
        %2566 = vrot.lane.b32.xlu0 %v1557, 10
        %v2567 = vpop.permute.xlu0 %2566
        %2568 = vrot.lane.b32.xlu0 %v1633, 10
        %v2569 = vpop.permute.xlu0 %2568
        %2570 = vrot.lane.b32.xlu0 %v1709, 10
        %v2571 = vpop.permute.xlu0 %2570
        %2572 = vrot.lane.b32.xlu0 %v1785, 10
        %v2573 = vpop.permute.xlu0 %2572
        %2574 = vrot.lane.b32.xlu0 %v1861, 10
        %v2575 = vpop.permute.xlu0 %2574
        %2576 = vrot.lane.b32.xlu0 %v1937, 10
        %v2577 = vpop.permute.xlu0 %2576
        %2578 = vrot.lane.b32.xlu0 %v2013, 10
        %v2579 = vpop.permute.xlu0 %2578
        %2580 = vrot.lane.b32.xlu0 %v2089, 10
        %v2581 = vpop.permute.xlu0 %2580
        %2582 = vrot.lane.b32.xlu0 %v2165, 10
        %v2583 = vpop.permute.xlu0 %2582
        %2584 = vrot.lane.b32.xlu0 %v2241, 10
        %v2585 = vpop.permute.xlu0 %2584
        %2618 = vrot.lane.b32.xlu0 %v1095, 12
        %v2619 = vpop.permute.xlu0 %2618
        %2620 = vrot.lane.b32.xlu0 %v1171, 12
        %v2621 = vpop.permute.xlu0 %2620
        %2622 = vrot.lane.b32.xlu0 %v1247, 12
        %v2623 = vpop.permute.xlu0 %2622
        %2624 = vrot.lane.b32.xlu0 %v1323, 12
        %v2625 = vpop.permute.xlu0 %2624
        %2626 = vrot.lane.b32.xlu0 %v1399, 12
        %v2627 = vpop.permute.xlu0 %2626
        %2628 = vrot.lane.b32.xlu0 %v1475, 12
        %v2629 = vpop.permute.xlu0 %2628
        %2630 = vrot.lane.b32.xlu0 %v1551, 12
        %v2631 = vpop.permute.xlu0 %2630
        %2632 = vrot.lane.b32.xlu0 %v1627, 12
        %v2633 = vpop.permute.xlu0 %2632
        %2634 = vrot.lane.b32.xlu0 %v1703, 12
        %v2635 = vpop.permute.xlu0 %2634
        %2636 = vrot.lane.b32.xlu0 %v1779, 12
        %v2637 = vpop.permute.xlu0 %2636
        %2638 = vrot.lane.b32.xlu0 %v1855, 12
        %v2639 = vpop.permute.xlu0 %2638
        %2640 = vrot.lane.b32.xlu0 %v1931, 12
        %v2641 = vpop.permute.xlu0 %2640
        %2642 = vrot.lane.b32.xlu0 %v2007, 12
        %v2643 = vpop.permute.xlu0 %2642
        %2644 = vrot.lane.b32.xlu0 %v2083, 12
        %v2645 = vpop.permute.xlu0 %2644
        %2646 = vrot.lane.b32.xlu0 %v2159, 12
        %v2647 = vpop.permute.xlu0 %2646
        %2648 = vrot.lane.b32.xlu0 %v2235, 12
        %v2649 = vpop.permute.xlu0 %2648
        %2682 = vrot.lane.b32.xlu0 %v1103, 14
        %v2683 = vpop.permute.xlu0 %2682
        %2684 = vrot.lane.b32.xlu0 %v1179, 14
        %v2685 = vpop.permute.xlu0 %2684
        %2686 = vrot.lane.b32.xlu0 %v1255, 14
        %v2687 = vpop.permute.xlu0 %2686
        %2688 = vrot.lane.b32.xlu0 %v1331, 14
        %v2689 = vpop.permute.xlu0 %2688
        %2690 = vrot.lane.b32.xlu0 %v1407, 14
        %v2691 = vpop.permute.xlu0 %2690
        %2692 = vrot.lane.b32.xlu0 %v1483, 14
        %v2693 = vpop.permute.xlu0 %2692
        %2694 = vrot.lane.b32.xlu0 %v1559, 14
        %v2695 = vpop.permute.xlu0 %2694
        %2696 = vrot.lane.b32.xlu0 %v1635, 14
        %v2697 = vpop.permute.xlu0 %2696
        %2698 = vrot.lane.b32.xlu0 %v1711, 14
        %v2699 = vpop.permute.xlu0 %2698
        %2700 = vrot.lane.b32.xlu0 %v1787, 14
        %v2701 = vpop.permute.xlu0 %2700
        %2702 = vrot.lane.b32.xlu0 %v1863, 14
        %v2703 = vpop.permute.xlu0 %2702
        %2704 = vrot.lane.b32.xlu0 %v1939, 14
        %v2705 = vpop.permute.xlu0 %2704
        %2706 = vrot.lane.b32.xlu0 %v2015, 14
        %v2707 = vpop.permute.xlu0 %2706
        %2708 = vrot.lane.b32.xlu0 %v2091, 14
        %v2709 = vpop.permute.xlu0 %2708
        %2710 = vrot.lane.b32.xlu0 %v2167, 14
        %v2711 = vpop.permute.xlu0 %2710
        %2712 = vrot.lane.b32.xlu0 %v2243, 14
        %v2713 = vpop.permute.xlu0 %2712
        %2746 = vrot.lane.b32.xlu0 %v1119, 16
        %v2747 = vpop.permute.xlu0 %2746
        %2748 = vrot.lane.b32.xlu0 %v1195, 16
        %v2749 = vpop.permute.xlu0 %2748
        %2750 = vrot.lane.b32.xlu0 %v1271, 16
        %v2751 = vpop.permute.xlu0 %2750
        %2752 = vrot.lane.b32.xlu0 %v1347, 16
        %v2753 = vpop.permute.xlu0 %2752
        %2754 = vrot.lane.b32.xlu0 %v1423, 16
        %v2755 = vpop.permute.xlu0 %2754
        %2756 = vrot.lane.b32.xlu0 %v1499, 16
        %v2757 = vpop.permute.xlu0 %2756
        %2758 = vrot.lane.b32.xlu0 %v1575, 16
        %v2759 = vpop.permute.xlu0 %2758
        %2760 = vrot.lane.b32.xlu0 %v1651, 16
        %v2761 = vpop.permute.xlu0 %2760
        %2762 = vrot.lane.b32.xlu0 %v1727, 16
        %v2763 = vpop.permute.xlu0 %2762
        %2764 = vrot.lane.b32.xlu0 %v1803, 16
        %v2765 = vpop.permute.xlu0 %2764
        %2766 = vrot.lane.b32.xlu0 %v1879, 16
        %v2767 = vpop.permute.xlu0 %2766
        %2768 = vrot.lane.b32.xlu0 %v1955, 16
        %v2769 = vpop.permute.xlu0 %2768
        %2770 = vrot.lane.b32.xlu0 %v2031, 16
        %v2771 = vpop.permute.xlu0 %2770
        %2772 = vrot.lane.b32.xlu0 %v2107, 16
        %v2773 = vpop.permute.xlu0 %2772
        %2774 = vrot.lane.b32.xlu0 %v2183, 16
        %v2775 = vpop.permute.xlu0 %2774
        %2776 = vrot.lane.b32.xlu0 %v2259, 16
        %v2777 = vpop.permute.xlu0 %2776
        %2810 = vrot.lane.b32.xlu0 %v1135, 18
        %v2811 = vpop.permute.xlu0 %2810
        %2812 = vrot.lane.b32.xlu0 %v1211, 18
        %v2813 = vpop.permute.xlu0 %2812
        %2814 = vrot.lane.b32.xlu0 %v1287, 18
        %v2815 = vpop.permute.xlu0 %2814
        %2816 = vrot.lane.b32.xlu0 %v1363, 18
        %v2817 = vpop.permute.xlu0 %2816
        %2818 = vrot.lane.b32.xlu0 %v1439, 18
        %v2819 = vpop.permute.xlu0 %2818
        %2820 = vrot.lane.b32.xlu0 %v1515, 18
        %v2821 = vpop.permute.xlu0 %2820
        %2822 = vrot.lane.b32.xlu0 %v1591, 18
        %v2823 = vpop.permute.xlu0 %2822
        %2824 = vrot.lane.b32.xlu0 %v1667, 18
        %v2825 = vpop.permute.xlu0 %2824
        %2826 = vrot.lane.b32.xlu0 %v1743, 18
        %v2827 = vpop.permute.xlu0 %2826
        %2828 = vrot.lane.b32.xlu0 %v1819, 18
        %v2829 = vpop.permute.xlu0 %2828
        %2830 = vrot.lane.b32.xlu0 %v1895, 18
        %v2831 = vpop.permute.xlu0 %2830
        %2832 = vrot.lane.b32.xlu0 %v1971, 18
        %v2833 = vpop.permute.xlu0 %2832
        %2834 = vrot.lane.b32.xlu0 %v2047, 18
        %v2835 = vpop.permute.xlu0 %2834
        %2836 = vrot.lane.b32.xlu0 %v2123, 18
        %v2837 = vpop.permute.xlu0 %2836
        %2838 = vrot.lane.b32.xlu0 %v2199, 18
        %v2839 = vpop.permute.xlu0 %2838
        %2840 = vrot.lane.b32.xlu0 %v2275, 18
        %v2841 = vpop.permute.xlu0 %2840
        %2874 = vrot.lane.b32.xlu0 %v1123, 20
        %v2875 = vpop.permute.xlu0 %2874
        %2876 = vrot.lane.b32.xlu0 %v1199, 20
        %v2877 = vpop.permute.xlu0 %2876
        %2878 = vrot.lane.b32.xlu0 %v1275, 20
        %v2879 = vpop.permute.xlu0 %2878
        %2880 = vrot.lane.b32.xlu0 %v1351, 20
        %v2881 = vpop.permute.xlu0 %2880
        %2882 = vrot.lane.b32.xlu0 %v1427, 20
        %v2883 = vpop.permute.xlu0 %2882
        %2884 = vrot.lane.b32.xlu0 %v1503, 20
        %v2885 = vpop.permute.xlu0 %2884
        %2886 = vrot.lane.b32.xlu0 %v1579, 20
        %v2887 = vpop.permute.xlu0 %2886
        %2888 = vrot.lane.b32.xlu0 %v1655, 20
        %v2889 = vpop.permute.xlu0 %2888
        %2890 = vrot.lane.b32.xlu0 %v1731, 20
        %v2891 = vpop.permute.xlu0 %2890
        %2892 = vrot.lane.b32.xlu0 %v1807, 20
        %v2893 = vpop.permute.xlu0 %2892
        %2894 = vrot.lane.b32.xlu0 %v1883, 20
        %v2895 = vpop.permute.xlu0 %2894
        %2896 = vrot.lane.b32.xlu0 %v1959, 20
        %v2897 = vpop.permute.xlu0 %2896
        %2898 = vrot.lane.b32.xlu0 %v2035, 20
        %v2899 = vpop.permute.xlu0 %2898
        %2900 = vrot.lane.b32.xlu0 %v2111, 20
        %v2901 = vpop.permute.xlu0 %2900
        %2902 = vrot.lane.b32.xlu0 %v2187, 20
        %v2903 = vpop.permute.xlu0 %2902
        %2904 = vrot.lane.b32.xlu0 %v2263, 20
        %v2905 = vpop.permute.xlu0 %2904
        %2938 = vrot.lane.b32.xlu0 %v1137, 22
        %v2939 = vpop.permute.xlu0 %2938
        %2940 = vrot.lane.b32.xlu0 %v1213, 22
        %v2941 = vpop.permute.xlu0 %2940
        %2942 = vrot.lane.b32.xlu0 %v1289, 22
        %v2943 = vpop.permute.xlu0 %2942
        %2944 = vrot.lane.b32.xlu0 %v1365, 22
        %v2945 = vpop.permute.xlu0 %2944
        %2946 = vrot.lane.b32.xlu0 %v1441, 22
        %v2947 = vpop.permute.xlu0 %2946
        %2948 = vrot.lane.b32.xlu0 %v1517, 22
        %v2949 = vpop.permute.xlu0 %2948
        %2950 = vrot.lane.b32.xlu0 %v1593, 22
        %v2951 = vpop.permute.xlu0 %2950
        %2952 = vrot.lane.b32.xlu0 %v1669, 22
        %v2953 = vpop.permute.xlu0 %2952
        %2954 = vrot.lane.b32.xlu0 %v1745, 22
        %v2955 = vpop.permute.xlu0 %2954
        %2956 = vrot.lane.b32.xlu0 %v1821, 22
        %v2957 = vpop.permute.xlu0 %2956
        %2958 = vrot.lane.b32.xlu0 %v1897, 22
        %v2959 = vpop.permute.xlu0 %2958
        %2960 = vrot.lane.b32.xlu0 %v1973, 22
        %v2961 = vpop.permute.xlu0 %2960
        %2962 = vrot.lane.b32.xlu0 %v2049, 22
        %v2963 = vpop.permute.xlu0 %2962
        %2964 = vrot.lane.b32.xlu0 %v2125, 22
        %v2965 = vpop.permute.xlu0 %2964
        %2966 = vrot.lane.b32.xlu0 %v2201, 22
        %v2967 = vpop.permute.xlu0 %2966
        %2968 = vrot.lane.b32.xlu0 %v2277, 22
        %v2969 = vpop.permute.xlu0 %2968
        %3002 = vrot.lane.b32.xlu0 %v1129, 24
        %v3003 = vpop.permute.xlu0 %3002
        %3004 = vrot.lane.b32.xlu0 %v1205, 24
        %v3005 = vpop.permute.xlu0 %3004
        %3006 = vrot.lane.b32.xlu0 %v1281, 24
        %v3007 = vpop.permute.xlu0 %3006
        %3008 = vrot.lane.b32.xlu0 %v1357, 24
        %v3009 = vpop.permute.xlu0 %3008
        %3010 = vrot.lane.b32.xlu0 %v1433, 24
        %v3011 = vpop.permute.xlu0 %3010
        %3012 = vrot.lane.b32.xlu0 %v1509, 24
        %v3013 = vpop.permute.xlu0 %3012
        %3014 = vrot.lane.b32.xlu0 %v1585, 24
        %v3015 = vpop.permute.xlu0 %3014
        %3016 = vrot.lane.b32.xlu0 %v1661, 24
        %v3017 = vpop.permute.xlu0 %3016
        %3018 = vrot.lane.b32.xlu0 %v1737, 24
        %v3019 = vpop.permute.xlu0 %3018
        %3020 = vrot.lane.b32.xlu0 %v1813, 24
        %v3021 = vpop.permute.xlu0 %3020
        %3022 = vrot.lane.b32.xlu0 %v1889, 24
        %v3023 = vpop.permute.xlu0 %3022
        %3024 = vrot.lane.b32.xlu0 %v1965, 24
        %v3025 = vpop.permute.xlu0 %3024
        %3026 = vrot.lane.b32.xlu0 %v2041, 24
        %v3027 = vpop.permute.xlu0 %3026
        %3028 = vrot.lane.b32.xlu0 %v2117, 24
        %v3029 = vpop.permute.xlu0 %3028
        %3030 = vrot.lane.b32.xlu0 %v2193, 24
        %v3031 = vpop.permute.xlu0 %3030
        %3032 = vrot.lane.b32.xlu0 %v2269, 24
        %v3033 = vpop.permute.xlu0 %3032
        %3066 = vrot.lane.b32.xlu0 %v1139, 26
        %v3067 = vpop.permute.xlu0 %3066
        %3068 = vrot.lane.b32.xlu0 %v1215, 26
        %v3069 = vpop.permute.xlu0 %3068
        %3070 = vrot.lane.b32.xlu0 %v1291, 26
        %v3071 = vpop.permute.xlu0 %3070
        %3072 = vrot.lane.b32.xlu0 %v1367, 26
        %v3073 = vpop.permute.xlu0 %3072
        %3074 = vrot.lane.b32.xlu0 %v1443, 26
        %v3075 = vpop.permute.xlu0 %3074
        %3076 = vrot.lane.b32.xlu0 %v1519, 26
        %v3077 = vpop.permute.xlu0 %3076
        %3078 = vrot.lane.b32.xlu0 %v1595, 26
        %v3079 = vpop.permute.xlu0 %3078
        %3080 = vrot.lane.b32.xlu0 %v1671, 26
        %v3081 = vpop.permute.xlu0 %3080
        %3082 = vrot.lane.b32.xlu0 %v1747, 26
        %v3083 = vpop.permute.xlu0 %3082
        %3084 = vrot.lane.b32.xlu0 %v1823, 26
        %v3085 = vpop.permute.xlu0 %3084
        %3086 = vrot.lane.b32.xlu0 %v1899, 26
        %v3087 = vpop.permute.xlu0 %3086
        %3088 = vrot.lane.b32.xlu0 %v1975, 26
        %v3089 = vpop.permute.xlu0 %3088
        %3090 = vrot.lane.b32.xlu0 %v2051, 26
        %v3091 = vpop.permute.xlu0 %3090
        %3092 = vrot.lane.b32.xlu0 %v2127, 26
        %v3093 = vpop.permute.xlu0 %3092
        %3094 = vrot.lane.b32.xlu0 %v2203, 26
        %v3095 = vpop.permute.xlu0 %3094
        %3096 = vrot.lane.b32.xlu0 %v2279, 26
        %v3097 = vpop.permute.xlu0 %3096
        %3130 = vrot.lane.b32.xlu0 %v1133, 28
        %v3131 = vpop.permute.xlu0 %3130
        %3132 = vrot.lane.b32.xlu0 %v1209, 28
        %v3133 = vpop.permute.xlu0 %3132
        %3134 = vrot.lane.b32.xlu0 %v1285, 28
        %v3135 = vpop.permute.xlu0 %3134
        %3136 = vrot.lane.b32.xlu0 %v1361, 28
        %v3137 = vpop.permute.xlu0 %3136
        %3138 = vrot.lane.b32.xlu0 %v1437, 28
        %v3139 = vpop.permute.xlu0 %3138
        %3140 = vrot.lane.b32.xlu0 %v1513, 28
        %v3141 = vpop.permute.xlu0 %3140
        %3142 = vrot.lane.b32.xlu0 %v1589, 28
        %v3143 = vpop.permute.xlu0 %3142
        %3144 = vrot.lane.b32.xlu0 %v1665, 28
        %v3145 = vpop.permute.xlu0 %3144
        %3146 = vrot.lane.b32.xlu0 %v1741, 28
        %v3147 = vpop.permute.xlu0 %3146
        %3148 = vrot.lane.b32.xlu0 %v1817, 28
        %v3149 = vpop.permute.xlu0 %3148
        %3150 = vrot.lane.b32.xlu0 %v1893, 28
        %v3151 = vpop.permute.xlu0 %3150
        %3152 = vrot.lane.b32.xlu0 %v1969, 28
        %v3153 = vpop.permute.xlu0 %3152
        %3154 = vrot.lane.b32.xlu0 %v2045, 28
        %v3155 = vpop.permute.xlu0 %3154
        %3156 = vrot.lane.b32.xlu0 %v2121, 28
        %v3157 = vpop.permute.xlu0 %3156
        %3158 = vrot.lane.b32.xlu0 %v2197, 28
        %v3159 = vpop.permute.xlu0 %3158
        %3160 = vrot.lane.b32.xlu0 %v2273, 28
        %v3161 = vpop.permute.xlu0 %3160
        %3194 = vrot.lane.b32.xlu0 %v1141, 30
        %v3195 = vpop.permute.xlu0 %3194
        %3196 = vrot.lane.b32.xlu0 %v1217, 30
        %v3197 = vpop.permute.xlu0 %3196
        %3198 = vrot.lane.b32.xlu0 %v1293, 30
        %v3199 = vpop.permute.xlu0 %3198
        %3200 = vrot.lane.b32.xlu0 %v1369, 30
        %v3201 = vpop.permute.xlu0 %3200
        %3202 = vrot.lane.b32.xlu0 %v1445, 30
        %v3203 = vpop.permute.xlu0 %3202
        %3204 = vrot.lane.b32.xlu0 %v1521, 30
        %v3205 = vpop.permute.xlu0 %3204
        %3206 = vrot.lane.b32.xlu0 %v1597, 30
        %v3207 = vpop.permute.xlu0 %3206
        %3208 = vrot.lane.b32.xlu0 %v1673, 30
        %v3209 = vpop.permute.xlu0 %3208
        %3210 = vrot.lane.b32.xlu0 %v1749, 30
        %v3211 = vpop.permute.xlu0 %3210
        %3212 = vrot.lane.b32.xlu0 %v1825, 30
        %v3213 = vpop.permute.xlu0 %3212
        %3214 = vrot.lane.b32.xlu0 %v1901, 30
        %v3215 = vpop.permute.xlu0 %3214
        %3216 = vrot.lane.b32.xlu0 %v1977, 30
        %v3217 = vpop.permute.xlu0 %3216
        %3218 = vrot.lane.b32.xlu0 %v2053, 30
        %v3219 = vpop.permute.xlu0 %3218
        %3220 = vrot.lane.b32.xlu0 %v2129, 30
        %v3221 = vpop.permute.xlu0 %3220
        %3222 = vrot.lane.b32.xlu0 %v2205, 30
        %v3223 = vpop.permute.xlu0 %3222
        %3224 = vrot.lane.b32.xlu0 %v2281, 30
        %v3225 = vpop.permute.xlu0 %3224
        %vm3242 = vcmask 15360
        %v3243 = vsel %vm3242, %v1081, %v2299
        %v3244 = vsel %vm3242, %v1157, %v2301
        %v3245 = vsel %vm3242, %v1233, %v2303
        %v3246 = vsel %vm3242, %v1309, %v2305
        %v3247 = vsel %vm3242, %v1385, %v2307
        %v3248 = vsel %vm3242, %v1461, %v2309
        %v3249 = vsel %vm3242, %v1537, %v2311
        %v3250 = vsel %vm3242, %v1613, %v2313
        %v3251 = vsel %vm3242, %v1689, %v2315
        %v3252 = vsel %vm3242, %v1765, %v2317
        %v3253 = vsel %vm3242, %v1841, %v2319
        %v3254 = vsel %vm3242, %v1917, %v2321
        %v3255 = vsel %vm3242, %v1993, %v2323
        %v3256 = vsel %vm3242, %v2069, %v2325
        %v3257 = vsel %vm3242, %v2145, %v2327
        %v3258 = vsel %vm3242, %v2221, %v2329
        %vm3259 = vcmask 31744
        %v3260 = vsel %vm3259, %v3243, %v2363
        %v3261 = vsel %vm3259, %v3244, %v2365
        %v3262 = vsel %vm3259, %v3245, %v2367
        %v3263 = vsel %vm3259, %v3246, %v2369
        %v3264 = vsel %vm3259, %v3247, %v2371
        %v3265 = vsel %vm3259, %v3248, %v2373
        %v3266 = vsel %vm3259, %v3249, %v2375
        %v3267 = vsel %vm3259, %v3250, %v2377
        %v3268 = vsel %vm3259, %v3251, %v2379
        %v3269 = vsel %vm3259, %v3252, %v2381
        %v3270 = vsel %vm3259, %v3253, %v2383
        %v3271 = vsel %vm3259, %v3254, %v2385
        %v3272 = vsel %vm3259, %v3255, %v2387
        %v3273 = vsel %vm3259, %v3256, %v2389
        %v3274 = vsel %vm3259, %v3257, %v2391
        %v3275 = vsel %vm3259, %v3258, %v2393
        %vm3276 = vcmask 48128
        %v3277 = vsel %vm3276, %v3260, %v2427
        %v3278 = vsel %vm3276, %v3261, %v2429
        %v3279 = vsel %vm3276, %v3262, %v2431
        %v3280 = vsel %vm3276, %v3263, %v2433
        %v3281 = vsel %vm3276, %v3264, %v2435
        %v3282 = vsel %vm3276, %v3265, %v2437
        %v3283 = vsel %vm3276, %v3266, %v2439
        %v3284 = vsel %vm3276, %v3267, %v2441
        %v3285 = vsel %vm3276, %v3268, %v2443
        %v3286 = vsel %vm3276, %v3269, %v2445
        %v3287 = vsel %vm3276, %v3270, %v2447
        %v3288 = vsel %vm3276, %v3271, %v2449
        %v3289 = vsel %vm3276, %v3272, %v2451
        %v3290 = vsel %vm3276, %v3273, %v2453
        %v3291 = vsel %vm3276, %v3274, %v2455
        %v3292 = vsel %vm3276, %v3275, %v2457
        %vm3293 = vcmask 64512
        %v3294 = vsel %vm3293, %v3277, %v2491
        %v3295 = vsel %vm3293, %v3278, %v2493
        %v3296 = vsel %vm3293, %v3279, %v2495
        %v3297 = vsel %vm3293, %v3280, %v2497
        %v3298 = vsel %vm3293, %v3281, %v2499
        %v3299 = vsel %vm3293, %v3282, %v2501
        %v3300 = vsel %vm3293, %v3283, %v2503
        %v3301 = vsel %vm3293, %v3284, %v2505
        %v3302 = vsel %vm3293, %v3285, %v2507
        %v3303 = vsel %vm3293, %v3286, %v2509
        %v3304 = vsel %vm3293, %v3287, %v2511
        %v3305 = vsel %vm3293, %v3288, %v2513
        %v3306 = vsel %vm3293, %v3289, %v2515
        %v3307 = vsel %vm3293, %v3290, %v2517
        %v3308 = vsel %vm3293, %v3291, %v2519
        %v3309 = vsel %vm3293, %v3292, %v2521
        %vm3310 = vcmask 80896
        %v3311 = vsel %vm3310, %v3294, %v2555
        %v3312 = vsel %vm3310, %v3295, %v2557
        %v3313 = vsel %vm3310, %v3296, %v2559
        %v3314 = vsel %vm3310, %v3297, %v2561
        %v3315 = vsel %vm3310, %v3298, %v2563
        %v3316 = vsel %vm3310, %v3299, %v2565
        %v3317 = vsel %vm3310, %v3300, %v2567
        %v3318 = vsel %vm3310, %v3301, %v2569
        %v3319 = vsel %vm3310, %v3302, %v2571
        %v3320 = vsel %vm3310, %v3303, %v2573
        %v3321 = vsel %vm3310, %v3304, %v2575
        %v3322 = vsel %vm3310, %v3305, %v2577
        %v3323 = vsel %vm3310, %v3306, %v2579
        %v3324 = vsel %vm3310, %v3307, %v2581
        %v3325 = vsel %vm3310, %v3308, %v2583
        %v3326 = vsel %vm3310, %v3309, %v2585
        %vm3327 = vcmask 97280
        %v3328 = vsel %vm3327, %v3311, %v2619
        %v3329 = vsel %vm3327, %v3312, %v2621
        %v3330 = vsel %vm3327, %v3313, %v2623
        %v3331 = vsel %vm3327, %v3314, %v2625
        %v3332 = vsel %vm3327, %v3315, %v2627
        %v3333 = vsel %vm3327, %v3316, %v2629
        %v3334 = vsel %vm3327, %v3317, %v2631
        %v3335 = vsel %vm3327, %v3318, %v2633
        %v3336 = vsel %vm3327, %v3319, %v2635
        %v3337 = vsel %vm3327, %v3320, %v2637
        %v3338 = vsel %vm3327, %v3321, %v2639
        %v3339 = vsel %vm3327, %v3322, %v2641
        %v3340 = vsel %vm3327, %v3323, %v2643
        %v3341 = vsel %vm3327, %v3324, %v2645
        %v3342 = vsel %vm3327, %v3325, %v2647
        %v3343 = vsel %vm3327, %v3326, %v2649
        %vm3344 = vcmask 113664
        %v3345 = vsel %vm3344, %v3328, %v2683
        %v3346 = vsel %vm3344, %v3329, %v2685
        %v3347 = vsel %vm3344, %v3330, %v2687
        %v3348 = vsel %vm3344, %v3331, %v2689
        %v3349 = vsel %vm3344, %v3332, %v2691
        %v3350 = vsel %vm3344, %v3333, %v2693
        %v3351 = vsel %vm3344, %v3334, %v2695
        %v3352 = vsel %vm3344, %v3335, %v2697
        %v3353 = vsel %vm3344, %v3336, %v2699
        %v3354 = vsel %vm3344, %v3337, %v2701
        %v3355 = vsel %vm3344, %v3338, %v2703
        %v3356 = vsel %vm3344, %v3339, %v2705
        %v3357 = vsel %vm3344, %v3340, %v2707
        %v3358 = vsel %vm3344, %v3341, %v2709
        %v3359 = vsel %vm3344, %v3342, %v2711
        %v3360 = vsel %vm3344, %v3343, %v2713
        %vm3361 = vcmask 130048
        %v3362 = vsel %vm3361, %v3345, %v2747
        %v3363 = vsel %vm3361, %v3346, %v2749
        %v3364 = vsel %vm3361, %v3347, %v2751
        %v3365 = vsel %vm3361, %v3348, %v2753
        %v3366 = vsel %vm3361, %v3349, %v2755
        %v3367 = vsel %vm3361, %v3350, %v2757
        %v3368 = vsel %vm3361, %v3351, %v2759
        %v3369 = vsel %vm3361, %v3352, %v2761
        %v3370 = vsel %vm3361, %v3353, %v2763
        %v3371 = vsel %vm3361, %v3354, %v2765
        %v3372 = vsel %vm3361, %v3355, %v2767
        %v3373 = vsel %vm3361, %v3356, %v2769
        %v3374 = vsel %vm3361, %v3357, %v2771
        %v3375 = vsel %vm3361, %v3358, %v2773
        %v3376 = vsel %vm3361, %v3359, %v2775
        %v3377 = vsel %vm3361, %v3360, %v2777
        %vm3378 = vcmask 146432
        %v3379 = vsel %vm3378, %v3362, %v2811
        %v3380 = vsel %vm3378, %v3363, %v2813
        %v3381 = vsel %vm3378, %v3364, %v2815
        %v3382 = vsel %vm3378, %v3365, %v2817
        %v3383 = vsel %vm3378, %v3366, %v2819
        %v3384 = vsel %vm3378, %v3367, %v2821
        %v3385 = vsel %vm3378, %v3368, %v2823
        %v3386 = vsel %vm3378, %v3369, %v2825
        %v3387 = vsel %vm3378, %v3370, %v2827
        %v3388 = vsel %vm3378, %v3371, %v2829
        %v3389 = vsel %vm3378, %v3372, %v2831
        %v3390 = vsel %vm3378, %v3373, %v2833
        %v3391 = vsel %vm3378, %v3374, %v2835
        %v3392 = vsel %vm3378, %v3375, %v2837
        %v3393 = vsel %vm3378, %v3376, %v2839
        %v3394 = vsel %vm3378, %v3377, %v2841
        %vm3395 = vcmask 162816
        %v3396 = vsel %vm3395, %v3379, %v2875
        %v3397 = vsel %vm3395, %v3380, %v2877
        %v3398 = vsel %vm3395, %v3381, %v2879
        %v3399 = vsel %vm3395, %v3382, %v2881
        %v3400 = vsel %vm3395, %v3383, %v2883
        %v3401 = vsel %vm3395, %v3384, %v2885
        %v3402 = vsel %vm3395, %v3385, %v2887
        %v3403 = vsel %vm3395, %v3386, %v2889
        %v3404 = vsel %vm3395, %v3387, %v2891
        %v3405 = vsel %vm3395, %v3388, %v2893
        %v3406 = vsel %vm3395, %v3389, %v2895
        %v3407 = vsel %vm3395, %v3390, %v2897
        %v3408 = vsel %vm3395, %v3391, %v2899
        %v3409 = vsel %vm3395, %v3392, %v2901
        %v3410 = vsel %vm3395, %v3393, %v2903
        %v3411 = vsel %vm3395, %v3394, %v2905
        %vm3412 = vcmask 179200
        %v3413 = vsel %vm3412, %v3396, %v2939
        %v3414 = vsel %vm3412, %v3397, %v2941
        %v3415 = vsel %vm3412, %v3398, %v2943
        %v3416 = vsel %vm3412, %v3399, %v2945
        %v3417 = vsel %vm3412, %v3400, %v2947
        %v3418 = vsel %vm3412, %v3401, %v2949
        %v3419 = vsel %vm3412, %v3402, %v2951
        %v3420 = vsel %vm3412, %v3403, %v2953
        %v3421 = vsel %vm3412, %v3404, %v2955
        %v3422 = vsel %vm3412, %v3405, %v2957
        %v3423 = vsel %vm3412, %v3406, %v2959
        %v3424 = vsel %vm3412, %v3407, %v2961
        %v3425 = vsel %vm3412, %v3408, %v2963
        %v3426 = vsel %vm3412, %v3409, %v2965
        %v3427 = vsel %vm3412, %v3410, %v2967
        %v3428 = vsel %vm3412, %v3411, %v2969
        %vm3429 = vcmask 195584
        %v3430 = vsel %vm3429, %v3413, %v3003
        %v3431 = vsel %vm3429, %v3414, %v3005
        %v3432 = vsel %vm3429, %v3415, %v3007
        %v3433 = vsel %vm3429, %v3416, %v3009
        %v3434 = vsel %vm3429, %v3417, %v3011
        %v3435 = vsel %vm3429, %v3418, %v3013
        %v3436 = vsel %vm3429, %v3419, %v3015
        %v3437 = vsel %vm3429, %v3420, %v3017
        %v3438 = vsel %vm3429, %v3421, %v3019
        %v3439 = vsel %vm3429, %v3422, %v3021
        %v3440 = vsel %vm3429, %v3423, %v3023
        %v3441 = vsel %vm3429, %v3424, %v3025
        %v3442 = vsel %vm3429, %v3425, %v3027
        %v3443 = vsel %vm3429, %v3426, %v3029
        %v3444 = vsel %vm3429, %v3427, %v3031
        %v3445 = vsel %vm3429, %v3428, %v3033
        %vm3446 = vcmask 211968
        %v3447 = vsel %vm3446, %v3430, %v3067
        %v3448 = vsel %vm3446, %v3431, %v3069
        %v3449 = vsel %vm3446, %v3432, %v3071
        %v3450 = vsel %vm3446, %v3433, %v3073
        %v3451 = vsel %vm3446, %v3434, %v3075
        %v3452 = vsel %vm3446, %v3435, %v3077
        %v3453 = vsel %vm3446, %v3436, %v3079
        %v3454 = vsel %vm3446, %v3437, %v3081
        %v3455 = vsel %vm3446, %v3438, %v3083
        %v3456 = vsel %vm3446, %v3439, %v3085
        %v3457 = vsel %vm3446, %v3440, %v3087
        %v3458 = vsel %vm3446, %v3441, %v3089
        %v3459 = vsel %vm3446, %v3442, %v3091
        %v3460 = vsel %vm3446, %v3443, %v3093
        %v3461 = vsel %vm3446, %v3444, %v3095
        %v3462 = vsel %vm3446, %v3445, %v3097
        %vm3463 = vcmask 228352
        %v3464 = vsel %vm3463, %v3447, %v3131
        %v3465 = vsel %vm3463, %v3448, %v3133
        %v3466 = vsel %vm3463, %v3449, %v3135
        %v3467 = vsel %vm3463, %v3450, %v3137
        %v3468 = vsel %vm3463, %v3451, %v3139
        %v3469 = vsel %vm3463, %v3452, %v3141
        %v3470 = vsel %vm3463, %v3453, %v3143
        %v3471 = vsel %vm3463, %v3454, %v3145
        %v3472 = vsel %vm3463, %v3455, %v3147
        %v3473 = vsel %vm3463, %v3456, %v3149
        %v3474 = vsel %vm3463, %v3457, %v3151
        %v3475 = vsel %vm3463, %v3458, %v3153
        %v3476 = vsel %vm3463, %v3459, %v3155
        %v3477 = vsel %vm3463, %v3460, %v3157
        %v3478 = vsel %vm3463, %v3461, %v3159
        %v3479 = vsel %vm3463, %v3462, %v3161
        %vm3480 = vcmask 244736
        %v3481 = vsel %vm3480, %v3464, %v3195
        %v3482 = vsel %vm3480, %v3465, %v3197
        %v3483 = vsel %vm3480, %v3466, %v3199
        %v3484 = vsel %vm3480, %v3467, %v3201
        %v3485 = vsel %vm3480, %v3468, %v3203
        %v3486 = vsel %vm3480, %v3469, %v3205
        %v3487 = vsel %vm3480, %v3470, %v3207
        %v3488 = vsel %vm3480, %v3471, %v3209
        %v3489 = vsel %vm3480, %v3472, %v3211
        %v3490 = vsel %vm3480, %v3473, %v3213
        %v3491 = vsel %vm3480, %v3474, %v3215
        %v3492 = vsel %vm3480, %v3475, %v3217
        %v3493 = vsel %vm3480, %v3476, %v3219
        %v3494 = vsel %vm3480, %v3477, %v3221
        %v3495 = vsel %vm3480, %v3478, %v3223
        %v3496 = vsel %vm3480, %v3479, %v3225
        %v3497 = vrot.slane %v1033, 4
        %v3498 = vsel %vm1066, 0.0, %v3497
        %v3500 = vunpack.c.l.s4 1983009808
        %v3501 = vunpack.c.0.s8 %v3500
        %v3502 = vperm.slane %v1033, %v3501
        %v3504 = vunpack.c.l.s4 1983009808
        %v3505 = vunpack.c.0.s8 %v3504
        %v3506 = vperm.slane %v3498, %v3505
        %v3507 = vrot.slane %v3502, 4
        %v3508 = vsel %vm1066, 0.0, %v3507
        %v3510 = vunpack.c.l.s4 1934713408
        %v3511 = vunpack.c.0.s8 %v3510
        %v3512 = vperm.slane %v3502, %v3511
        %v3514 = vunpack.c.l.s4 1934713408
        %v3515 = vunpack.c.0.s8 %v3514
        %v3516 = vperm.slane %v3508, %v3515
        %v3517 = vrot.slane %v3506, 4
        %v3518 = vsel %vm1066, 0.0, %v3517
        %v3520 = vunpack.c.l.s4 1934713408
        %v3521 = vunpack.c.0.s8 %v3520
        %v3522 = vperm.slane %v3506, %v3521
        %v3524 = vunpack.c.l.s4 1934713408
        %v3525 = vunpack.c.0.s8 %v3524
        %v3526 = vperm.slane %v3518, %v3525
        %v3527 = vrot.slane %v3512, 4
        %v3528 = vsel %vm1066, 0.0, %v3527
        %v3529 = vrot.slane %v3516, 4
        %v3530 = vsel %vm1066, 0.0, %v3529
        %v3531 = vrot.slane %v3522, 4
        %v3532 = vsel %vm1066, 0.0, %v3531
        %v3533 = vrot.slane %v3526, 4
        %v3534 = vsel %vm1066, 0.0, %v3533
        %v3535 = vrot.slane %v1034, 4
        %v3536 = vsel %vm1066, 0.0, %v3535
        %v3538 = vunpack.c.l.s4 1983009808
        %v3539 = vunpack.c.0.s8 %v3538
        %v3540 = vperm.slane %v1034, %v3539
        %v3542 = vunpack.c.l.s4 1983009808
        %v3543 = vunpack.c.0.s8 %v3542
        %v3544 = vperm.slane %v3536, %v3543
        %v3545 = vrot.slane %v3540, 4
        %v3546 = vsel %vm1066, 0.0, %v3545
        %v3548 = vunpack.c.l.s4 1934713408
        %v3549 = vunpack.c.0.s8 %v3548
        %v3550 = vperm.slane %v3540, %v3549
        %v3552 = vunpack.c.l.s4 1934713408
        %v3553 = vunpack.c.0.s8 %v3552
        %v3554 = vperm.slane %v3546, %v3553
        %v3555 = vrot.slane %v3544, 4
        %v3556 = vsel %vm1066, 0.0, %v3555
        %v3558 = vunpack.c.l.s4 1934713408
        %v3559 = vunpack.c.0.s8 %v3558
        %v3560 = vperm.slane %v3544, %v3559
        %v3562 = vunpack.c.l.s4 1934713408
        %v3563 = vunpack.c.0.s8 %v3562
        %v3564 = vperm.slane %v3556, %v3563
        %v3565 = vrot.slane %v3550, 4
        %v3566 = vsel %vm1066, 0.0, %v3565
        %v3567 = vrot.slane %v3554, 4
        %v3568 = vsel %vm1066, 0.0, %v3567
        %v3569 = vrot.slane %v3560, 4
        %v3570 = vsel %vm1066, 0.0, %v3569
        %v3571 = vrot.slane %v3564, 4
        %v3572 = vsel %vm1066, 0.0, %v3571
        %v3573 = vrot.slane %v1035, 4
        %v3574 = vsel %vm1066, 0.0, %v3573
        %v3576 = vunpack.c.l.s4 1983009808
        %v3577 = vunpack.c.0.s8 %v3576
        %v3578 = vperm.slane %v1035, %v3577
        %v3580 = vunpack.c.l.s4 1983009808
        %v3581 = vunpack.c.0.s8 %v3580
        %v3582 = vperm.slane %v3574, %v3581
        %v3583 = vrot.slane %v3578, 4
        %v3584 = vsel %vm1066, 0.0, %v3583
        %v3586 = vunpack.c.l.s4 1934713408
        %v3587 = vunpack.c.0.s8 %v3586
        %v3588 = vperm.slane %v3578, %v3587
        %v3590 = vunpack.c.l.s4 1934713408
        %v3591 = vunpack.c.0.s8 %v3590
        %v3592 = vperm.slane %v3584, %v3591
        %v3593 = vrot.slane %v3582, 4
        %v3594 = vsel %vm1066, 0.0, %v3593
        %v3596 = vunpack.c.l.s4 1934713408
        %v3597 = vunpack.c.0.s8 %v3596
        %v3598 = vperm.slane %v3582, %v3597
        %v3600 = vunpack.c.l.s4 1934713408
        %v3601 = vunpack.c.0.s8 %v3600
        %v3602 = vperm.slane %v3594, %v3601
        %v3603 = vrot.slane %v3588, 4
        %v3604 = vsel %vm1066, 0.0, %v3603
        %v3605 = vrot.slane %v3592, 4
        %v3606 = vsel %vm1066, 0.0, %v3605
        %v3607 = vrot.slane %v3598, 4
        %v3608 = vsel %vm1066, 0.0, %v3607
        %v3609 = vrot.slane %v3602, 4
        %v3610 = vsel %vm1066, 0.0, %v3609
        %v3611 = vrot.slane %v1036, 4
        %v3612 = vsel %vm1066, 0.0, %v3611
        %v3614 = vunpack.c.l.s4 1983009808
        %v3615 = vunpack.c.0.s8 %v3614
        %v3616 = vperm.slane %v1036, %v3615
        %v3618 = vunpack.c.l.s4 1983009808
        %v3619 = vunpack.c.0.s8 %v3618
        %v3620 = vperm.slane %v3612, %v3619
        %v3621 = vrot.slane %v3616, 4
        %v3622 = vsel %vm1066, 0.0, %v3621
        %v3624 = vunpack.c.l.s4 1934713408
        %v3625 = vunpack.c.0.s8 %v3624
        %v3626 = vperm.slane %v3616, %v3625
        %v3628 = vunpack.c.l.s4 1934713408
        %v3629 = vunpack.c.0.s8 %v3628
        %v3630 = vperm.slane %v3622, %v3629
        %v3631 = vrot.slane %v3620, 4
        %v3632 = vsel %vm1066, 0.0, %v3631
        %v3634 = vunpack.c.l.s4 1934713408
        %v3635 = vunpack.c.0.s8 %v3634
        %v3636 = vperm.slane %v3620, %v3635
        %v3638 = vunpack.c.l.s4 1934713408
        %v3639 = vunpack.c.0.s8 %v3638
        %v3640 = vperm.slane %v3632, %v3639
        %v3641 = vrot.slane %v3626, 4
        %v3642 = vsel %vm1066, 0.0, %v3641
        %v3643 = vrot.slane %v3630, 4
        %v3644 = vsel %vm1066, 0.0, %v3643
        %v3645 = vrot.slane %v3636, 4
        %v3646 = vsel %vm1066, 0.0, %v3645
        %v3647 = vrot.slane %v3640, 4
        %v3648 = vsel %vm1066, 0.0, %v3647
        %v3649 = vrot.slane %v1037, 4
        %v3650 = vsel %vm1066, 0.0, %v3649
        %v3652 = vunpack.c.l.s4 1983009808
        %v3653 = vunpack.c.0.s8 %v3652
        %v3654 = vperm.slane %v1037, %v3653
        %v3656 = vunpack.c.l.s4 1983009808
        %v3657 = vunpack.c.0.s8 %v3656
        %v3658 = vperm.slane %v3650, %v3657
        %v3659 = vrot.slane %v3654, 4
        %v3660 = vsel %vm1066, 0.0, %v3659
        %v3662 = vunpack.c.l.s4 1934713408
        %v3663 = vunpack.c.0.s8 %v3662
        %v3664 = vperm.slane %v3654, %v3663
        %v3666 = vunpack.c.l.s4 1934713408
        %v3667 = vunpack.c.0.s8 %v3666
        %v3668 = vperm.slane %v3660, %v3667
        %v3669 = vrot.slane %v3658, 4
        %v3670 = vsel %vm1066, 0.0, %v3669
        %v3672 = vunpack.c.l.s4 1934713408
        %v3673 = vunpack.c.0.s8 %v3672
        %v3674 = vperm.slane %v3658, %v3673
        %v3676 = vunpack.c.l.s4 1934713408
        %v3677 = vunpack.c.0.s8 %v3676
        %v3678 = vperm.slane %v3670, %v3677
        %v3679 = vrot.slane %v3664, 4
        %v3680 = vsel %vm1066, 0.0, %v3679
        %v3681 = vrot.slane %v3668, 4
        %v3682 = vsel %vm1066, 0.0, %v3681
        %v3683 = vrot.slane %v3674, 4
        %v3684 = vsel %vm1066, 0.0, %v3683
        %v3685 = vrot.slane %v3678, 4
        %v3686 = vsel %vm1066, 0.0, %v3685
        %v3687 = vrot.slane %v1038, 4
        %v3688 = vsel %vm1066, 0.0, %v3687
        %v3690 = vunpack.c.l.s4 1983009808
        %v3691 = vunpack.c.0.s8 %v3690
        %v3692 = vperm.slane %v1038, %v3691
        %v3694 = vunpack.c.l.s4 1983009808
        %v3695 = vunpack.c.0.s8 %v3694
        %v3696 = vperm.slane %v3688, %v3695
        %v3697 = vrot.slane %v3692, 4
        %v3698 = vsel %vm1066, 0.0, %v3697
        %v3700 = vunpack.c.l.s4 1934713408
        %v3701 = vunpack.c.0.s8 %v3700
        %v3702 = vperm.slane %v3692, %v3701
        %v3704 = vunpack.c.l.s4 1934713408
        %v3705 = vunpack.c.0.s8 %v3704
        %v3706 = vperm.slane %v3698, %v3705
        %v3707 = vrot.slane %v3696, 4
        %v3708 = vsel %vm1066, 0.0, %v3707
        %v3710 = vunpack.c.l.s4 1934713408
        %v3711 = vunpack.c.0.s8 %v3710
        %v3712 = vperm.slane %v3696, %v3711
        %v3714 = vunpack.c.l.s4 1934713408
        %v3715 = vunpack.c.0.s8 %v3714
        %v3716 = vperm.slane %v3708, %v3715
        %v3717 = vrot.slane %v3702, 4
        %v3718 = vsel %vm1066, 0.0, %v3717
        %v3719 = vrot.slane %v3706, 4
        %v3720 = vsel %vm1066, 0.0, %v3719
        %v3721 = vrot.slane %v3712, 4
        %v3722 = vsel %vm1066, 0.0, %v3721
        %v3723 = vrot.slane %v3716, 4
        %v3724 = vsel %vm1066, 0.0, %v3723
        %v3725 = vrot.slane %v1039, 4
        %v3726 = vsel %vm1066, 0.0, %v3725
        %v3728 = vunpack.c.l.s4 1983009808
        %v3729 = vunpack.c.0.s8 %v3728
        %v3730 = vperm.slane %v1039, %v3729
        %v3732 = vunpack.c.l.s4 1983009808
        %v3733 = vunpack.c.0.s8 %v3732
        %v3734 = vperm.slane %v3726, %v3733
        %v3735 = vrot.slane %v3730, 4
        %v3736 = vsel %vm1066, 0.0, %v3735
        %v3738 = vunpack.c.l.s4 1934713408
        %v3739 = vunpack.c.0.s8 %v3738
        %v3740 = vperm.slane %v3730, %v3739
        %v3742 = vunpack.c.l.s4 1934713408
        %v3743 = vunpack.c.0.s8 %v3742
        %v3744 = vperm.slane %v3736, %v3743
        %v3745 = vrot.slane %v3734, 4
        %v3746 = vsel %vm1066, 0.0, %v3745
        %v3748 = vunpack.c.l.s4 1934713408
        %v3749 = vunpack.c.0.s8 %v3748
        %v3750 = vperm.slane %v3734, %v3749
        %v3752 = vunpack.c.l.s4 1934713408
        %v3753 = vunpack.c.0.s8 %v3752
        %v3754 = vperm.slane %v3746, %v3753
        %v3755 = vrot.slane %v3740, 4
        %v3756 = vsel %vm1066, 0.0, %v3755
        %v3757 = vrot.slane %v3744, 4
        %v3758 = vsel %vm1066, 0.0, %v3757
        %v3759 = vrot.slane %v3750, 4
        %v3760 = vsel %vm1066, 0.0, %v3759
        %v3761 = vrot.slane %v3754, 4
        %v3762 = vsel %vm1066, 0.0, %v3761
        %v3763 = vrot.slane %v1040, 4
        %v3764 = vsel %vm1066, 0.0, %v3763
        %v3766 = vunpack.c.l.s4 1983009808
        %v3767 = vunpack.c.0.s8 %v3766
        %v3768 = vperm.slane %v1040, %v3767
        %v3770 = vunpack.c.l.s4 1983009808
        %v3771 = vunpack.c.0.s8 %v3770
        %v3772 = vperm.slane %v3764, %v3771
        %v3773 = vrot.slane %v3768, 4
        %v3774 = vsel %vm1066, 0.0, %v3773
        %v3776 = vunpack.c.l.s4 1934713408
        %v3777 = vunpack.c.0.s8 %v3776
        %v3778 = vperm.slane %v3768, %v3777
        %v3780 = vunpack.c.l.s4 1934713408
        %v3781 = vunpack.c.0.s8 %v3780
        %v3782 = vperm.slane %v3774, %v3781
        %v3783 = vrot.slane %v3772, 4
        %v3784 = vsel %vm1066, 0.0, %v3783
        %v3786 = vunpack.c.l.s4 1934713408
        %v3787 = vunpack.c.0.s8 %v3786
        %v3788 = vperm.slane %v3772, %v3787
        %v3790 = vunpack.c.l.s4 1934713408
        %v3791 = vunpack.c.0.s8 %v3790
        %v3792 = vperm.slane %v3784, %v3791
        %v3793 = vrot.slane %v3778, 4
        %v3794 = vsel %vm1066, 0.0, %v3793
        %v3795 = vrot.slane %v3782, 4
        %v3796 = vsel %vm1066, 0.0, %v3795
        %v3797 = vrot.slane %v3788, 4
        %v3798 = vsel %vm1066, 0.0, %v3797
        %v3799 = vrot.slane %v3792, 4
        %v3800 = vsel %vm1066, 0.0, %v3799
        %v3801 = vrot.slane %v1041, 4
        %v3802 = vsel %vm1066, 0.0, %v3801
        %v3804 = vunpack.c.l.s4 1983009808
        %v3805 = vunpack.c.0.s8 %v3804
        %v3806 = vperm.slane %v1041, %v3805
        %v3808 = vunpack.c.l.s4 1983009808
        %v3809 = vunpack.c.0.s8 %v3808
        %v3810 = vperm.slane %v3802, %v3809
        %v3811 = vrot.slane %v3806, 4
        %v3812 = vsel %vm1066, 0.0, %v3811
        %v3814 = vunpack.c.l.s4 1934713408
        %v3815 = vunpack.c.0.s8 %v3814
        %v3816 = vperm.slane %v3806, %v3815
        %v3818 = vunpack.c.l.s4 1934713408
        %v3819 = vunpack.c.0.s8 %v3818
        %v3820 = vperm.slane %v3812, %v3819
        %v3821 = vrot.slane %v3810, 4
        %v3822 = vsel %vm1066, 0.0, %v3821
        %v3824 = vunpack.c.l.s4 1934713408
        %v3825 = vunpack.c.0.s8 %v3824
        %v3826 = vperm.slane %v3810, %v3825
        %v3828 = vunpack.c.l.s4 1934713408
        %v3829 = vunpack.c.0.s8 %v3828
        %v3830 = vperm.slane %v3822, %v3829
        %v3831 = vrot.slane %v3816, 4
        %v3832 = vsel %vm1066, 0.0, %v3831
        %v3833 = vrot.slane %v3820, 4
        %v3834 = vsel %vm1066, 0.0, %v3833
        %v3835 = vrot.slane %v3826, 4
        %v3836 = vsel %vm1066, 0.0, %v3835
        %v3837 = vrot.slane %v3830, 4
        %v3838 = vsel %vm1066, 0.0, %v3837
        %v3839 = vrot.slane %v1042, 4
        %v3840 = vsel %vm1066, 0.0, %v3839
        %v3842 = vunpack.c.l.s4 1983009808
        %v3843 = vunpack.c.0.s8 %v3842
        %v3844 = vperm.slane %v1042, %v3843
        %v3846 = vunpack.c.l.s4 1983009808
        %v3847 = vunpack.c.0.s8 %v3846
        %v3848 = vperm.slane %v3840, %v3847
        %v3849 = vrot.slane %v3844, 4
        %v3850 = vsel %vm1066, 0.0, %v3849
        %v3852 = vunpack.c.l.s4 1934713408
        %v3853 = vunpack.c.0.s8 %v3852
        %v3854 = vperm.slane %v3844, %v3853
        %v3856 = vunpack.c.l.s4 1934713408
        %v3857 = vunpack.c.0.s8 %v3856
        %v3858 = vperm.slane %v3850, %v3857
        %v3859 = vrot.slane %v3848, 4
        %v3860 = vsel %vm1066, 0.0, %v3859
        %v3862 = vunpack.c.l.s4 1934713408
        %v3863 = vunpack.c.0.s8 %v3862
        %v3864 = vperm.slane %v3848, %v3863
        %v3866 = vunpack.c.l.s4 1934713408
        %v3867 = vunpack.c.0.s8 %v3866
        %v3868 = vperm.slane %v3860, %v3867
        %v3869 = vrot.slane %v3854, 4
        %v3870 = vsel %vm1066, 0.0, %v3869
        %v3871 = vrot.slane %v3858, 4
        %v3872 = vsel %vm1066, 0.0, %v3871
        %v3873 = vrot.slane %v3864, 4
        %v3874 = vsel %vm1066, 0.0, %v3873
        %v3875 = vrot.slane %v3868, 4
        %v3876 = vsel %vm1066, 0.0, %v3875
        %v3877 = vrot.slane %v1043, 4
        %v3878 = vsel %vm1066, 0.0, %v3877
        %v3880 = vunpack.c.l.s4 1983009808
        %v3881 = vunpack.c.0.s8 %v3880
        %v3882 = vperm.slane %v1043, %v3881
        %v3884 = vunpack.c.l.s4 1983009808
        %v3885 = vunpack.c.0.s8 %v3884
        %v3886 = vperm.slane %v3878, %v3885
        %v3887 = vrot.slane %v3882, 4
        %v3888 = vsel %vm1066, 0.0, %v3887
        %v3890 = vunpack.c.l.s4 1934713408
        %v3891 = vunpack.c.0.s8 %v3890
        %v3892 = vperm.slane %v3882, %v3891
        %v3894 = vunpack.c.l.s4 1934713408
        %v3895 = vunpack.c.0.s8 %v3894
        %v3896 = vperm.slane %v3888, %v3895
        %v3897 = vrot.slane %v3886, 4
        %v3898 = vsel %vm1066, 0.0, %v3897
        %v3900 = vunpack.c.l.s4 1934713408
        %v3901 = vunpack.c.0.s8 %v3900
        %v3902 = vperm.slane %v3886, %v3901
        %v3904 = vunpack.c.l.s4 1934713408
        %v3905 = vunpack.c.0.s8 %v3904
        %v3906 = vperm.slane %v3898, %v3905
        %v3907 = vrot.slane %v3892, 4
        %v3908 = vsel %vm1066, 0.0, %v3907
        %v3909 = vrot.slane %v3896, 4
        %v3910 = vsel %vm1066, 0.0, %v3909
        %v3911 = vrot.slane %v3902, 4
        %v3912 = vsel %vm1066, 0.0, %v3911
        %v3913 = vrot.slane %v3906, 4
        %v3914 = vsel %vm1066, 0.0, %v3913
        %v3915 = vrot.slane %v1044, 4
        %v3916 = vsel %vm1066, 0.0, %v3915
        %v3918 = vunpack.c.l.s4 1983009808
        %v3919 = vunpack.c.0.s8 %v3918
        %v3920 = vperm.slane %v1044, %v3919
        %v3922 = vunpack.c.l.s4 1983009808
        %v3923 = vunpack.c.0.s8 %v3922
        %v3924 = vperm.slane %v3916, %v3923
        %v3925 = vrot.slane %v3920, 4
        %v3926 = vsel %vm1066, 0.0, %v3925
        %v3928 = vunpack.c.l.s4 1934713408
        %v3929 = vunpack.c.0.s8 %v3928
        %v3930 = vperm.slane %v3920, %v3929
        %v3932 = vunpack.c.l.s4 1934713408
        %v3933 = vunpack.c.0.s8 %v3932
        %v3934 = vperm.slane %v3926, %v3933
        %v3935 = vrot.slane %v3924, 4
        %v3936 = vsel %vm1066, 0.0, %v3935
        %v3938 = vunpack.c.l.s4 1934713408
        %v3939 = vunpack.c.0.s8 %v3938
        %v3940 = vperm.slane %v3924, %v3939
        %v3942 = vunpack.c.l.s4 1934713408
        %v3943 = vunpack.c.0.s8 %v3942
        %v3944 = vperm.slane %v3936, %v3943
        %v3945 = vrot.slane %v3930, 4
        %v3946 = vsel %vm1066, 0.0, %v3945
        %v3947 = vrot.slane %v3934, 4
        %v3948 = vsel %vm1066, 0.0, %v3947
        %v3949 = vrot.slane %v3940, 4
        %v3950 = vsel %vm1066, 0.0, %v3949
        %v3951 = vrot.slane %v3944, 4
        %v3952 = vsel %vm1066, 0.0, %v3951
        %v3953 = vrot.slane %v1045, 4
        %v3954 = vsel %vm1066, 0.0, %v3953
        %v3956 = vunpack.c.l.s4 1983009808
        %v3957 = vunpack.c.0.s8 %v3956
        %v3958 = vperm.slane %v1045, %v3957
        %v3960 = vunpack.c.l.s4 1983009808
        %v3961 = vunpack.c.0.s8 %v3960
        %v3962 = vperm.slane %v3954, %v3961
        %v3963 = vrot.slane %v3958, 4
        %v3964 = vsel %vm1066, 0.0, %v3963
        %v3966 = vunpack.c.l.s4 1934713408
        %v3967 = vunpack.c.0.s8 %v3966
        %v3968 = vperm.slane %v3958, %v3967
        %v3970 = vunpack.c.l.s4 1934713408
        %v3971 = vunpack.c.0.s8 %v3970
        %v3972 = vperm.slane %v3964, %v3971
        %v3973 = vrot.slane %v3962, 4
        %v3974 = vsel %vm1066, 0.0, %v3973
        %v3976 = vunpack.c.l.s4 1934713408
        %v3977 = vunpack.c.0.s8 %v3976
        %v3978 = vperm.slane %v3962, %v3977
        %v3980 = vunpack.c.l.s4 1934713408
        %v3981 = vunpack.c.0.s8 %v3980
        %v3982 = vperm.slane %v3974, %v3981
        %v3983 = vrot.slane %v3968, 4
        %v3984 = vsel %vm1066, 0.0, %v3983
        %v3985 = vrot.slane %v3972, 4
        %v3986 = vsel %vm1066, 0.0, %v3985
        %v3987 = vrot.slane %v3978, 4
        %v3988 = vsel %vm1066, 0.0, %v3987
        %v3989 = vrot.slane %v3982, 4
        %v3990 = vsel %vm1066, 0.0, %v3989
        %v3991 = vrot.slane %v1046, 4
        %v3992 = vsel %vm1066, 0.0, %v3991
        %v3994 = vunpack.c.l.s4 1983009808
        %v3995 = vunpack.c.0.s8 %v3994
        %v3996 = vperm.slane %v1046, %v3995
        %v3998 = vunpack.c.l.s4 1983009808
        %v3999 = vunpack.c.0.s8 %v3998
        %v4000 = vperm.slane %v3992, %v3999
        %v4001 = vrot.slane %v3996, 4
        %v4002 = vsel %vm1066, 0.0, %v4001
        %v4004 = vunpack.c.l.s4 1934713408
        %v4005 = vunpack.c.0.s8 %v4004
        %v4006 = vperm.slane %v3996, %v4005
        %v4008 = vunpack.c.l.s4 1934713408
        %v4009 = vunpack.c.0.s8 %v4008
        %v4010 = vperm.slane %v4002, %v4009
        %v4011 = vrot.slane %v4000, 4
        %v4012 = vsel %vm1066, 0.0, %v4011
        %v4014 = vunpack.c.l.s4 1934713408
        %v4015 = vunpack.c.0.s8 %v4014
        %v4016 = vperm.slane %v4000, %v4015
        %v4018 = vunpack.c.l.s4 1934713408
        %v4019 = vunpack.c.0.s8 %v4018
        %v4020 = vperm.slane %v4012, %v4019
        %v4021 = vrot.slane %v4006, 4
        %v4022 = vsel %vm1066, 0.0, %v4021
        %v4023 = vrot.slane %v4010, 4
        %v4024 = vsel %vm1066, 0.0, %v4023
        %v4025 = vrot.slane %v4016, 4
        %v4026 = vsel %vm1066, 0.0, %v4025
        %v4027 = vrot.slane %v4020, 4
        %v4028 = vsel %vm1066, 0.0, %v4027
        %v4029 = vrot.slane %v1047, 4
        %v4030 = vsel %vm1066, 0.0, %v4029
        %v4032 = vunpack.c.l.s4 1983009808
        %v4033 = vunpack.c.0.s8 %v4032
        %v4034 = vperm.slane %v1047, %v4033
        %v4036 = vunpack.c.l.s4 1983009808
        %v4037 = vunpack.c.0.s8 %v4036
        %v4038 = vperm.slane %v4030, %v4037
        %v4039 = vrot.slane %v4034, 4
        %v4040 = vsel %vm1066, 0.0, %v4039
        %v4042 = vunpack.c.l.s4 1934713408
        %v4043 = vunpack.c.0.s8 %v4042
        %v4044 = vperm.slane %v4034, %v4043
        %v4046 = vunpack.c.l.s4 1934713408
        %v4047 = vunpack.c.0.s8 %v4046
        %v4048 = vperm.slane %v4040, %v4047
        %v4049 = vrot.slane %v4038, 4
        %v4050 = vsel %vm1066, 0.0, %v4049
        %v4052 = vunpack.c.l.s4 1934713408
        %v4053 = vunpack.c.0.s8 %v4052
        %v4054 = vperm.slane %v4038, %v4053
        %v4056 = vunpack.c.l.s4 1934713408
        %v4057 = vunpack.c.0.s8 %v4056
        %v4058 = vperm.slane %v4050, %v4057
        %v4059 = vrot.slane %v4044, 4
        %v4060 = vsel %vm1066, 0.0, %v4059
        %v4061 = vrot.slane %v4048, 4
        %v4062 = vsel %vm1066, 0.0, %v4061
        %v4063 = vrot.slane %v4054, 4
        %v4064 = vsel %vm1066, 0.0, %v4063
        %v4065 = vrot.slane %v4058, 4
        %v4066 = vsel %vm1066, 0.0, %v4065
        %v4067 = vrot.slane %v1048, 4
        %v4068 = vsel %vm1066, 0.0, %v4067
        %v4070 = vunpack.c.l.s4 1983009808
        %v4071 = vunpack.c.0.s8 %v4070
        %v4072 = vperm.slane %v1048, %v4071
        %v4074 = vunpack.c.l.s4 1983009808
        %v4075 = vunpack.c.0.s8 %v4074
        %v4076 = vperm.slane %v4068, %v4075
        %v4077 = vrot.slane %v4072, 4
        %v4078 = vsel %vm1066, 0.0, %v4077
        %v4080 = vunpack.c.l.s4 1934713408
        %v4081 = vunpack.c.0.s8 %v4080
        %v4082 = vperm.slane %v4072, %v4081
        %v4084 = vunpack.c.l.s4 1934713408
        %v4085 = vunpack.c.0.s8 %v4084
        %v4086 = vperm.slane %v4078, %v4085
        %v4087 = vrot.slane %v4076, 4
        %v4088 = vsel %vm1066, 0.0, %v4087
        %v4090 = vunpack.c.l.s4 1934713408
        %v4091 = vunpack.c.0.s8 %v4090
        %v4092 = vperm.slane %v4076, %v4091
        %v4094 = vunpack.c.l.s4 1934713408
        %v4095 = vunpack.c.0.s8 %v4094
        %v4096 = vperm.slane %v4088, %v4095
        %v4097 = vrot.slane %v4082, 4
        %v4098 = vsel %vm1066, 0.0, %v4097
        %v4099 = vrot.slane %v4086, 4
        %v4100 = vsel %vm1066, 0.0, %v4099
        %v4101 = vrot.slane %v4092, 4
        %v4102 = vsel %vm1066, 0.0, %v4101
        %v4103 = vrot.slane %v4096, 4
        %v4104 = vsel %vm1066, 0.0, %v4103
        %v4105 = vrot.slane %v1049, 4
        %v4106 = vsel %vm1066, 0.0, %v4105
        %v4108 = vunpack.c.l.s4 1983009808
        %v4109 = vunpack.c.0.s8 %v4108
        %v4110 = vperm.slane %v1049, %v4109
        %v4112 = vunpack.c.l.s4 1983009808
        %v4113 = vunpack.c.0.s8 %v4112
        %v4114 = vperm.slane %v4106, %v4113
        %v4115 = vrot.slane %v4110, 4
        %v4116 = vsel %vm1066, 0.0, %v4115
        %v4118 = vunpack.c.l.s4 1934713408
        %v4119 = vunpack.c.0.s8 %v4118
        %v4120 = vperm.slane %v4110, %v4119
        %v4122 = vunpack.c.l.s4 1934713408
        %v4123 = vunpack.c.0.s8 %v4122
        %v4124 = vperm.slane %v4116, %v4123
        %v4125 = vrot.slane %v4114, 4
        %v4126 = vsel %vm1066, 0.0, %v4125
        %v4128 = vunpack.c.l.s4 1934713408
        %v4129 = vunpack.c.0.s8 %v4128
        %v4130 = vperm.slane %v4114, %v4129
        %v4132 = vunpack.c.l.s4 1934713408
        %v4133 = vunpack.c.0.s8 %v4132
        %v4134 = vperm.slane %v4126, %v4133
        %v4135 = vrot.slane %v4120, 4
        %v4136 = vsel %vm1066, 0.0, %v4135
        %v4137 = vrot.slane %v4124, 4
        %v4138 = vsel %vm1066, 0.0, %v4137
        %v4139 = vrot.slane %v4130, 4
        %v4140 = vsel %vm1066, 0.0, %v4139
        %v4141 = vrot.slane %v4134, 4
        %v4142 = vsel %vm1066, 0.0, %v4141
        %v4143 = vrot.slane %v1050, 4
        %v4144 = vsel %vm1066, 0.0, %v4143
        %v4146 = vunpack.c.l.s4 1983009808
        %v4147 = vunpack.c.0.s8 %v4146
        %v4148 = vperm.slane %v1050, %v4147
        %v4150 = vunpack.c.l.s4 1983009808
        %v4151 = vunpack.c.0.s8 %v4150
        %v4152 = vperm.slane %v4144, %v4151
        %v4153 = vrot.slane %v4148, 4
        %v4154 = vsel %vm1066, 0.0, %v4153
        %v4156 = vunpack.c.l.s4 1934713408
        %v4157 = vunpack.c.0.s8 %v4156
        %v4158 = vperm.slane %v4148, %v4157
        %v4160 = vunpack.c.l.s4 1934713408
        %v4161 = vunpack.c.0.s8 %v4160
        %v4162 = vperm.slane %v4154, %v4161
        %v4163 = vrot.slane %v4152, 4
        %v4164 = vsel %vm1066, 0.0, %v4163
        %v4166 = vunpack.c.l.s4 1934713408
        %v4167 = vunpack.c.0.s8 %v4166
        %v4168 = vperm.slane %v4152, %v4167
        %v4170 = vunpack.c.l.s4 1934713408
        %v4171 = vunpack.c.0.s8 %v4170
        %v4172 = vperm.slane %v4164, %v4171
        %v4173 = vrot.slane %v4158, 4
        %v4174 = vsel %vm1066, 0.0, %v4173
        %v4175 = vrot.slane %v4162, 4
        %v4176 = vsel %vm1066, 0.0, %v4175
        %v4177 = vrot.slane %v4168, 4
        %v4178 = vsel %vm1066, 0.0, %v4177
        %v4179 = vrot.slane %v4172, 4
        %v4180 = vsel %vm1066, 0.0, %v4179
        %v4181 = vrot.slane %v1051, 4
        %v4182 = vsel %vm1066, 0.0, %v4181
        %v4184 = vunpack.c.l.s4 1983009808
        %v4185 = vunpack.c.0.s8 %v4184
        %v4186 = vperm.slane %v1051, %v4185
        %v4188 = vunpack.c.l.s4 1983009808
        %v4189 = vunpack.c.0.s8 %v4188
        %v4190 = vperm.slane %v4182, %v4189
        %v4191 = vrot.slane %v4186, 4
        %v4192 = vsel %vm1066, 0.0, %v4191
        %v4194 = vunpack.c.l.s4 1934713408
        %v4195 = vunpack.c.0.s8 %v4194
        %v4196 = vperm.slane %v4186, %v4195
        %v4198 = vunpack.c.l.s4 1934713408
        %v4199 = vunpack.c.0.s8 %v4198
        %v4200 = vperm.slane %v4192, %v4199
        %v4201 = vrot.slane %v4190, 4
        %v4202 = vsel %vm1066, 0.0, %v4201
        %v4204 = vunpack.c.l.s4 1934713408
        %v4205 = vunpack.c.0.s8 %v4204
        %v4206 = vperm.slane %v4190, %v4205
        %v4208 = vunpack.c.l.s4 1934713408
        %v4209 = vunpack.c.0.s8 %v4208
        %v4210 = vperm.slane %v4202, %v4209
        %v4211 = vrot.slane %v4196, 4
        %v4212 = vsel %vm1066, 0.0, %v4211
        %v4213 = vrot.slane %v4200, 4
        %v4214 = vsel %vm1066, 0.0, %v4213
        %v4215 = vrot.slane %v4206, 4
        %v4216 = vsel %vm1066, 0.0, %v4215
        %v4217 = vrot.slane %v4210, 4
        %v4218 = vsel %vm1066, 0.0, %v4217
        %v4219 = vrot.slane %v1052, 4
        %v4220 = vsel %vm1066, 0.0, %v4219
        %v4222 = vunpack.c.l.s4 1983009808
        %v4223 = vunpack.c.0.s8 %v4222
        %v4224 = vperm.slane %v1052, %v4223
        %v4226 = vunpack.c.l.s4 1983009808
        %v4227 = vunpack.c.0.s8 %v4226
        %v4228 = vperm.slane %v4220, %v4227
        %v4229 = vrot.slane %v4224, 4
        %v4230 = vsel %vm1066, 0.0, %v4229
        %v4232 = vunpack.c.l.s4 1934713408
        %v4233 = vunpack.c.0.s8 %v4232
        %v4234 = vperm.slane %v4224, %v4233
        %v4236 = vunpack.c.l.s4 1934713408
        %v4237 = vunpack.c.0.s8 %v4236
        %v4238 = vperm.slane %v4230, %v4237
        %v4239 = vrot.slane %v4228, 4
        %v4240 = vsel %vm1066, 0.0, %v4239
        %v4242 = vunpack.c.l.s4 1934713408
        %v4243 = vunpack.c.0.s8 %v4242
        %v4244 = vperm.slane %v4228, %v4243
        %v4246 = vunpack.c.l.s4 1934713408
        %v4247 = vunpack.c.0.s8 %v4246
        %v4248 = vperm.slane %v4240, %v4247
        %v4249 = vrot.slane %v4234, 4
        %v4250 = vsel %vm1066, 0.0, %v4249
        %v4251 = vrot.slane %v4238, 4
        %v4252 = vsel %vm1066, 0.0, %v4251
        %v4253 = vrot.slane %v4244, 4
        %v4254 = vsel %vm1066, 0.0, %v4253
        %v4255 = vrot.slane %v4248, 4
        %v4256 = vsel %vm1066, 0.0, %v4255
        %v4257 = vrot.slane %v1053, 4
        %v4258 = vsel %vm1066, 0.0, %v4257
        %v4260 = vunpack.c.l.s4 1983009808
        %v4261 = vunpack.c.0.s8 %v4260
        %v4262 = vperm.slane %v1053, %v4261
        %v4264 = vunpack.c.l.s4 1983009808
        %v4265 = vunpack.c.0.s8 %v4264
        %v4266 = vperm.slane %v4258, %v4265
        %v4267 = vrot.slane %v4262, 4
        %v4268 = vsel %vm1066, 0.0, %v4267
        %v4270 = vunpack.c.l.s4 1934713408
        %v4271 = vunpack.c.0.s8 %v4270
        %v4272 = vperm.slane %v4262, %v4271
        %v4274 = vunpack.c.l.s4 1934713408
        %v4275 = vunpack.c.0.s8 %v4274
        %v4276 = vperm.slane %v4268, %v4275
        %v4277 = vrot.slane %v4266, 4
        %v4278 = vsel %vm1066, 0.0, %v4277
        %v4280 = vunpack.c.l.s4 1934713408
        %v4281 = vunpack.c.0.s8 %v4280
        %v4282 = vperm.slane %v4266, %v4281
        %v4284 = vunpack.c.l.s4 1934713408
        %v4285 = vunpack.c.0.s8 %v4284
        %v4286 = vperm.slane %v4278, %v4285
        %v4287 = vrot.slane %v4272, 4
        %v4288 = vsel %vm1066, 0.0, %v4287
        %v4289 = vrot.slane %v4276, 4
        %v4290 = vsel %vm1066, 0.0, %v4289
        %v4291 = vrot.slane %v4282, 4
        %v4292 = vsel %vm1066, 0.0, %v4291
        %v4293 = vrot.slane %v4286, 4
        %v4294 = vsel %vm1066, 0.0, %v4293
        %v4295 = vrot.slane %v1054, 4
        %v4296 = vsel %vm1066, 0.0, %v4295
        %v4298 = vunpack.c.l.s4 1983009808
        %v4299 = vunpack.c.0.s8 %v4298
        %v4300 = vperm.slane %v1054, %v4299
        %v4302 = vunpack.c.l.s4 1983009808
        %v4303 = vunpack.c.0.s8 %v4302
        %v4304 = vperm.slane %v4296, %v4303
        %v4305 = vrot.slane %v4300, 4
        %v4306 = vsel %vm1066, 0.0, %v4305
        %v4308 = vunpack.c.l.s4 1934713408
        %v4309 = vunpack.c.0.s8 %v4308
        %v4310 = vperm.slane %v4300, %v4309
        %v4312 = vunpack.c.l.s4 1934713408
        %v4313 = vunpack.c.0.s8 %v4312
        %v4314 = vperm.slane %v4306, %v4313
        %v4315 = vrot.slane %v4304, 4
        %v4316 = vsel %vm1066, 0.0, %v4315
        %v4318 = vunpack.c.l.s4 1934713408
        %v4319 = vunpack.c.0.s8 %v4318
        %v4320 = vperm.slane %v4304, %v4319
        %v4322 = vunpack.c.l.s4 1934713408
        %v4323 = vunpack.c.0.s8 %v4322
        %v4324 = vperm.slane %v4316, %v4323
        %v4325 = vrot.slane %v4310, 4
        %v4326 = vsel %vm1066, 0.0, %v4325
        %v4327 = vrot.slane %v4314, 4
        %v4328 = vsel %vm1066, 0.0, %v4327
        %v4329 = vrot.slane %v4320, 4
        %v4330 = vsel %vm1066, 0.0, %v4329
        %v4331 = vrot.slane %v4324, 4
        %v4332 = vsel %vm1066, 0.0, %v4331
        %v4333 = vrot.slane %v1055, 4
        %v4334 = vsel %vm1066, 0.0, %v4333
        %v4336 = vunpack.c.l.s4 1983009808
        %v4337 = vunpack.c.0.s8 %v4336
        %v4338 = vperm.slane %v1055, %v4337
        %v4340 = vunpack.c.l.s4 1983009808
        %v4341 = vunpack.c.0.s8 %v4340
        %v4342 = vperm.slane %v4334, %v4341
        %v4343 = vrot.slane %v4338, 4
        %v4344 = vsel %vm1066, 0.0, %v4343
        %v4346 = vunpack.c.l.s4 1934713408
        %v4347 = vunpack.c.0.s8 %v4346
        %v4348 = vperm.slane %v4338, %v4347
        %v4350 = vunpack.c.l.s4 1934713408
        %v4351 = vunpack.c.0.s8 %v4350
        %v4352 = vperm.slane %v4344, %v4351
        %v4353 = vrot.slane %v4342, 4
        %v4354 = vsel %vm1066, 0.0, %v4353
        %v4356 = vunpack.c.l.s4 1934713408
        %v4357 = vunpack.c.0.s8 %v4356
        %v4358 = vperm.slane %v4342, %v4357
        %v4360 = vunpack.c.l.s4 1934713408
        %v4361 = vunpack.c.0.s8 %v4360
        %v4362 = vperm.slane %v4354, %v4361
        %v4363 = vrot.slane %v4348, 4
        %v4364 = vsel %vm1066, 0.0, %v4363
        %v4365 = vrot.slane %v4352, 4
        %v4366 = vsel %vm1066, 0.0, %v4365
        %v4367 = vrot.slane %v4358, 4
        %v4368 = vsel %vm1066, 0.0, %v4367
        %v4369 = vrot.slane %v4362, 4
        %v4370 = vsel %vm1066, 0.0, %v4369
        %v4371 = vrot.slane %v1056, 4
        %v4372 = vsel %vm1066, 0.0, %v4371
        %v4374 = vunpack.c.l.s4 1983009808
        %v4375 = vunpack.c.0.s8 %v4374
        %v4376 = vperm.slane %v1056, %v4375
        %v4378 = vunpack.c.l.s4 1983009808
        %v4379 = vunpack.c.0.s8 %v4378
        %v4380 = vperm.slane %v4372, %v4379
        %v4381 = vrot.slane %v4376, 4
        %v4382 = vsel %vm1066, 0.0, %v4381
        %v4384 = vunpack.c.l.s4 1934713408
        %v4385 = vunpack.c.0.s8 %v4384
        %v4386 = vperm.slane %v4376, %v4385
        %v4388 = vunpack.c.l.s4 1934713408
        %v4389 = vunpack.c.0.s8 %v4388
        %v4390 = vperm.slane %v4382, %v4389
        %v4391 = vrot.slane %v4380, 4
        %v4392 = vsel %vm1066, 0.0, %v4391
        %v4394 = vunpack.c.l.s4 1934713408
        %v4395 = vunpack.c.0.s8 %v4394
        %v4396 = vperm.slane %v4380, %v4395
        %v4398 = vunpack.c.l.s4 1934713408
        %v4399 = vunpack.c.0.s8 %v4398
        %v4400 = vperm.slane %v4392, %v4399
        %v4401 = vrot.slane %v4386, 4
        %v4402 = vsel %vm1066, 0.0, %v4401
        %v4403 = vrot.slane %v4390, 4
        %v4404 = vsel %vm1066, 0.0, %v4403
        %v4405 = vrot.slane %v4396, 4
        %v4406 = vsel %vm1066, 0.0, %v4405
        %v4407 = vrot.slane %v4400, 4
        %v4408 = vsel %vm1066, 0.0, %v4407
        %v4409 = vrot.slane %v1057, 4
        %v4410 = vsel %vm1066, 0.0, %v4409
        %v4412 = vunpack.c.l.s4 1983009808
        %v4413 = vunpack.c.0.s8 %v4412
        %v4414 = vperm.slane %v1057, %v4413
        %v4416 = vunpack.c.l.s4 1983009808
        %v4417 = vunpack.c.0.s8 %v4416
        %v4418 = vperm.slane %v4410, %v4417
        %v4419 = vrot.slane %v4414, 4
        %v4420 = vsel %vm1066, 0.0, %v4419
        %v4422 = vunpack.c.l.s4 1934713408
        %v4423 = vunpack.c.0.s8 %v4422
        %v4424 = vperm.slane %v4414, %v4423
        %v4426 = vunpack.c.l.s4 1934713408
        %v4427 = vunpack.c.0.s8 %v4426
        %v4428 = vperm.slane %v4420, %v4427
        %v4429 = vrot.slane %v4418, 4
        %v4430 = vsel %vm1066, 0.0, %v4429
        %v4432 = vunpack.c.l.s4 1934713408
        %v4433 = vunpack.c.0.s8 %v4432
        %v4434 = vperm.slane %v4418, %v4433
        %v4436 = vunpack.c.l.s4 1934713408
        %v4437 = vunpack.c.0.s8 %v4436
        %v4438 = vperm.slane %v4430, %v4437
        %v4439 = vrot.slane %v4424, 4
        %v4440 = vsel %vm1066, 0.0, %v4439
        %v4441 = vrot.slane %v4428, 4
        %v4442 = vsel %vm1066, 0.0, %v4441
        %v4443 = vrot.slane %v4434, 4
        %v4444 = vsel %vm1066, 0.0, %v4443
        %v4445 = vrot.slane %v4438, 4
        %v4446 = vsel %vm1066, 0.0, %v4445
        %v4447 = vrot.slane %v1058, 4
        %v4448 = vsel %vm1066, 0.0, %v4447
        %v4450 = vunpack.c.l.s4 1983009808
        %v4451 = vunpack.c.0.s8 %v4450
        %v4452 = vperm.slane %v1058, %v4451
        %v4454 = vunpack.c.l.s4 1983009808
        %v4455 = vunpack.c.0.s8 %v4454
        %v4456 = vperm.slane %v4448, %v4455
        %v4457 = vrot.slane %v4452, 4
        %v4458 = vsel %vm1066, 0.0, %v4457
        %v4460 = vunpack.c.l.s4 1934713408
        %v4461 = vunpack.c.0.s8 %v4460
        %v4462 = vperm.slane %v4452, %v4461
        %v4464 = vunpack.c.l.s4 1934713408
        %v4465 = vunpack.c.0.s8 %v4464
        %v4466 = vperm.slane %v4458, %v4465
        %v4467 = vrot.slane %v4456, 4
        %v4468 = vsel %vm1066, 0.0, %v4467
        %v4470 = vunpack.c.l.s4 1934713408
        %v4471 = vunpack.c.0.s8 %v4470
        %v4472 = vperm.slane %v4456, %v4471
        %v4474 = vunpack.c.l.s4 1934713408
        %v4475 = vunpack.c.0.s8 %v4474
        %v4476 = vperm.slane %v4468, %v4475
        %v4477 = vrot.slane %v4462, 4
        %v4478 = vsel %vm1066, 0.0, %v4477
        %v4479 = vrot.slane %v4466, 4
        %v4480 = vsel %vm1066, 0.0, %v4479
        %v4481 = vrot.slane %v4472, 4
        %v4482 = vsel %vm1066, 0.0, %v4481
        %v4483 = vrot.slane %v4476, 4
        %v4484 = vsel %vm1066, 0.0, %v4483
        %v4485 = vrot.slane %v1059, 4
        %v4486 = vsel %vm1066, 0.0, %v4485
        %v4488 = vunpack.c.l.s4 1983009808
        %v4489 = vunpack.c.0.s8 %v4488
        %v4490 = vperm.slane %v1059, %v4489
        %v4492 = vunpack.c.l.s4 1983009808
        %v4493 = vunpack.c.0.s8 %v4492
        %v4494 = vperm.slane %v4486, %v4493
        %v4495 = vrot.slane %v4490, 4
        %v4496 = vsel %vm1066, 0.0, %v4495
        %v4498 = vunpack.c.l.s4 1934713408
        %v4499 = vunpack.c.0.s8 %v4498
        %v4500 = vperm.slane %v4490, %v4499
        %v4502 = vunpack.c.l.s4 1934713408
        %v4503 = vunpack.c.0.s8 %v4502
        %v4504 = vperm.slane %v4496, %v4503
        %v4505 = vrot.slane %v4494, 4
        %v4506 = vsel %vm1066, 0.0, %v4505
        %v4508 = vunpack.c.l.s4 1934713408
        %v4509 = vunpack.c.0.s8 %v4508
        %v4510 = vperm.slane %v4494, %v4509
        %v4512 = vunpack.c.l.s4 1934713408
        %v4513 = vunpack.c.0.s8 %v4512
        %v4514 = vperm.slane %v4506, %v4513
        %v4515 = vrot.slane %v4500, 4
        %v4516 = vsel %vm1066, 0.0, %v4515
        %v4517 = vrot.slane %v4504, 4
        %v4518 = vsel %vm1066, 0.0, %v4517
        %v4519 = vrot.slane %v4510, 4
        %v4520 = vsel %vm1066, 0.0, %v4519
        %v4521 = vrot.slane %v4514, 4
        %v4522 = vsel %vm1066, 0.0, %v4521
        %v4523 = vrot.slane %v1060, 4
        %v4524 = vsel %vm1066, 0.0, %v4523
        %v4526 = vunpack.c.l.s4 1983009808
        %v4527 = vunpack.c.0.s8 %v4526
        %v4528 = vperm.slane %v1060, %v4527
        %v4530 = vunpack.c.l.s4 1983009808
        %v4531 = vunpack.c.0.s8 %v4530
        %v4532 = vperm.slane %v4524, %v4531
        %v4533 = vrot.slane %v4528, 4
        %v4534 = vsel %vm1066, 0.0, %v4533
        %v4536 = vunpack.c.l.s4 1934713408
        %v4537 = vunpack.c.0.s8 %v4536
        %v4538 = vperm.slane %v4528, %v4537
        %v4540 = vunpack.c.l.s4 1934713408
        %v4541 = vunpack.c.0.s8 %v4540
        %v4542 = vperm.slane %v4534, %v4541
        %v4543 = vrot.slane %v4532, 4
        %v4544 = vsel %vm1066, 0.0, %v4543
        %v4546 = vunpack.c.l.s4 1934713408
        %v4547 = vunpack.c.0.s8 %v4546
        %v4548 = vperm.slane %v4532, %v4547
        %v4550 = vunpack.c.l.s4 1934713408
        %v4551 = vunpack.c.0.s8 %v4550
        %v4552 = vperm.slane %v4544, %v4551
        %v4553 = vrot.slane %v4538, 4
        %v4554 = vsel %vm1066, 0.0, %v4553
        %v4555 = vrot.slane %v4542, 4
        %v4556 = vsel %vm1066, 0.0, %v4555
        %v4557 = vrot.slane %v4548, 4
        %v4558 = vsel %vm1066, 0.0, %v4557
        %v4559 = vrot.slane %v4552, 4
        %v4560 = vsel %vm1066, 0.0, %v4559
        %v4561 = vrot.slane %v1061, 4
        %v4562 = vsel %vm1066, 0.0, %v4561
        %v4564 = vunpack.c.l.s4 1983009808
        %v4565 = vunpack.c.0.s8 %v4564
        %v4566 = vperm.slane %v1061, %v4565
        %v4568 = vunpack.c.l.s4 1983009808
        %v4569 = vunpack.c.0.s8 %v4568
        %v4570 = vperm.slane %v4562, %v4569
        %v4571 = vrot.slane %v4566, 4
        %v4572 = vsel %vm1066, 0.0, %v4571
        %v4574 = vunpack.c.l.s4 1934713408
        %v4575 = vunpack.c.0.s8 %v4574
        %v4576 = vperm.slane %v4566, %v4575
        %v4578 = vunpack.c.l.s4 1934713408
        %v4579 = vunpack.c.0.s8 %v4578
        %v4580 = vperm.slane %v4572, %v4579
        %v4581 = vrot.slane %v4570, 4
        %v4582 = vsel %vm1066, 0.0, %v4581
        %v4584 = vunpack.c.l.s4 1934713408
        %v4585 = vunpack.c.0.s8 %v4584
        %v4586 = vperm.slane %v4570, %v4585
        %v4588 = vunpack.c.l.s4 1934713408
        %v4589 = vunpack.c.0.s8 %v4588
        %v4590 = vperm.slane %v4582, %v4589
        %v4591 = vrot.slane %v4576, 4
        %v4592 = vsel %vm1066, 0.0, %v4591
        %v4593 = vrot.slane %v4580, 4
        %v4594 = vsel %vm1066, 0.0, %v4593
        %v4595 = vrot.slane %v4586, 4
        %v4596 = vsel %vm1066, 0.0, %v4595
        %v4597 = vrot.slane %v4590, 4
        %v4598 = vsel %vm1066, 0.0, %v4597
        %v4599 = vrot.slane %v1062, 4
        %v4600 = vsel %vm1066, 0.0, %v4599
        %v4602 = vunpack.c.l.s4 1983009808
        %v4603 = vunpack.c.0.s8 %v4602
        %v4604 = vperm.slane %v1062, %v4603
        %v4606 = vunpack.c.l.s4 1983009808
        %v4607 = vunpack.c.0.s8 %v4606
        %v4608 = vperm.slane %v4600, %v4607
        %v4609 = vrot.slane %v4604, 4
        %v4610 = vsel %vm1066, 0.0, %v4609
        %v4612 = vunpack.c.l.s4 1934713408
        %v4613 = vunpack.c.0.s8 %v4612
        %v4614 = vperm.slane %v4604, %v4613
        %v4616 = vunpack.c.l.s4 1934713408
        %v4617 = vunpack.c.0.s8 %v4616
        %v4618 = vperm.slane %v4610, %v4617
        %v4619 = vrot.slane %v4608, 4
        %v4620 = vsel %vm1066, 0.0, %v4619
        %v4622 = vunpack.c.l.s4 1934713408
        %v4623 = vunpack.c.0.s8 %v4622
        %v4624 = vperm.slane %v4608, %v4623
        %v4626 = vunpack.c.l.s4 1934713408
        %v4627 = vunpack.c.0.s8 %v4626
        %v4628 = vperm.slane %v4620, %v4627
        %v4629 = vrot.slane %v4614, 4
        %v4630 = vsel %vm1066, 0.0, %v4629
        %v4631 = vrot.slane %v4618, 4
        %v4632 = vsel %vm1066, 0.0, %v4631
        %v4633 = vrot.slane %v4624, 4
        %v4634 = vsel %vm1066, 0.0, %v4633
        %v4635 = vrot.slane %v4628, 4
        %v4636 = vsel %vm1066, 0.0, %v4635
        %v4637 = vrot.slane %v1063, 4
        %v4638 = vsel %vm1066, 0.0, %v4637
        %v4640 = vunpack.c.l.s4 1983009808
        %v4641 = vunpack.c.0.s8 %v4640
        %v4642 = vperm.slane %v1063, %v4641
        %v4644 = vunpack.c.l.s4 1983009808
        %v4645 = vunpack.c.0.s8 %v4644
        %v4646 = vperm.slane %v4638, %v4645
        %v4647 = vrot.slane %v4642, 4
        %v4648 = vsel %vm1066, 0.0, %v4647
        %v4650 = vunpack.c.l.s4 1934713408
        %v4651 = vunpack.c.0.s8 %v4650
        %v4652 = vperm.slane %v4642, %v4651
        %v4654 = vunpack.c.l.s4 1934713408
        %v4655 = vunpack.c.0.s8 %v4654
        %v4656 = vperm.slane %v4648, %v4655
        %v4657 = vrot.slane %v4646, 4
        %v4658 = vsel %vm1066, 0.0, %v4657
        %v4660 = vunpack.c.l.s4 1934713408
        %v4661 = vunpack.c.0.s8 %v4660
        %v4662 = vperm.slane %v4646, %v4661
        %v4664 = vunpack.c.l.s4 1934713408
        %v4665 = vunpack.c.0.s8 %v4664
        %v4666 = vperm.slane %v4658, %v4665
        %v4667 = vrot.slane %v4652, 4
        %v4668 = vsel %vm1066, 0.0, %v4667
        %v4669 = vrot.slane %v4656, 4
        %v4670 = vsel %vm1066, 0.0, %v4669
        %v4671 = vrot.slane %v4662, 4
        %v4672 = vsel %vm1066, 0.0, %v4671
        %v4673 = vrot.slane %v4666, 4
        %v4674 = vsel %vm1066, 0.0, %v4673
        %v4675 = vrot.slane %v1064, 4
        %v4676 = vsel %vm1066, 0.0, %v4675
        %v4678 = vunpack.c.l.s4 1983009808
        %v4679 = vunpack.c.0.s8 %v4678
        %v4680 = vperm.slane %v1064, %v4679
        %v4682 = vunpack.c.l.s4 1983009808
        %v4683 = vunpack.c.0.s8 %v4682
        %v4684 = vperm.slane %v4676, %v4683
        %v4685 = vrot.slane %v4680, 4
        %v4686 = vsel %vm1066, 0.0, %v4685
        %v4688 = vunpack.c.l.s4 1934713408
        %v4689 = vunpack.c.0.s8 %v4688
        %v4690 = vperm.slane %v4680, %v4689
        %v4692 = vunpack.c.l.s4 1934713408
        %v4693 = vunpack.c.0.s8 %v4692
        %v4694 = vperm.slane %v4686, %v4693
        %v4695 = vrot.slane %v4684, 4
        %v4696 = vsel %vm1066, 0.0, %v4695
        %v4698 = vunpack.c.l.s4 1934713408
        %v4699 = vunpack.c.0.s8 %v4698
        %v4700 = vperm.slane %v4684, %v4699
        %v4702 = vunpack.c.l.s4 1934713408
        %v4703 = vunpack.c.0.s8 %v4702
        %v4704 = vperm.slane %v4696, %v4703
        %v4705 = vrot.slane %v4690, 4
        %v4706 = vsel %vm1066, 0.0, %v4705
        %v4707 = vrot.slane %v4694, 4
        %v4708 = vsel %vm1066, 0.0, %v4707
        %v4709 = vrot.slane %v4700, 4
        %v4710 = vsel %vm1066, 0.0, %v4709
        %v4711 = vrot.slane %v4704, 4
        %v4712 = vsel %vm1066, 0.0, %v4711
        %4729 = vrot.lane.b32.xlu0 %v3528, 2
        %v4730 = vpop.permute.xlu0 %4729
        %4731 = vrot.lane.b32.xlu0 %v3604, 2
        %v4732 = vpop.permute.xlu0 %4731
        %4733 = vrot.lane.b32.xlu0 %v3680, 2
        %v4734 = vpop.permute.xlu0 %4733
        %4735 = vrot.lane.b32.xlu0 %v3756, 2
        %v4736 = vpop.permute.xlu0 %4735
        %4737 = vrot.lane.b32.xlu0 %v3832, 2
        %v4738 = vpop.permute.xlu0 %4737
        %4739 = vrot.lane.b32.xlu0 %v3908, 2
        %v4740 = vpop.permute.xlu0 %4739
        %4741 = vrot.lane.b32.xlu0 %v3984, 2
        %v4742 = vpop.permute.xlu0 %4741
        %4743 = vrot.lane.b32.xlu0 %v4060, 2
        %v4744 = vpop.permute.xlu0 %4743
        %4745 = vrot.lane.b32.xlu0 %v4136, 2
        %v4746 = vpop.permute.xlu0 %4745
        %4747 = vrot.lane.b32.xlu0 %v4212, 2
        %v4748 = vpop.permute.xlu0 %4747
        %4749 = vrot.lane.b32.xlu0 %v4288, 2
        %v4750 = vpop.permute.xlu0 %4749
        %4751 = vrot.lane.b32.xlu0 %v4364, 2
        %v4752 = vpop.permute.xlu0 %4751
        %4753 = vrot.lane.b32.xlu0 %v4440, 2
        %v4754 = vpop.permute.xlu0 %4753
        %4755 = vrot.lane.b32.xlu0 %v4516, 2
        %v4756 = vpop.permute.xlu0 %4755
        %4757 = vrot.lane.b32.xlu0 %v4592, 2
        %v4758 = vpop.permute.xlu0 %4757
        %4759 = vrot.lane.b32.xlu0 %v4668, 2
        %v4760 = vpop.permute.xlu0 %4759
        %4793 = vrot.lane.b32.xlu0 %v3516, 4
        %v4794 = vpop.permute.xlu0 %4793
        %4795 = vrot.lane.b32.xlu0 %v3592, 4
        %v4796 = vpop.permute.xlu0 %4795
        %4797 = vrot.lane.b32.xlu0 %v3668, 4
        %v4798 = vpop.permute.xlu0 %4797
        %4799 = vrot.lane.b32.xlu0 %v3744, 4
        %v4800 = vpop.permute.xlu0 %4799
        %4801 = vrot.lane.b32.xlu0 %v3820, 4
        %v4802 = vpop.permute.xlu0 %4801
        %4803 = vrot.lane.b32.xlu0 %v3896, 4
        %v4804 = vpop.permute.xlu0 %4803
        %4805 = vrot.lane.b32.xlu0 %v3972, 4
        %v4806 = vpop.permute.xlu0 %4805
        %4807 = vrot.lane.b32.xlu0 %v4048, 4
        %v4808 = vpop.permute.xlu0 %4807
        %4809 = vrot.lane.b32.xlu0 %v4124, 4
        %v4810 = vpop.permute.xlu0 %4809
        %4811 = vrot.lane.b32.xlu0 %v4200, 4
        %v4812 = vpop.permute.xlu0 %4811
        %4813 = vrot.lane.b32.xlu0 %v4276, 4
        %v4814 = vpop.permute.xlu0 %4813
        %4815 = vrot.lane.b32.xlu0 %v4352, 4
        %v4816 = vpop.permute.xlu0 %4815
        %4817 = vrot.lane.b32.xlu0 %v4428, 4
        %v4818 = vpop.permute.xlu0 %4817
        %4819 = vrot.lane.b32.xlu0 %v4504, 4
        %v4820 = vpop.permute.xlu0 %4819
        %4821 = vrot.lane.b32.xlu0 %v4580, 4
        %v4822 = vpop.permute.xlu0 %4821
        %4823 = vrot.lane.b32.xlu0 %v4656, 4
        %v4824 = vpop.permute.xlu0 %4823
        %4857 = vrot.lane.b32.xlu0 %v3530, 6
        %v4858 = vpop.permute.xlu0 %4857
        %4859 = vrot.lane.b32.xlu0 %v3606, 6
        %v4860 = vpop.permute.xlu0 %4859
        %4861 = vrot.lane.b32.xlu0 %v3682, 6
        %v4862 = vpop.permute.xlu0 %4861
        %4863 = vrot.lane.b32.xlu0 %v3758, 6
        %v4864 = vpop.permute.xlu0 %4863
        %4865 = vrot.lane.b32.xlu0 %v3834, 6
        %v4866 = vpop.permute.xlu0 %4865
        %4867 = vrot.lane.b32.xlu0 %v3910, 6
        %v4868 = vpop.permute.xlu0 %4867
        %4869 = vrot.lane.b32.xlu0 %v3986, 6
        %v4870 = vpop.permute.xlu0 %4869
        %4871 = vrot.lane.b32.xlu0 %v4062, 6
        %v4872 = vpop.permute.xlu0 %4871
        %4873 = vrot.lane.b32.xlu0 %v4138, 6
        %v4874 = vpop.permute.xlu0 %4873
        %4875 = vrot.lane.b32.xlu0 %v4214, 6
        %v4876 = vpop.permute.xlu0 %4875
        %4877 = vrot.lane.b32.xlu0 %v4290, 6
        %v4878 = vpop.permute.xlu0 %4877
        %4879 = vrot.lane.b32.xlu0 %v4366, 6
        %v4880 = vpop.permute.xlu0 %4879
        %4881 = vrot.lane.b32.xlu0 %v4442, 6
        %v4882 = vpop.permute.xlu0 %4881
        %4883 = vrot.lane.b32.xlu0 %v4518, 6
        %v4884 = vpop.permute.xlu0 %4883
        %4885 = vrot.lane.b32.xlu0 %v4594, 6
        %v4886 = vpop.permute.xlu0 %4885
        %4887 = vrot.lane.b32.xlu0 %v4670, 6
        %v4888 = vpop.permute.xlu0 %4887
        %4921 = vrot.lane.b32.xlu0 %v3522, 8
        %v4922 = vpop.permute.xlu0 %4921
        %4923 = vrot.lane.b32.xlu0 %v3598, 8
        %v4924 = vpop.permute.xlu0 %4923
        %4925 = vrot.lane.b32.xlu0 %v3674, 8
        %v4926 = vpop.permute.xlu0 %4925
        %4927 = vrot.lane.b32.xlu0 %v3750, 8
        %v4928 = vpop.permute.xlu0 %4927
        %4929 = vrot.lane.b32.xlu0 %v3826, 8
        %v4930 = vpop.permute.xlu0 %4929
        %4931 = vrot.lane.b32.xlu0 %v3902, 8
        %v4932 = vpop.permute.xlu0 %4931
        %4933 = vrot.lane.b32.xlu0 %v3978, 8
        %v4934 = vpop.permute.xlu0 %4933
        %4935 = vrot.lane.b32.xlu0 %v4054, 8
        %v4936 = vpop.permute.xlu0 %4935
        %4937 = vrot.lane.b32.xlu0 %v4130, 8
        %v4938 = vpop.permute.xlu0 %4937
        %4939 = vrot.lane.b32.xlu0 %v4206, 8
        %v4940 = vpop.permute.xlu0 %4939
        %4941 = vrot.lane.b32.xlu0 %v4282, 8
        %v4942 = vpop.permute.xlu0 %4941
        %4943 = vrot.lane.b32.xlu0 %v4358, 8
        %v4944 = vpop.permute.xlu0 %4943
        %4945 = vrot.lane.b32.xlu0 %v4434, 8
        %v4946 = vpop.permute.xlu0 %4945
        %4947 = vrot.lane.b32.xlu0 %v4510, 8
        %v4948 = vpop.permute.xlu0 %4947
        %4949 = vrot.lane.b32.xlu0 %v4586, 8
        %v4950 = vpop.permute.xlu0 %4949
        %4951 = vrot.lane.b32.xlu0 %v4662, 8
        %v4952 = vpop.permute.xlu0 %4951
        %4985 = vrot.lane.b32.xlu0 %v3532, 10
        %v4986 = vpop.permute.xlu0 %4985
        %4987 = vrot.lane.b32.xlu0 %v3608, 10
        %v4988 = vpop.permute.xlu0 %4987
        %4989 = vrot.lane.b32.xlu0 %v3684, 10
        %v4990 = vpop.permute.xlu0 %4989
        %4991 = vrot.lane.b32.xlu0 %v3760, 10
        %v4992 = vpop.permute.xlu0 %4991
        %4993 = vrot.lane.b32.xlu0 %v3836, 10
        %v4994 = vpop.permute.xlu0 %4993
        %4995 = vrot.lane.b32.xlu0 %v3912, 10
        %v4996 = vpop.permute.xlu0 %4995
        %4997 = vrot.lane.b32.xlu0 %v3988, 10
        %v4998 = vpop.permute.xlu0 %4997
        %4999 = vrot.lane.b32.xlu0 %v4064, 10
        %v5000 = vpop.permute.xlu0 %4999
        %5001 = vrot.lane.b32.xlu0 %v4140, 10
        %v5002 = vpop.permute.xlu0 %5001
        %5003 = vrot.lane.b32.xlu0 %v4216, 10
        %v5004 = vpop.permute.xlu0 %5003
        %5005 = vrot.lane.b32.xlu0 %v4292, 10
        %v5006 = vpop.permute.xlu0 %5005
        %5007 = vrot.lane.b32.xlu0 %v4368, 10
        %v5008 = vpop.permute.xlu0 %5007
        %5009 = vrot.lane.b32.xlu0 %v4444, 10
        %v5010 = vpop.permute.xlu0 %5009
        %5011 = vrot.lane.b32.xlu0 %v4520, 10
        %v5012 = vpop.permute.xlu0 %5011
        %5013 = vrot.lane.b32.xlu0 %v4596, 10
        %v5014 = vpop.permute.xlu0 %5013
        %5015 = vrot.lane.b32.xlu0 %v4672, 10
        %v5016 = vpop.permute.xlu0 %5015
        %5049 = vrot.lane.b32.xlu0 %v3526, 12
        %v5050 = vpop.permute.xlu0 %5049
        %5051 = vrot.lane.b32.xlu0 %v3602, 12
        %v5052 = vpop.permute.xlu0 %5051
        %5053 = vrot.lane.b32.xlu0 %v3678, 12
        %v5054 = vpop.permute.xlu0 %5053
        %5055 = vrot.lane.b32.xlu0 %v3754, 12
        %v5056 = vpop.permute.xlu0 %5055
        %5057 = vrot.lane.b32.xlu0 %v3830, 12
        %v5058 = vpop.permute.xlu0 %5057
        %5059 = vrot.lane.b32.xlu0 %v3906, 12
        %v5060 = vpop.permute.xlu0 %5059
        %5061 = vrot.lane.b32.xlu0 %v3982, 12
        %v5062 = vpop.permute.xlu0 %5061
        %5063 = vrot.lane.b32.xlu0 %v4058, 12
        %v5064 = vpop.permute.xlu0 %5063
        %5065 = vrot.lane.b32.xlu0 %v4134, 12
        %v5066 = vpop.permute.xlu0 %5065
        %5067 = vrot.lane.b32.xlu0 %v4210, 12
        %v5068 = vpop.permute.xlu0 %5067
        %5069 = vrot.lane.b32.xlu0 %v4286, 12
        %v5070 = vpop.permute.xlu0 %5069
        %5071 = vrot.lane.b32.xlu0 %v4362, 12
        %v5072 = vpop.permute.xlu0 %5071
        %5073 = vrot.lane.b32.xlu0 %v4438, 12
        %v5074 = vpop.permute.xlu0 %5073
        %5075 = vrot.lane.b32.xlu0 %v4514, 12
        %v5076 = vpop.permute.xlu0 %5075
        %5077 = vrot.lane.b32.xlu0 %v4590, 12
        %v5078 = vpop.permute.xlu0 %5077
        %5079 = vrot.lane.b32.xlu0 %v4666, 12
        %v5080 = vpop.permute.xlu0 %5079
        %5113 = vrot.lane.b32.xlu0 %v3534, 14
        %v5114 = vpop.permute.xlu0 %5113
        %5115 = vrot.lane.b32.xlu0 %v3610, 14
        %v5116 = vpop.permute.xlu0 %5115
        %5117 = vrot.lane.b32.xlu0 %v3686, 14
        %v5118 = vpop.permute.xlu0 %5117
        %5119 = vrot.lane.b32.xlu0 %v3762, 14
        %v5120 = vpop.permute.xlu0 %5119
        %5121 = vrot.lane.b32.xlu0 %v3838, 14
        %v5122 = vpop.permute.xlu0 %5121
        %5123 = vrot.lane.b32.xlu0 %v3914, 14
        %v5124 = vpop.permute.xlu0 %5123
        %5125 = vrot.lane.b32.xlu0 %v3990, 14
        %v5126 = vpop.permute.xlu0 %5125
        %5127 = vrot.lane.b32.xlu0 %v4066, 14
        %v5128 = vpop.permute.xlu0 %5127
        %5129 = vrot.lane.b32.xlu0 %v4142, 14
        %v5130 = vpop.permute.xlu0 %5129
        %5131 = vrot.lane.b32.xlu0 %v4218, 14
        %v5132 = vpop.permute.xlu0 %5131
        %5133 = vrot.lane.b32.xlu0 %v4294, 14
        %v5134 = vpop.permute.xlu0 %5133
        %5135 = vrot.lane.b32.xlu0 %v4370, 14
        %v5136 = vpop.permute.xlu0 %5135
        %5137 = vrot.lane.b32.xlu0 %v4446, 14
        %v5138 = vpop.permute.xlu0 %5137
        %5139 = vrot.lane.b32.xlu0 %v4522, 14
        %v5140 = vpop.permute.xlu0 %5139
        %5141 = vrot.lane.b32.xlu0 %v4598, 14
        %v5142 = vpop.permute.xlu0 %5141
        %5143 = vrot.lane.b32.xlu0 %v4674, 14
        %v5144 = vpop.permute.xlu0 %5143
        %5177 = vrot.lane.b32.xlu0 %v3550, 16
        %v5178 = vpop.permute.xlu0 %5177
        %5179 = vrot.lane.b32.xlu0 %v3626, 16
        %v5180 = vpop.permute.xlu0 %5179
        %5181 = vrot.lane.b32.xlu0 %v3702, 16
        %v5182 = vpop.permute.xlu0 %5181
        %5183 = vrot.lane.b32.xlu0 %v3778, 16
        %v5184 = vpop.permute.xlu0 %5183
        %5185 = vrot.lane.b32.xlu0 %v3854, 16
        %v5186 = vpop.permute.xlu0 %5185
        %5187 = vrot.lane.b32.xlu0 %v3930, 16
        %v5188 = vpop.permute.xlu0 %5187
        %5189 = vrot.lane.b32.xlu0 %v4006, 16
        %v5190 = vpop.permute.xlu0 %5189
        %5191 = vrot.lane.b32.xlu0 %v4082, 16
        %v5192 = vpop.permute.xlu0 %5191
        %5193 = vrot.lane.b32.xlu0 %v4158, 16
        %v5194 = vpop.permute.xlu0 %5193
        %5195 = vrot.lane.b32.xlu0 %v4234, 16
        %v5196 = vpop.permute.xlu0 %5195
        %5197 = vrot.lane.b32.xlu0 %v4310, 16
        %v5198 = vpop.permute.xlu0 %5197
        %5199 = vrot.lane.b32.xlu0 %v4386, 16
        %v5200 = vpop.permute.xlu0 %5199
        %5201 = vrot.lane.b32.xlu0 %v4462, 16
        %v5202 = vpop.permute.xlu0 %5201
        %5203 = vrot.lane.b32.xlu0 %v4538, 16
        %v5204 = vpop.permute.xlu0 %5203
        %5205 = vrot.lane.b32.xlu0 %v4614, 16
        %v5206 = vpop.permute.xlu0 %5205
        %5207 = vrot.lane.b32.xlu0 %v4690, 16
        %v5208 = vpop.permute.xlu0 %5207
        %5241 = vrot.lane.b32.xlu0 %v3566, 18
        %v5242 = vpop.permute.xlu0 %5241
        %5243 = vrot.lane.b32.xlu0 %v3642, 18
        %v5244 = vpop.permute.xlu0 %5243
        %5245 = vrot.lane.b32.xlu0 %v3718, 18
        %v5246 = vpop.permute.xlu0 %5245
        %5247 = vrot.lane.b32.xlu0 %v3794, 18
        %v5248 = vpop.permute.xlu0 %5247
        %5249 = vrot.lane.b32.xlu0 %v3870, 18
        %v5250 = vpop.permute.xlu0 %5249
        %5251 = vrot.lane.b32.xlu0 %v3946, 18
        %v5252 = vpop.permute.xlu0 %5251
        %5253 = vrot.lane.b32.xlu0 %v4022, 18
        %v5254 = vpop.permute.xlu0 %5253
        %5255 = vrot.lane.b32.xlu0 %v4098, 18
        %v5256 = vpop.permute.xlu0 %5255
        %5257 = vrot.lane.b32.xlu0 %v4174, 18
        %v5258 = vpop.permute.xlu0 %5257
        %5259 = vrot.lane.b32.xlu0 %v4250, 18
        %v5260 = vpop.permute.xlu0 %5259
        %5261 = vrot.lane.b32.xlu0 %v4326, 18
        %v5262 = vpop.permute.xlu0 %5261
        %5263 = vrot.lane.b32.xlu0 %v4402, 18
        %v5264 = vpop.permute.xlu0 %5263
        %5265 = vrot.lane.b32.xlu0 %v4478, 18
        %v5266 = vpop.permute.xlu0 %5265
        %5267 = vrot.lane.b32.xlu0 %v4554, 18
        %v5268 = vpop.permute.xlu0 %5267
        %5269 = vrot.lane.b32.xlu0 %v4630, 18
        %v5270 = vpop.permute.xlu0 %5269
        %5271 = vrot.lane.b32.xlu0 %v4706, 18
        %v5272 = vpop.permute.xlu0 %5271
        %5305 = vrot.lane.b32.xlu0 %v3554, 20
        %v5306 = vpop.permute.xlu0 %5305
        %5307 = vrot.lane.b32.xlu0 %v3630, 20
        %v5308 = vpop.permute.xlu0 %5307
        %5309 = vrot.lane.b32.xlu0 %v3706, 20
        %v5310 = vpop.permute.xlu0 %5309
        %5311 = vrot.lane.b32.xlu0 %v3782, 20
        %v5312 = vpop.permute.xlu0 %5311
        %5313 = vrot.lane.b32.xlu0 %v3858, 20
        %v5314 = vpop.permute.xlu0 %5313
        %5315 = vrot.lane.b32.xlu0 %v3934, 20
        %v5316 = vpop.permute.xlu0 %5315
        %5317 = vrot.lane.b32.xlu0 %v4010, 20
        %v5318 = vpop.permute.xlu0 %5317
        %5319 = vrot.lane.b32.xlu0 %v4086, 20
        %v5320 = vpop.permute.xlu0 %5319
        %5321 = vrot.lane.b32.xlu0 %v4162, 20
        %v5322 = vpop.permute.xlu0 %5321
        %5323 = vrot.lane.b32.xlu0 %v4238, 20
        %v5324 = vpop.permute.xlu0 %5323
        %5325 = vrot.lane.b32.xlu0 %v4314, 20
        %v5326 = vpop.permute.xlu0 %5325
        %5327 = vrot.lane.b32.xlu0 %v4390, 20
        %v5328 = vpop.permute.xlu0 %5327
        %5329 = vrot.lane.b32.xlu0 %v4466, 20
        %v5330 = vpop.permute.xlu0 %5329
        %5331 = vrot.lane.b32.xlu0 %v4542, 20
        %v5332 = vpop.permute.xlu0 %5331
        %5333 = vrot.lane.b32.xlu0 %v4618, 20
        %v5334 = vpop.permute.xlu0 %5333
        %5335 = vrot.lane.b32.xlu0 %v4694, 20
        %v5336 = vpop.permute.xlu0 %5335
        %5369 = vrot.lane.b32.xlu0 %v3568, 22
        %v5370 = vpop.permute.xlu0 %5369
        %5371 = vrot.lane.b32.xlu0 %v3644, 22
        %v5372 = vpop.permute.xlu0 %5371
        %5373 = vrot.lane.b32.xlu0 %v3720, 22
        %v5374 = vpop.permute.xlu0 %5373
        %5375 = vrot.lane.b32.xlu0 %v3796, 22
        %v5376 = vpop.permute.xlu0 %5375
        %5377 = vrot.lane.b32.xlu0 %v3872, 22
        %v5378 = vpop.permute.xlu0 %5377
        %5379 = vrot.lane.b32.xlu0 %v3948, 22
        %v5380 = vpop.permute.xlu0 %5379
        %5381 = vrot.lane.b32.xlu0 %v4024, 22
        %v5382 = vpop.permute.xlu0 %5381
        %5383 = vrot.lane.b32.xlu0 %v4100, 22
        %v5384 = vpop.permute.xlu0 %5383
        %5385 = vrot.lane.b32.xlu0 %v4176, 22
        %v5386 = vpop.permute.xlu0 %5385
        %5387 = vrot.lane.b32.xlu0 %v4252, 22
        %v5388 = vpop.permute.xlu0 %5387
        %5389 = vrot.lane.b32.xlu0 %v4328, 22
        %v5390 = vpop.permute.xlu0 %5389
        %5391 = vrot.lane.b32.xlu0 %v4404, 22
        %v5392 = vpop.permute.xlu0 %5391
        %5393 = vrot.lane.b32.xlu0 %v4480, 22
        %v5394 = vpop.permute.xlu0 %5393
        %5395 = vrot.lane.b32.xlu0 %v4556, 22
        %v5396 = vpop.permute.xlu0 %5395
        %5397 = vrot.lane.b32.xlu0 %v4632, 22
        %v5398 = vpop.permute.xlu0 %5397
        %5399 = vrot.lane.b32.xlu0 %v4708, 22
        %v5400 = vpop.permute.xlu0 %5399
        %5433 = vrot.lane.b32.xlu0 %v3560, 24
        %v5434 = vpop.permute.xlu0 %5433
        %5435 = vrot.lane.b32.xlu0 %v3636, 24
        %v5436 = vpop.permute.xlu0 %5435
        %5437 = vrot.lane.b32.xlu0 %v3712, 24
        %v5438 = vpop.permute.xlu0 %5437
        %5439 = vrot.lane.b32.xlu0 %v3788, 24
        %v5440 = vpop.permute.xlu0 %5439
        %5441 = vrot.lane.b32.xlu0 %v3864, 24
        %v5442 = vpop.permute.xlu0 %5441
        %5443 = vrot.lane.b32.xlu0 %v3940, 24
        %v5444 = vpop.permute.xlu0 %5443
        %5445 = vrot.lane.b32.xlu0 %v4016, 24
        %v5446 = vpop.permute.xlu0 %5445
        %5447 = vrot.lane.b32.xlu0 %v4092, 24
        %v5448 = vpop.permute.xlu0 %5447
        %5449 = vrot.lane.b32.xlu0 %v4168, 24
        %v5450 = vpop.permute.xlu0 %5449
        %5451 = vrot.lane.b32.xlu0 %v4244, 24
        %v5452 = vpop.permute.xlu0 %5451
        %5453 = vrot.lane.b32.xlu0 %v4320, 24
        %v5454 = vpop.permute.xlu0 %5453
        %5455 = vrot.lane.b32.xlu0 %v4396, 24
        %v5456 = vpop.permute.xlu0 %5455
        %5457 = vrot.lane.b32.xlu0 %v4472, 24
        %v5458 = vpop.permute.xlu0 %5457
        %5459 = vrot.lane.b32.xlu0 %v4548, 24
        %v5460 = vpop.permute.xlu0 %5459
        %5461 = vrot.lane.b32.xlu0 %v4624, 24
        %v5462 = vpop.permute.xlu0 %5461
        %5463 = vrot.lane.b32.xlu0 %v4700, 24
        %v5464 = vpop.permute.xlu0 %5463
        %5497 = vrot.lane.b32.xlu0 %v3570, 26
        %v5498 = vpop.permute.xlu0 %5497
        %5499 = vrot.lane.b32.xlu0 %v3646, 26
        %v5500 = vpop.permute.xlu0 %5499
        %5501 = vrot.lane.b32.xlu0 %v3722, 26
        %v5502 = vpop.permute.xlu0 %5501
        %5503 = vrot.lane.b32.xlu0 %v3798, 26
        %v5504 = vpop.permute.xlu0 %5503
        %5505 = vrot.lane.b32.xlu0 %v3874, 26
        %v5506 = vpop.permute.xlu0 %5505
        %5507 = vrot.lane.b32.xlu0 %v3950, 26
        %v5508 = vpop.permute.xlu0 %5507
        %5509 = vrot.lane.b32.xlu0 %v4026, 26
        %v5510 = vpop.permute.xlu0 %5509
        %5511 = vrot.lane.b32.xlu0 %v4102, 26
        %v5512 = vpop.permute.xlu0 %5511
        %5513 = vrot.lane.b32.xlu0 %v4178, 26
        %v5514 = vpop.permute.xlu0 %5513
        %5515 = vrot.lane.b32.xlu0 %v4254, 26
        %v5516 = vpop.permute.xlu0 %5515
        %5517 = vrot.lane.b32.xlu0 %v4330, 26
        %v5518 = vpop.permute.xlu0 %5517
        %5519 = vrot.lane.b32.xlu0 %v4406, 26
        %v5520 = vpop.permute.xlu0 %5519
        %5521 = vrot.lane.b32.xlu0 %v4482, 26
        %v5522 = vpop.permute.xlu0 %5521
        %5523 = vrot.lane.b32.xlu0 %v4558, 26
        %v5524 = vpop.permute.xlu0 %5523
        %5525 = vrot.lane.b32.xlu0 %v4634, 26
        %v5526 = vpop.permute.xlu0 %5525
        %5527 = vrot.lane.b32.xlu0 %v4710, 26
        %v5528 = vpop.permute.xlu0 %5527
        %5561 = vrot.lane.b32.xlu0 %v3564, 28
        %v5562 = vpop.permute.xlu0 %5561
        %5563 = vrot.lane.b32.xlu0 %v3640, 28
        %v5564 = vpop.permute.xlu0 %5563
        %5565 = vrot.lane.b32.xlu0 %v3716, 28
        %v5566 = vpop.permute.xlu0 %5565
        %5567 = vrot.lane.b32.xlu0 %v3792, 28
        %v5568 = vpop.permute.xlu0 %5567
        %5569 = vrot.lane.b32.xlu0 %v3868, 28
        %v5570 = vpop.permute.xlu0 %5569
        %5571 = vrot.lane.b32.xlu0 %v3944, 28
        %v5572 = vpop.permute.xlu0 %5571
        %5573 = vrot.lane.b32.xlu0 %v4020, 28
        %v5574 = vpop.permute.xlu0 %5573
        %5575 = vrot.lane.b32.xlu0 %v4096, 28
        %v5576 = vpop.permute.xlu0 %5575
        %5577 = vrot.lane.b32.xlu0 %v4172, 28
        %v5578 = vpop.permute.xlu0 %5577
        %5579 = vrot.lane.b32.xlu0 %v4248, 28
        %v5580 = vpop.permute.xlu0 %5579
        %5581 = vrot.lane.b32.xlu0 %v4324, 28
        %v5582 = vpop.permute.xlu0 %5581
        %5583 = vrot.lane.b32.xlu0 %v4400, 28
        %v5584 = vpop.permute.xlu0 %5583
        %5585 = vrot.lane.b32.xlu0 %v4476, 28
        %v5586 = vpop.permute.xlu0 %5585
        %5587 = vrot.lane.b32.xlu0 %v4552, 28
        %v5588 = vpop.permute.xlu0 %5587
        %5589 = vrot.lane.b32.xlu0 %v4628, 28
        %v5590 = vpop.permute.xlu0 %5589
        %5591 = vrot.lane.b32.xlu0 %v4704, 28
        %v5592 = vpop.permute.xlu0 %5591
        %5625 = vrot.lane.b32.xlu0 %v3572, 30
        %v5626 = vpop.permute.xlu0 %5625
        %5627 = vrot.lane.b32.xlu0 %v3648, 30
        %v5628 = vpop.permute.xlu0 %5627
        %5629 = vrot.lane.b32.xlu0 %v3724, 30
        %v5630 = vpop.permute.xlu0 %5629
        %5631 = vrot.lane.b32.xlu0 %v3800, 30
        %v5632 = vpop.permute.xlu0 %5631
        %5633 = vrot.lane.b32.xlu0 %v3876, 30
        %v5634 = vpop.permute.xlu0 %5633
        %5635 = vrot.lane.b32.xlu0 %v3952, 30
        %v5636 = vpop.permute.xlu0 %5635
        %5637 = vrot.lane.b32.xlu0 %v4028, 30
        %v5638 = vpop.permute.xlu0 %5637
        %5639 = vrot.lane.b32.xlu0 %v4104, 30
        %v5640 = vpop.permute.xlu0 %5639
        %5641 = vrot.lane.b32.xlu0 %v4180, 30
        %v5642 = vpop.permute.xlu0 %5641
        %5643 = vrot.lane.b32.xlu0 %v4256, 30
        %v5644 = vpop.permute.xlu0 %5643
        %5645 = vrot.lane.b32.xlu0 %v4332, 30
        %v5646 = vpop.permute.xlu0 %5645
        %5647 = vrot.lane.b32.xlu0 %v4408, 30
        %v5648 = vpop.permute.xlu0 %5647
        %5649 = vrot.lane.b32.xlu0 %v4484, 30
        %v5650 = vpop.permute.xlu0 %5649
        %5651 = vrot.lane.b32.xlu0 %v4560, 30
        %v5652 = vpop.permute.xlu0 %5651
        %5653 = vrot.lane.b32.xlu0 %v4636, 30
        %v5654 = vpop.permute.xlu0 %5653
        %5655 = vrot.lane.b32.xlu0 %v4712, 30
        %v5656 = vpop.permute.xlu0 %5655
        %v5673 = vsel %vm3242, %v3512, %v4730
        %v5674 = vsel %vm3242, %v3588, %v4732
        %v5675 = vsel %vm3242, %v3664, %v4734
        %v5676 = vsel %vm3242, %v3740, %v4736
        %v5677 = vsel %vm3242, %v3816, %v4738
        %v5678 = vsel %vm3242, %v3892, %v4740
        %v5679 = vsel %vm3242, %v3968, %v4742
        %v5680 = vsel %vm3242, %v4044, %v4744
        %v5681 = vsel %vm3242, %v4120, %v4746
        %v5682 = vsel %vm3242, %v4196, %v4748
        %v5683 = vsel %vm3242, %v4272, %v4750
        %v5684 = vsel %vm3242, %v4348, %v4752
        %v5685 = vsel %vm3242, %v4424, %v4754
        %v5686 = vsel %vm3242, %v4500, %v4756
        %v5687 = vsel %vm3242, %v4576, %v4758
        %v5688 = vsel %vm3242, %v4652, %v4760
        %v5689 = vsel %vm3259, %v5673, %v4794
        %v5690 = vsel %vm3259, %v5674, %v4796
        %v5691 = vsel %vm3259, %v5675, %v4798
        %v5692 = vsel %vm3259, %v5676, %v4800
        %v5693 = vsel %vm3259, %v5677, %v4802
        %v5694 = vsel %vm3259, %v5678, %v4804
        %v5695 = vsel %vm3259, %v5679, %v4806
        %v5696 = vsel %vm3259, %v5680, %v4808
        %v5697 = vsel %vm3259, %v5681, %v4810
        %v5698 = vsel %vm3259, %v5682, %v4812
        %v5699 = vsel %vm3259, %v5683, %v4814
        %v5700 = vsel %vm3259, %v5684, %v4816
        %v5701 = vsel %vm3259, %v5685, %v4818
        %v5702 = vsel %vm3259, %v5686, %v4820
        %v5703 = vsel %vm3259, %v5687, %v4822
        %v5704 = vsel %vm3259, %v5688, %v4824
        %v5705 = vsel %vm3276, %v5689, %v4858
        %v5706 = vsel %vm3276, %v5690, %v4860
        %v5707 = vsel %vm3276, %v5691, %v4862
        %v5708 = vsel %vm3276, %v5692, %v4864
        %v5709 = vsel %vm3276, %v5693, %v4866
        %v5710 = vsel %vm3276, %v5694, %v4868
        %v5711 = vsel %vm3276, %v5695, %v4870
        %v5712 = vsel %vm3276, %v5696, %v4872
        %v5713 = vsel %vm3276, %v5697, %v4874
        %v5714 = vsel %vm3276, %v5698, %v4876
        %v5715 = vsel %vm3276, %v5699, %v4878
        %v5716 = vsel %vm3276, %v5700, %v4880
        %v5717 = vsel %vm3276, %v5701, %v4882
        %v5718 = vsel %vm3276, %v5702, %v4884
        %v5719 = vsel %vm3276, %v5703, %v4886
        %v5720 = vsel %vm3276, %v5704, %v4888
        %v5721 = vsel %vm3293, %v5705, %v4922
        %v5722 = vsel %vm3293, %v5706, %v4924
        %v5723 = vsel %vm3293, %v5707, %v4926
        %v5724 = vsel %vm3293, %v5708, %v4928
        %v5725 = vsel %vm3293, %v5709, %v4930
        %v5726 = vsel %vm3293, %v5710, %v4932
        %v5727 = vsel %vm3293, %v5711, %v4934
        %v5728 = vsel %vm3293, %v5712, %v4936
        %v5729 = vsel %vm3293, %v5713, %v4938
        %v5730 = vsel %vm3293, %v5714, %v4940
        %v5731 = vsel %vm3293, %v5715, %v4942
        %v5732 = vsel %vm3293, %v5716, %v4944
        %v5733 = vsel %vm3293, %v5717, %v4946
        %v5734 = vsel %vm3293, %v5718, %v4948
        %v5735 = vsel %vm3293, %v5719, %v4950
        %v5736 = vsel %vm3293, %v5720, %v4952
        %v5737 = vsel %vm3310, %v5721, %v4986
        %v5738 = vsel %vm3310, %v5722, %v4988
        %v5739 = vsel %vm3310, %v5723, %v4990
        %v5740 = vsel %vm3310, %v5724, %v4992
        %v5741 = vsel %vm3310, %v5725, %v4994
        %v5742 = vsel %vm3310, %v5726, %v4996
        %v5743 = vsel %vm3310, %v5727, %v4998
        %v5744 = vsel %vm3310, %v5728, %v5000
        %v5745 = vsel %vm3310, %v5729, %v5002
        %v5746 = vsel %vm3310, %v5730, %v5004
        %v5747 = vsel %vm3310, %v5731, %v5006
        %v5748 = vsel %vm3310, %v5732, %v5008
        %v5749 = vsel %vm3310, %v5733, %v5010
        %v5750 = vsel %vm3310, %v5734, %v5012
        %v5751 = vsel %vm3310, %v5735, %v5014
        %v5752 = vsel %vm3310, %v5736, %v5016
        %v5753 = vsel %vm3327, %v5737, %v5050
        %v5754 = vsel %vm3327, %v5738, %v5052
        %v5755 = vsel %vm3327, %v5739, %v5054
        %v5756 = vsel %vm3327, %v5740, %v5056
        %v5757 = vsel %vm3327, %v5741, %v5058
        %v5758 = vsel %vm3327, %v5742, %v5060
        %v5759 = vsel %vm3327, %v5743, %v5062
        %v5760 = vsel %vm3327, %v5744, %v5064
        %v5761 = vsel %vm3327, %v5745, %v5066
        %v5762 = vsel %vm3327, %v5746, %v5068
        %v5763 = vsel %vm3327, %v5747, %v5070
        %v5764 = vsel %vm3327, %v5748, %v5072
        %v5765 = vsel %vm3327, %v5749, %v5074
        %v5766 = vsel %vm3327, %v5750, %v5076
        %v5767 = vsel %vm3327, %v5751, %v5078
        %v5768 = vsel %vm3327, %v5752, %v5080
        %v5769 = vsel %vm3344, %v5753, %v5114
        %v5770 = vsel %vm3344, %v5754, %v5116
        %v5771 = vsel %vm3344, %v5755, %v5118
        %v5772 = vsel %vm3344, %v5756, %v5120
        %v5773 = vsel %vm3344, %v5757, %v5122
        %v5774 = vsel %vm3344, %v5758, %v5124
        %v5775 = vsel %vm3344, %v5759, %v5126
        %v5776 = vsel %vm3344, %v5760, %v5128
        %v5777 = vsel %vm3344, %v5761, %v5130
        %v5778 = vsel %vm3344, %v5762, %v5132
        %v5779 = vsel %vm3344, %v5763, %v5134
        %v5780 = vsel %vm3344, %v5764, %v5136
        %v5781 = vsel %vm3344, %v5765, %v5138
        %v5782 = vsel %vm3344, %v5766, %v5140
        %v5783 = vsel %vm3344, %v5767, %v5142
        %v5784 = vsel %vm3344, %v5768, %v5144
        %v5785 = vsel %vm3361, %v5769, %v5178
        %v5786 = vsel %vm3361, %v5770, %v5180
        %v5787 = vsel %vm3361, %v5771, %v5182
        %v5788 = vsel %vm3361, %v5772, %v5184
        %v5789 = vsel %vm3361, %v5773, %v5186
        %v5790 = vsel %vm3361, %v5774, %v5188
        %v5791 = vsel %vm3361, %v5775, %v5190
        %v5792 = vsel %vm3361, %v5776, %v5192
        %v5793 = vsel %vm3361, %v5777, %v5194
        %v5794 = vsel %vm3361, %v5778, %v5196
        %v5795 = vsel %vm3361, %v5779, %v5198
        %v5796 = vsel %vm3361, %v5780, %v5200
        %v5797 = vsel %vm3361, %v5781, %v5202
        %v5798 = vsel %vm3361, %v5782, %v5204
        %v5799 = vsel %vm3361, %v5783, %v5206
        %v5800 = vsel %vm3361, %v5784, %v5208
        %v5801 = vsel %vm3378, %v5785, %v5242
        %v5802 = vsel %vm3378, %v5786, %v5244
        %v5803 = vsel %vm3378, %v5787, %v5246
        %v5804 = vsel %vm3378, %v5788, %v5248
        %v5805 = vsel %vm3378, %v5789, %v5250
        %v5806 = vsel %vm3378, %v5790, %v5252
        %v5807 = vsel %vm3378, %v5791, %v5254
        %v5808 = vsel %vm3378, %v5792, %v5256
        %v5809 = vsel %vm3378, %v5793, %v5258
        %v5810 = vsel %vm3378, %v5794, %v5260
        %v5811 = vsel %vm3378, %v5795, %v5262
        %v5812 = vsel %vm3378, %v5796, %v5264
        %v5813 = vsel %vm3378, %v5797, %v5266
        %v5814 = vsel %vm3378, %v5798, %v5268
        %v5815 = vsel %vm3378, %v5799, %v5270
        %v5816 = vsel %vm3378, %v5800, %v5272
        %v5817 = vsel %vm3395, %v5801, %v5306
        %v5818 = vsel %vm3395, %v5802, %v5308
        %v5819 = vsel %vm3395, %v5803, %v5310
        %v5820 = vsel %vm3395, %v5804, %v5312
        %v5821 = vsel %vm3395, %v5805, %v5314
        %v5822 = vsel %vm3395, %v5806, %v5316
        %v5823 = vsel %vm3395, %v5807, %v5318
        %v5824 = vsel %vm3395, %v5808, %v5320
        %v5825 = vsel %vm3395, %v5809, %v5322
        %v5826 = vsel %vm3395, %v5810, %v5324
        %v5827 = vsel %vm3395, %v5811, %v5326
        %v5828 = vsel %vm3395, %v5812, %v5328
        %v5829 = vsel %vm3395, %v5813, %v5330
        %v5830 = vsel %vm3395, %v5814, %v5332
        %v5831 = vsel %vm3395, %v5815, %v5334
        %v5832 = vsel %vm3395, %v5816, %v5336
        %v5833 = vsel %vm3412, %v5817, %v5370
        %v5834 = vsel %vm3412, %v5818, %v5372
        %v5835 = vsel %vm3412, %v5819, %v5374
        %v5836 = vsel %vm3412, %v5820, %v5376
        %v5837 = vsel %vm3412, %v5821, %v5378
        %v5838 = vsel %vm3412, %v5822, %v5380
        %v5839 = vsel %vm3412, %v5823, %v5382
        %v5840 = vsel %vm3412, %v5824, %v5384
        %v5841 = vsel %vm3412, %v5825, %v5386
        %v5842 = vsel %vm3412, %v5826, %v5388
        %v5843 = vsel %vm3412, %v5827, %v5390
        %v5844 = vsel %vm3412, %v5828, %v5392
        %v5845 = vsel %vm3412, %v5829, %v5394
        %v5846 = vsel %vm3412, %v5830, %v5396
        %v5847 = vsel %vm3412, %v5831, %v5398
        %v5848 = vsel %vm3412, %v5832, %v5400
        %v5849 = vsel %vm3429, %v5833, %v5434
        %v5850 = vsel %vm3429, %v5834, %v5436
        %v5851 = vsel %vm3429, %v5835, %v5438
        %v5852 = vsel %vm3429, %v5836, %v5440
        %v5853 = vsel %vm3429, %v5837, %v5442
        %v5854 = vsel %vm3429, %v5838, %v5444
        %v5855 = vsel %vm3429, %v5839, %v5446
        %v5856 = vsel %vm3429, %v5840, %v5448
        %v5857 = vsel %vm3429, %v5841, %v5450
        %v5858 = vsel %vm3429, %v5842, %v5452
        %v5859 = vsel %vm3429, %v5843, %v5454
        %v5860 = vsel %vm3429, %v5844, %v5456
        %v5861 = vsel %vm3429, %v5845, %v5458
        %v5862 = vsel %vm3429, %v5846, %v5460
        %v5863 = vsel %vm3429, %v5847, %v5462
        %v5864 = vsel %vm3429, %v5848, %v5464
        %v5865 = vsel %vm3446, %v5849, %v5498
        %v5866 = vsel %vm3446, %v5850, %v5500
        %v5867 = vsel %vm3446, %v5851, %v5502
        %v5868 = vsel %vm3446, %v5852, %v5504
        %v5869 = vsel %vm3446, %v5853, %v5506
        %v5870 = vsel %vm3446, %v5854, %v5508
        %v5871 = vsel %vm3446, %v5855, %v5510
        %v5872 = vsel %vm3446, %v5856, %v5512
        %v5873 = vsel %vm3446, %v5857, %v5514
        %v5874 = vsel %vm3446, %v5858, %v5516
        %v5875 = vsel %vm3446, %v5859, %v5518
        %v5876 = vsel %vm3446, %v5860, %v5520
        %v5877 = vsel %vm3446, %v5861, %v5522
        %v5878 = vsel %vm3446, %v5862, %v5524
        %v5879 = vsel %vm3446, %v5863, %v5526
        %v5880 = vsel %vm3446, %v5864, %v5528
        %v5881 = vsel %vm3463, %v5865, %v5562
        %v5882 = vsel %vm3463, %v5866, %v5564
        %v5883 = vsel %vm3463, %v5867, %v5566
        %v5884 = vsel %vm3463, %v5868, %v5568
        %v5885 = vsel %vm3463, %v5869, %v5570
        %v5886 = vsel %vm3463, %v5870, %v5572
        %v5887 = vsel %vm3463, %v5871, %v5574
        %v5888 = vsel %vm3463, %v5872, %v5576
        %v5889 = vsel %vm3463, %v5873, %v5578
        %v5890 = vsel %vm3463, %v5874, %v5580
        %v5891 = vsel %vm3463, %v5875, %v5582
        %v5892 = vsel %vm3463, %v5876, %v5584
        %v5893 = vsel %vm3463, %v5877, %v5586
        %v5894 = vsel %vm3463, %v5878, %v5588
        %v5895 = vsel %vm3463, %v5879, %v5590
        %v5896 = vsel %vm3463, %v5880, %v5592
        %v5897 = vsel %vm3480, %v5881, %v5626
        %v5898 = vsel %vm3480, %v5882, %v5628
        %v5899 = vsel %vm3480, %v5883, %v5630
        %v5900 = vsel %vm3480, %v5884, %v5632
        %v5901 = vsel %vm3480, %v5885, %v5634
        %v5902 = vsel %vm3480, %v5886, %v5636
        %v5903 = vsel %vm3480, %v5887, %v5638
        %v5904 = vsel %vm3480, %v5888, %v5640
        %v5905 = vsel %vm3480, %v5889, %v5642
        %v5906 = vsel %vm3480, %v5890, %v5644
        %v5907 = vsel %vm3480, %v5891, %v5646
        %v5908 = vsel %vm3480, %v5892, %v5648
        %v5909 = vsel %vm3480, %v5893, %v5650
        %v5910 = vsel %vm3480, %v5894, %v5652
        %v5911 = vsel %vm3480, %v5895, %v5654
        %v5912 = vsel %vm3480, %v5896, %v5656
        %v5929 = vrot.slane %v5897, 7
        %v5930 = vrot.slane %v5898, 7
        %v5931 = vrot.slane %v5899, 7
        %v5932 = vrot.slane %v5900, 7
        %v5933 = vrot.slane %v5901, 7
        %v5934 = vrot.slane %v5902, 7
        %v5935 = vrot.slane %v5903, 7
        %v5936 = vrot.slane %v5904, 7
        %v5937 = vrot.slane %v5905, 7
        %v5938 = vrot.slane %v5906, 7
        %v5939 = vrot.slane %v5907, 7
        %v5940 = vrot.slane %v5908, 7
        %v5941 = vrot.slane %v5909, 7
        %v5942 = vrot.slane %v5910, 7
        %v5943 = vrot.slane %v5911, 7
        %v5944 = vrot.slane %v5912, 7
        %vm5961 = vcmask 1040384
        %v5962 = vsel %vm5961, %v3481, %v5929
        %v5963 = vsel %vm5961, %v3482, %v5930
        %v5964 = vsel %vm5961, %v3483, %v5931
        %v5965 = vsel %vm5961, %v3484, %v5932
        %v5966 = vsel %vm5961, %v3485, %v5933
        %v5967 = vsel %vm5961, %v3486, %v5934
        %v5968 = vsel %vm5961, %v3487, %v5935
        %v5969 = vsel %vm5961, %v3488, %v5936
        %v5970 = vsel %vm5961, %v3489, %v5937
        %v5971 = vsel %vm5961, %v3490, %v5938
        %v5972 = vsel %vm5961, %v3491, %v5939
        %v5973 = vsel %vm5961, %v3492, %v5940
        %v5974 = vsel %vm5961, %v3493, %v5941
        %v5975 = vsel %vm5961, %v3494, %v5942
        %v5976 = vsel %vm5961, %v3495, %v5943
        %v5977 = vsel %vm5961, %v3496, %v5944
        %5994 = vst [vmem:[#allocation1] ss:$4 sm:$0xff] %v5962
        %s5995 = scalar_lea.vmem [#allocation1], 1
        %5996 = vst [vmem:[%s5995] ss:$4 sm:$0xff] %v5963
        %s5997 = scalar_lea.vmem [#allocation1], 2
        %5998 = vst [vmem:[%s5997] ss:$4 sm:$0xff] %v5964
        %s5999 = scalar_lea.vmem [#allocation1], 3
        %6000 = vst [vmem:[%s5999] ss:$4 sm:$0xff] %v5965
        %s6001 = scalar_lea.vmem [#allocation1], 32
        %6002 = vst [vmem:[%s6001] ss:$4 sm:$0xff] %v5966
        %s6003 = scalar_lea.vmem [#allocation1], 33
        %6004 = vst [vmem:[%s6003] ss:$4 sm:$0xff] %v5967
        %s6005 = scalar_lea.vmem [#allocation1], 34
        %6006 = vst [vmem:[%s6005] ss:$4 sm:$0xff] %v5968
        %s6007 = scalar_lea.vmem [#allocation1], 35
        %6008 = vst [vmem:[%s6007] ss:$4 sm:$0xff] %v5969
        %v6009 = vld.sshfl [vmem:[#allocation1] sm:$0xff pattern:$0x73625140]
        %v6010 = vld.sshfl [vmem:[#allocation1 + $0x20] sm:$0xff pattern:$0x73625140]
        %6011 = vst [vmem:[#allocation1] ss:$4 sm:$0xff] %v5970
        %6012 = vst [vmem:[%s5995] ss:$4 sm:$0xff] %v5971
        %6013 = vst [vmem:[%s5997] ss:$4 sm:$0xff] %v5972
        %6014 = vst [vmem:[%s5999] ss:$4 sm:$0xff] %v5973
        %6015 = vst [vmem:[%s6001] ss:$4 sm:$0xff] %v5974
        %6016 = vst [vmem:[%s6003] ss:$4 sm:$0xff] %v5975
        %6017 = vst [vmem:[%s6005] ss:$4 sm:$0xff] %v5976
        %6018 = vst [vmem:[%s6007] ss:$4 sm:$0xff] %v5977
        %v6019 = vld.sshfl [vmem:[#allocation1] sm:$0xff pattern:$0x73625140]
        %v6020 = vld.sshfl [vmem:[#allocation1 + $0x20] sm:$0xff pattern:$0x73625140]
        %vm6025 = vcmask 261120
        %6026 = vst.msk [vmem:[%s154] sm:$0xff] %vm6025, %v6009
        %6027 = vst.msk [vmem:[%s154 + $0x8] sm:$0xff] %vm6025, %v6010
        %6028 = vst.msk [vmem:[%s154 + $0x10] sm:$0xff] %vm6025, %v6019
        %6029 = vst.msk [vmem:[%s154 + $0x18] sm:$0xff] %vm6025, %v6020
        %s6030 = sand.u32 %s68, 1
        %s6031 = scalar_lea.sflag [#allocation4], %s6030
        %s6032 = sand.u32 %s68, 1
        %s6033 = smul.addr %s6032, 32
        %s6034 = scalar_lea.vmem [#allocation5], %s6033
        // Predicated region
        $region29: #{tpu_custom_call.1} parent=23 // pred_check
          %p6035 = pneg %p78
        $region30: #{tpu_custom_call.1} parent=23 // pred_check_branch
          %6037 = sbr.rel (%p6035) target = $region32
        $region31: #{tpu_custom_call.1} parent=23 // pred_region
          %s6038 = smul.u32 4, %s23
          %6040 = vsyncadd %s6031, 0
          %s6041 = smul.addr %s22, 4
          %s6042 = sadd.s32 %s6038, %s6041
          %s6043 = smul.addr %s6042, 8
          %s6044 = scalar_lea.hbm %s1, %s6043
          %s6045 = sshll.u32 %s6034, 4
          %s6046 = int_to_ptr.vmem [resolvable:$true] %s6045
          %s6047 = sshll.u32 %s6044, 4
          %s6048 = int_to_ptr.hbm [resolvable:$true] %s6047
          %6053 = dma.vmem_to_hbm [thread:$0]  %s6046, 512, %s6048, %s6031, 128, 128, 8
        $region32: #{tpu_custom_call.1} parent=23 // pred_fallthru
          _
      $region24: #{tpu_custom_call.1} parent=5 // pred_fallthru
        _
      %p6054 = scmp.le.s32.totalorder 2, %s13
      // Predicated region
      $region33: #{tpu_custom_call.1} parent=5 // pred_check
        %p6055 = pneg %p6054
      $region34: #{tpu_custom_call.1} parent=5 // pred_check_branch
        %6057 = sbr.rel (%p6055) target = $region36
      $region35: #{tpu_custom_call.1} parent=5 // pred_region
        %s6058 = ssub.s32 %s13, 2
        // Predicated region
        $region37: #{tpu_custom_call.1} parent=35 // pred_check
          %p6059 = pneg %p84
        $region38: #{tpu_custom_call.1} parent=35 // pred_check_branch
          %6061 = sbr.rel (%p6059) target = $region40
        $region39: #{tpu_custom_call.1} parent=35 // pred_region
          %s6062 = sand.u32 %s69, 1
          %s6063 = scalar_lea.sflag [#allocation4], %s6062
          %s6064 = sand.u32 %s69, 1
          %s6065 = smul.addr %s6064, 32
          %s6066 = scalar_lea.vmem [#allocation5], %s6065
          %6068 = dma.done %s6063, 512
        $region40: #{tpu_custom_call.1} parent=35 // pred_fallthru
          _
      $region36: #{tpu_custom_call.1} parent=5 // pred_fallthru
        _
    $region6: #{tpu_custom_call.1} parent=1 // loop_footer
      %s17 = sadd.s32 1, %s13
    $region7: #{tpu_custom_call.1} parent=1 // loop_footer_branch
      %12 = sbr.rel target = $region3
    $region8: #{tpu_custom_call.1} parent=1 // loop_exit
      _
    %6069 = vsyncpa [#allocation3], 1
    %s6070 = scalar_lea.sflag [#allocation3], 1
    %6071 = vsyncpa %s6070, 1
    %6072 = vsyncpa [#allocation4], 1
    %s6073 = scalar_lea.sflag [#allocation4], 1
    %6074 = vsyncpa %s6073, 1

</llo_original>
